<compile_context>
chip_gen: v7x
topology: tpu7x:2x2x1
jax: 0.10.0
libtpu: 0.0.40
codegen_flags: <defaults>
</compile_context>

<pallas_src>
import functools
import math

import jax
import jax.numpy as jnp
from jax import lax
from jax.experimental import pallas as pl
from jax.experimental.pallas import tpu as pltpu

EPS = 1e-6
_ROW_TILE_TARGET = 512  # rows per grid step for the row-tiled GEMM/LN kernels


def _row_tile(n, target=_ROW_TILE_TARGET):
    """Largest row tile that divides n, is a multiple of 8 and <= target.

    Falls back to the full extent (always a legal block) when no such tile
    exists (e.g. the tiny demo shapes)."""
    if n <= target or n % 8 != 0:
        return n
    best = n
    for cand in range(8, target + 1, 8):
        if n % cand == 0:
            best = cand
    return best


def _nbytes(shape, dtype, bufs):
    size = 1
    for s in shape:
        size *= int(s)
    return size * jnp.dtype(dtype).itemsize * bufs


def _compiler_params(sem, blocks):
    """CompilerParams with an explicit VMEM limit sized from the resident set.

    `blocks` is a list of (block_shape, dtype, buffer_count)."""
    resident = sum(_nbytes(s, d, b) for (s, d, b) in blocks)
    limit = int(resident * 1.5) + (4 << 20)          # 50% headroom + slack
    limit = min(max(limit, 32 << 20), 100 << 20)     # clamp to sane bounds
    return pltpu.CompilerParams(dimension_semantics=sem, vmem_limit_bytes=limit)


def _ln_rows(x_f32, gamma, beta):
    """Row-wise LayerNorm matching torch reference: unbiased std, eps on std."""
    d = x_f32.shape[-1]
    mean = jnp.mean(x_f32, axis=-1, keepdims=True)
    diff = x_f32 - mean
    var = jnp.sum(diff * diff, axis=-1, keepdims=True) / (d - 1)
    inv = pl.reciprocal(jnp.sqrt(var) + EPS, approx=True)   # EUP, not VALU divide
    return gamma * diff * inv + beta


# ----------------------------- Pallas kernels ------------------------------ #

def _ln_qkv_kernel(x_ref, g_ref, b_ref, w_ref, bias_ref, q_ref, k_ref, v_ref):
    """Fused LayerNorm + packed QKV projection; 3 lane-dense bf16 outputs."""
    x = x_ref[...].astype(jnp.float32)
    xn = _ln_rows(x, g_ref[...], b_ref[...]).astype(jnp.bfloat16)
    h = jnp.dot(xn, w_ref[...], preferred_element_type=jnp.float32) + bias_ref[...]
    d = q_ref.shape[-1]
    q_ref[...] = h[:, :d].astype(q_ref.dtype)
    k_ref[...] = h[:, d:2 * d].astype(k_ref.dtype)
    v_ref[...] = h[:, 2 * d:].astype(v_ref.dtype)


def _ln_linear_kernel(x_ref, g_ref, b_ref, w_ref, bias_ref, o_ref):
    """Fused LayerNorm + single linear projection (bf16 MXU, f32 accumulate)."""
    x = x_ref[...].astype(jnp.float32)
    xn = _ln_rows(x, g_ref[...], b_ref[...]).astype(jnp.bfloat16)
    acc = jnp.dot(xn, w_ref[...], preferred_element_type=jnp.float32) + bias_ref[...]
    o_ref[...] = acc.astype(o_ref.dtype)


def _kv_kernel(x_ref, w_ref, bias_ref, k_ref, v_ref):
    """Packed KV projection of (un-normalized) encoder memory."""
    x = x_ref[...].astype(jnp.bfloat16)
    h = jnp.dot(x, w_ref[...], preferred_element_type=jnp.float32) + bias_ref[...]
    d = k_ref.shape[-1]
    k_ref[...] = h[:, :d].astype(k_ref.dtype)
    v_ref[...] = h[:, d:].astype(v_ref.dtype)


def _attn_wo_res_kernel(q_ref, k_ref, v_ref, m_ref, res_ref, wo_ref, bo_ref,
                        o_ref, *, num_heads, scale):
    """All heads of one (batch, q-tile) + fused W_O projection + residual.

    q/k/v stay in lane-dense [rows, D] layout; head columns are sliced
    statically in-kernel. The output projection is folded into the head loop
    (acc += head_h @ W_O[h*dk:(h+1)*dk, :]) so no [tq, D] concatenate and no
    extra HBM round-trip for the attention output are needed.
    """
    tq = q_ref.shape[1]
    d_model = q_ref.shape[2]
    dk = d_model // num_heads

    # Pre-scale q once (not per head); keep operands bf16 for the MXU.
    qs = (q_ref[0].astype(jnp.float32) * scale).astype(jnp.bfloat16)   # [tq, D]
    k = k_ref[0]                                                       # [S, D] bf16
    v = v_ref[0]                                                       # [S, D] bf16
    wo = wo_ref[...]                                                   # [D, D] bf16
    # Additive mask computed once per grid step (hoisted out of the head loop).
    madd = jnp.where(m_ref[0] == 0, jnp.float32(-1e9), jnp.float32(0.0))

    acc = jnp.zeros((tq, d_model), jnp.float32)
    for h in range(num_heads):            # static loop, H is small
        sl = slice(h * dk, (h + 1) * dk)
        # q_h @ k_h^T without an explicit in-kernel transpose.
        s = lax.dot_general(qs[:, sl], k[:, sl],
                            dimension_numbers=(((1,), (1,)), ((), ())),
                            preferred_element_type=jnp.float32)
        s = s + madd                       # masked_fill(-1e9) equivalent
        mrow = jnp.max(s, axis=-1, keepdims=True)
        e = jnp.exp(s - mrow)
        p = e * pl.reciprocal(jnp.sum(e, axis=-1, keepdims=True), approx=True)
        head = jnp.dot(p.astype(jnp.bfloat16), v[:, sl],
                       preferred_element_type=jnp.float32)             # [tq, dk]
        acc = acc + jnp.dot(head.astype(jnp.bfloat16), wo[sl, :],
                            preferred_element_type=jnp.float32)        # += head @ Wo_h
    out = res_ref[0].astype(jnp.float32) + acc + bo_ref[...]
    o_ref[0] = out.astype(o_ref.dtype)
    # TODO(synk): for long S, add a K/S grid axis ("arbitrary") with flash-style
    #             online-softmax m/l/acc scratch instead of full [S, D] K/V blocks.
    # TODO(synk): for small dk (< 128) pack several heads per dot to raise MXU fill.


def _ln_ffn_residual_kernel(x_ref, g_ref, b_ref, w1_ref, b1_ref, w2_ref, b2_ref,
                            o_ref):
    """Fused LayerNorm + FFN (w1 -> ReLU -> w2) + residual add."""
    x = x_ref[...].astype(jnp.float32)
    xn = _ln_rows(x, g_ref[...], b_ref[...]).astype(jnp.bfloat16)
    h = jnp.dot(xn, w1_ref[...], preferred_element_type=jnp.float32) + b1_ref[...]
    h = jnp.maximum(h, 0.0).astype(jnp.bfloat16)
    y = jnp.dot(h, w2_ref[...], preferred_element_type=jnp.float32) + b2_ref[...]
    o_ref[...] = (x + y).astype(o_ref.dtype)
    # TODO(synk): tile over d_ff (reduction grid axis + f32 accumulator) for
    #             large d_ff so the resident set fits v7x's 64 MiB VMEM.


# ------------------------------ op wrappers -------------------------------- #

def _const1(shape):
    """Resident (grid-invariant) block: constant index_map + single buffer."""
    return pl.BlockSpec(shape, lambda i: (0,) * len(shape),
                        pipeline_mode=pl.Buffered(1))


def _const2(shape):
    return pl.BlockSpec(shape, lambda b, i: (0,) * len(shape),
                        pipeline_mode=pl.Buffered(1))


def ln_qkv_proj(x2d, gamma, beta, w_qkv, b_qkv):
    n, d = x2d.shape
    d3 = w_qkv.shape[1]
    tn = _row_tile(n)
    row = lambda i: (i, 0)
    w_qkv = w_qkv.astype(jnp.bfloat16)
    out_sd = jax.ShapeDtypeStruct((n, d), jnp.bfloat16)
    blocks = [((tn, d), jnp.float32, 2), ((d, d3), jnp.bfloat16, 1),
              ((1, d3), jnp.float32, 1), ((tn, d), jnp.bfloat16, 6)]
    return pl.pallas_call(
        _ln_qkv_kernel,
        out_shape=(out_sd, out_sd, out_sd),
        grid=(n // tn,),
        in_specs=[pl.BlockSpec((tn, d), row),
                  _const1((1, d)),
                  _const1((1, d)),
                  _const1((d, d3)),
                  _const1((1, d3))],
        out_specs=(pl.BlockSpec((tn, d), row),) * 3,
        compiler_params=_compiler_params(("parallel",), blocks),
    )(x2d, gamma.reshape(1, d), beta.reshape(1, d), w_qkv, b_qkv.reshape(1, d3))


def ln_linear(x2d, gamma, beta, w, b):
    n, d = x2d.shape
    m = w.shape[1]
    tn = _row_tile(n)
    row = lambda i: (i, 0)
    w = w.astype(jnp.bfloat16)
    blocks = [((tn, d), jnp.float32, 2), ((d, m), jnp.bfloat16, 1),
              ((1, m), jnp.float32, 1), ((tn, m), jnp.bfloat16, 2)]
    return pl.pallas_call(
        _ln_linear_kernel,
        out_shape=jax.ShapeDtypeStruct((n, m), jnp.bfloat16),
        grid=(n // tn,),
        in_specs=[pl.BlockSpec((tn, d), row),
                  _const1((1, d)),
                  _const1((1, d)),
                  _const1((d, m)),
                  _const1((1, m))],
        out_specs=pl.BlockSpec((tn, m), row),
        compiler_params=_compiler_params(("parallel",), blocks),
    )(x2d, gamma.reshape(1, d), beta.reshape(1, d), w, b.reshape(1, m))


def kv_proj(x2d, w_kv, b_kv):
    n, d = x2d.shape
    d2 = w_kv.shape[1]
    dout = d2 // 2
    tn = _row_tile(n)
    row = lambda i: (i, 0)
    w_kv = w_kv.astype(jnp.bfloat16)
    out_sd = jax.ShapeDtypeStruct((n, dout), jnp.bfloat16)
    blocks = [((tn, d), jnp.float32, 2), ((d, d2), jnp.bfloat16, 1),
              ((1, d2), jnp.float32, 1), ((tn, dout), jnp.bfloat16, 4)]
    return pl.pallas_call(
        _kv_kernel,
        out_shape=(out_sd, out_sd),
        grid=(n // tn,),
        in_specs=[pl.BlockSpec((tn, d), row),
                  _const1((d, d2)),
                  _const1((1, d2))],
        out_specs=(pl.BlockSpec((tn, dout), row),) * 2,
        compiler_params=_compiler_params(("parallel",), blocks),
    )(x2d, w_kv, b_kv.reshape(1, d2))


def attention_wo_residual(q, k, v, mask, res, wo, bo, num_heads, scale):
    # q: [B, T, D] bf16, k/v: [B, S, D] bf16, mask: [Bm, Tm, S] (Bm in {1,B},
    # Tm in {1,T}), res: [B, T, D] f32 residual, wo: [D, D], bo: [D].
    B, T, D = q.shape
    S = k.shape[1]
    Bm, Tm, Sm = mask.shape
    assert Sm == S and D % num_heads == 0

    tq = _row_tile(T)
    tqm = tq if Tm != 1 else 1

    q_map = lambda b, qi: (b, qi, 0)
    kv_map = lambda b, qi: (b, 0, 0)
    m_map = lambda b, qi: (b if Bm != 1 else 0, qi if Tm != 1 else 0, 0)

    wo = wo.astype(jnp.bfloat16)
    kern = functools.partial(_attn_wo_res_kernel, num_heads=num_heads, scale=scale)
    blocks = [((tq, D), jnp.bfloat16, 2), ((S, D), jnp.bfloat16, 4),
              ((tqm, S), jnp.int32, 2), ((tq, D), jnp.float32, 2),
              ((D, D), jnp.bfloat16, 1), ((1, D), jnp.float32, 1),
              ((tq, D), jnp.float32, 2)]
    return pl.pallas_call(
        kern,
        out_shape=jax.ShapeDtypeStruct((B, T, D), res.dtype),
        grid=(B, T // tq),
        in_specs=[pl.BlockSpec((1, tq, D), q_map),
                  pl.BlockSpec((1, S, D), kv_map),
                  pl.BlockSpec((1, S, D), kv_map),
                  pl.BlockSpec((1, tqm, S), m_map),
                  pl.BlockSpec((1, tq, D), q_map),
                  _const2((D, D)),
                  _const2((1, D))],
        out_specs=pl.BlockSpec((1, tq, D), q_map),
        compiler_params=_compiler_params(("parallel", "parallel"), blocks),
    )(q, k, v, mask, res, wo, bo.reshape(1, D))


def ln_ffn_residual(x2d, gamma, beta, w1, b1, w2, b2):
    n, d = x2d.shape
    dff = w1.shape[1]
    tn = _row_tile(n)
    row = lambda i: (i, 0)
    w1 = w1.astype(jnp.bfloat16)
    w2 = w2.astype(jnp.bfloat16)
    blocks = [((tn, d), jnp.float32, 2), ((d, dff), jnp.bfloat16, 1),
              ((1, dff), jnp.float32, 1), ((dff, d), jnp.bfloat16, 1),
              ((1, d), jnp.float32, 1), ((tn, dff), jnp.float32, 1),
              ((tn, d), jnp.float32, 2)]
    return pl.pallas_call(
        _ln_ffn_residual_kernel,
        out_shape=jax.ShapeDtypeStruct((n, d), x2d.dtype),
        grid=(n // tn,),
        in_specs=[pl.BlockSpec((tn, d), row),
                  _const1((1, d)),
                  _const1((1, d)),
                  _const1((d, dff)),
                  _const1((1, dff)),
                  _const1((dff, d)),
                  _const1((1, d))],
        out_specs=pl.BlockSpec((tn, d), row),
        compiler_params=_compiler_params(("parallel",), blocks),
    )(x2d, gamma.reshape(1, d), beta.reshape(1, d),
      w1, b1.reshape(1, dff), w2, b2.reshape(1, d))


# ----------------------------- DecoderLayer -------------------------------- #

def decoder_layer(params, x, memory, src_mask, tgt_mask, num_heads):
    B, T, D = x.shape
    S = memory.shape[1]
    scale = 1.0 / math.sqrt(D // num_heads)

    x2d = x.reshape(B * T, D)
    mem2d = memory.reshape(B * S, D)

    # sublayer[0]: x + self_attn(norm(x), norm(x), norm(x), tgt_mask)
    pa = params["self_attn"]
    q, k, v = ln_qkv_proj(x2d, params["ln0_g"], params["ln0_b"],
                          pa["w_qkv"], pa["b_qkv"])
    x3d = attention_wo_residual(q.reshape(B, T, D), k.reshape(B, T, D),
                                v.reshape(B, T, D), tgt_mask,
                                x2d.reshape(B, T, D), pa["wo"], pa["bo"],
                                num_heads, scale)
    x2d = x3d.reshape(B * T, D)

    # sublayer[1]: x + src_attn(norm(x), memory, memory, src_mask)
    pa = params["src_attn"]
    qq = ln_linear(x2d, params["ln1_g"], params["ln1_b"], pa["wq"], pa["bq"])
    kk, vv = kv_proj(mem2d, pa["w_kv"], pa["b_kv"])
    x3d = attention_wo_residual(qq.reshape(B, T, D), kk.reshape(B, S, D),
                                vv.reshape(B, S, D), src_mask,
                                x2d.reshape(B, T, D), pa["wo"], pa["bo"],
                                num_heads, scale)
    x2d = x3d.reshape(B * T, D)

    # sublayer[2]: x + feed_forward(norm(x))   (LN + FFN + residual, one kernel)
    pf = params["ffn"]
    x2d = ln_ffn_residual(x2d, params["ln2_g"], params["ln2_b"],
                          pf["w1"], pf["b1"], pf["w2"], pf["b2"])
    return x2d.reshape(B, T, D)


# ------------------------------- init glue --------------------------------- #

def init_params(key, d_model, d_ff):
    # Matmul weights are stored in bf16 (the kernels feed the MXU bf16 and
    # accumulate in f32); biases and LayerNorm params stay f32.
    def mk(k, shp):
        return (0.02 * jax.random.normal(k, shp, jnp.float32)).astype(jnp.bfloat16)

    def self_attn_params(k):
        ks = jax.random.split(k, 4)
        wq, wk, wv = mk(ks[0], (d_model, d_model)), mk(ks[1], (d_model, d_model)), \
                     mk(ks[2], (d_model, d_model))
        return {
            "w_qkv": jnp.concatenate([wq, wk, wv], axis=1),       # [D, 3D] bf16
            "b_qkv": jnp.zeros((3 * d_model,), jnp.float32),
            "wo": mk(ks[3], (d_model, d_model)),
            "bo": jnp.zeros((d_model,), jnp.float32),
        }

    def src_attn_params(k):
        ks = jax.random.split(k, 4)
        wk, wv = mk(ks[1], (d_model, d_model)), mk(ks[2], (d_model, d_model))
        return {
            "wq": mk(ks[0], (d_model, d_model)),
            "bq": jnp.zeros((d_model,), jnp.float32),
            "w_kv": jnp.concatenate([wk, wv], axis=1),             # [D, 2D] bf16
            "b_kv": jnp.zeros((2 * d_model,), jnp.float32),
            "wo": mk(ks[3], (d_model, d_model)),
            "bo": jnp.zeros((d_model,), jnp.float32),
        }

    k_self, k_src, k_ff1, k_ff2 = jax.random.split(key, 4)
    return {
        "self_attn": self_attn_params(k_self),
        "src_attn": src_attn_params(k_src),
        "ffn": {
            "w1": mk(k_ff1, (d_model, d_ff)),
            "b1": jnp.zeros((d_ff,), jnp.float32),
            "w2": mk(k_ff2, (d_ff, d_model)),
            "b2": jnp.zeros((d_model,), jnp.float32),
        },
        "ln0_g": jnp.ones((d_model,), jnp.float32), "ln0_b": jnp.zeros((d_model,), jnp.float32),
        "ln1_g": jnp.ones((d_model,), jnp.float32), "ln1_b": jnp.zeros((d_model,), jnp.float32),
        "ln2_g": jnp.ones((d_model,), jnp.float32), "ln2_b": jnp.zeros((d_model,), jnp.float32),
    }


if __name__ == "__main__":
    B, T, S, D, H, DFF = 2, 8, 8, 32, 4, 64

    key = jax.random.PRNGKey(0)
    kx, km, kp = jax.random.split(key, 3)

    x = jax.random.normal(kx, (B, T, D), jnp.float32)        # decoder input
    memory = jax.random.normal(km, (B, S, D), jnp.float32)   # encoder memory
    params = init_params(kp, D, DFF)

    # tgt_mask: causal (1, T, T); src_mask: all-visible (B, 1, S).
    # Kept in their compact broadcastable shapes (int32) -- never blown up to
    # a per-(batch, head) f32 tensor.
    tgt_mask = jnp.tril(jnp.ones((T, T), jnp.int32))[None, :, :]
    src_mask = jnp.ones((B, 1, S), jnp.int32)

    fwd = jax.jit(functools.partial(decoder_layer, num_heads=H))
    out = fwd(params, x, memory, src_mask, tgt_mask)
    out = jax.block_until_ready(out)

    assert out.shape == (B, T, D) and bool(jnp.all(jnp.isfinite(out)))
    print("KERNEL_OK")
</pallas_src>

<mosaic_0001>
module attributes {stable_mosaic.version = 11 : i64} {
  func.func @_ln_qkv_kernel(%arg0: i32, %arg1: memref<16x32xf32, #tpu.memory_space<vmem>>, %arg2: memref<1x32xf32, #tpu.memory_space<vmem>>, %arg3: memref<1x32xf32, #tpu.memory_space<vmem>>, %arg4: memref<32x96xbf16, #tpu.memory_space<vmem>>, %arg5: memref<1x96xf32, #tpu.memory_space<vmem>>, %arg6: memref<16x32xbf16, #tpu.memory_space<vmem>>, %arg7: memref<16x32xbf16, #tpu.memory_space<vmem>>, %arg8: memref<16x32xbf16, #tpu.memory_space<vmem>>) attributes {dimension_semantics = [#tpu.dimension_semantics<parallel>], iteration_bounds = array<i64: 1>, scalar_prefetch = 0 : i64, scratch_operands = 0 : i64, tpu.core_type = #tpu.core_type<tc>, window_params = [{transform_indices = @transform_0, window_bounds = array<i64: 16, 32>}, {pipeline_mode = #tpu.pipeline_mode<synchronous>, transform_indices = @transform_1, window_bounds = array<i64: 1, 32>}, {pipeline_mode = #tpu.pipeline_mode<synchronous>, transform_indices = @transform_2, window_bounds = array<i64: 1, 32>}, {pipeline_mode = #tpu.pipeline_mode<synchronous>, transform_indices = @transform_3, window_bounds = array<i64: 32, 96>}, {pipeline_mode = #tpu.pipeline_mode<synchronous>, transform_indices = @transform_4, window_bounds = array<i64: 1, 96>}, {transform_indices = @transform_5, window_bounds = array<i64: 16, 32>}, {transform_indices = @transform_6, window_bounds = array<i64: 16, 32>}, {transform_indices = @transform_7, window_bounds = array<i64: 16, 32>}]} {
    %c0 = arith.constant 0 : index
    %c0_0 = arith.constant 0 : index
    %0 = vector.load %arg1[%c0, %c0_0] : memref<16x32xf32, #tpu.memory_space<vmem>>, vector<16x32xf32>
    %c0_1 = arith.constant 0 : index
    %c0_2 = arith.constant 0 : index
    %1 = vector.load %arg2[%c0_1, %c0_2] : memref<1x32xf32, #tpu.memory_space<vmem>>, vector<1x32xf32>
    %c0_3 = arith.constant 0 : index
    %c0_4 = arith.constant 0 : index
    %2 = vector.load %arg3[%c0_3, %c0_4] : memref<1x32xf32, #tpu.memory_space<vmem>>, vector<1x32xf32>
    %cst = arith.constant dense<0.000000e+00> : vector<16xf32>
    %3 = vector.multi_reduction <add>, %0, %cst [1] : vector<16x32xf32> to vector<16xf32>
    %4 = vector.shape_cast %3 : vector<16xf32> to vector<16x1xf32>
    %cst_5 = arith.constant 3.200000e+01 : f32
    %5 = vector.broadcast %cst_5 : f32 to vector<16x1xf32>
    %6 = arith.divf %4, %5 : vector<16x1xf32>
    %7 = vector.broadcast %6 : vector<16x1xf32> to vector<16x32xf32>
    %8 = arith.subf %0, %7 : vector<16x32xf32>
    %9 = arith.mulf %8, %8 : vector<16x32xf32>
    %cst_6 = arith.constant dense<0.000000e+00> : vector<16xf32>
    %10 = vector.multi_reduction <add>, %9, %cst_6 [1] : vector<16x32xf32> to vector<16xf32>
    %11 = vector.shape_cast %10 : vector<16xf32> to vector<16x1xf32>
    %cst_7 = arith.constant 3.100000e+01 : f32
    %12 = vector.broadcast %cst_7 : f32 to vector<16x1xf32>
    %13 = arith.divf %11, %12 : vector<16x1xf32>
    %14 = math.sqrt %13 : vector<16x1xf32>
    %cst_8 = arith.constant 9.99999997E-7 : f32
    %15 = vector.broadcast %cst_8 : f32 to vector<16x1xf32>
    %16 = arith.addf %14, %15 : vector<16x1xf32>
    %17 = tpu.reciprocal %16 {approx = true} : vector<16x1xf32> -> vector<16x1xf32>
    %18 = vector.broadcast %1 : vector<1x32xf32> to vector<16x32xf32>
    %19 = arith.mulf %18, %8 : vector<16x32xf32>
    %20 = vector.broadcast %17 : vector<16x1xf32> to vector<16x32xf32>
    %21 = arith.mulf %19, %20 : vector<16x32xf32>
    %22 = vector.broadcast %2 : vector<1x32xf32> to vector<16x32xf32>
    %23 = arith.addf %21, %22 : vector<16x32xf32>
    %24 = arith.truncf %23 : vector<16x32xf32> to vector<16x32xbf16>
    %c0_9 = arith.constant 0 : index
    %c0_10 = arith.constant 0 : index
    %25 = vector.load %arg4[%c0_9, %c0_10] : memref<32x96xbf16, #tpu.memory_space<vmem>>, vector<32x96xbf16>
    %cst_11 = arith.constant dense<0.000000e+00> : vector<16x96xf32>
    %26 = tpu.matmul %24, %25, %cst_11 {dimension_numbers = #tpu.dot_dimension_numbers<[1], [0], [0], [1], [0, 0, 1, 1], [], []>} : vector<16x32xbf16>, vector<32x96xbf16>, vector<16x96xf32> -> vector<16x96xf32>
    %c0_12 = arith.constant 0 : index
    %c0_13 = arith.constant 0 : index
    %27 = vector.load %arg5[%c0_12, %c0_13] : memref<1x96xf32, #tpu.memory_space<vmem>>, vector<1x96xf32>
    %28 = vector.broadcast %27 : vector<1x96xf32> to vector<16x96xf32>
    %29 = arith.addf %26, %28 : vector<16x96xf32>
    %30 = vector.extract_strided_slice %29 {offsets = [0, 0], sizes = [16, 32], strides = [1, 1]} : vector<16x96xf32> to vector<16x32xf32>
    %31 = arith.truncf %30 : vector<16x32xf32> to vector<16x32xbf16>
    %c0_14 = arith.constant 0 : index
    %c0_15 = arith.constant 0 : index
    %32 = vector.load %arg6[%c0_14, %c0_15] : memref<16x32xbf16, #tpu.memory_space<vmem>>, vector<16x32xbf16>
    tpu.vector_store %arg6[%c0_14, %c0_15], %31 {strides = array<i32>} : memref<16x32xbf16, #tpu.memory_space<vmem>>, vector<16x32xbf16>,
    %33 = vector.extract_strided_slice %29 {offsets = [0, 32], sizes = [16, 32], strides = [1, 1]} : vector<16x96xf32> to vector<16x32xf32>
    %34 = arith.truncf %33 : vector<16x32xf32> to vector<16x32xbf16>
    %c0_16 = arith.constant 0 : index
    %c0_17 = arith.constant 0 : index
    %35 = vector.load %arg7[%c0_16, %c0_17] : memref<16x32xbf16, #tpu.memory_space<vmem>>, vector<16x32xbf16>
    tpu.vector_store %arg7[%c0_16, %c0_17], %34 {strides = array<i32>} : memref<16x32xbf16, #tpu.memory_space<vmem>>, vector<16x32xbf16>,
    %36 = vector.extract_strided_slice %29 {offsets = [0, 64], sizes = [16, 32], strides = [1, 1]} : vector<16x96xf32> to vector<16x32xf32>
    %37 = arith.truncf %36 : vector<16x32xf32> to vector<16x32xbf16>
    %c0_18 = arith.constant 0 : index
    %c0_19 = arith.constant 0 : index
    %38 = vector.load %arg8[%c0_18, %c0_19] : memref<16x32xbf16, #tpu.memory_space<vmem>>, vector<16x32xbf16>
    tpu.vector_store %arg8[%c0_18, %c0_19], %37 {strides = array<i32>} : memref<16x32xbf16, #tpu.memory_space<vmem>>, vector<16x32xbf16>,
    return
  }
  func.func @transform_0(%arg0: i32) -> (i32, i32) {
    %c0_i32 = arith.constant 0 : i32
    %c0_i32_0 = arith.constant 0 : i32
    return %arg0, %c0_i32 : i32, i32
  }
  func.func @transform_1(%arg0: i32) -> (i32, i32) {
    %c0_i32 = arith.constant 0 : i32
    %c0_i32_0 = arith.constant 0 : i32
    %c0_i32_1 = arith.constant 0 : i32
    return %c0_i32, %c0_i32_0 : i32, i32
  }
  func.func @transform_2(%arg0: i32) -> (i32, i32) {
    %c0_i32 = arith.constant 0 : i32
    %c0_i32_0 = arith.constant 0 : i32
    %c0_i32_1 = arith.constant 0 : i32
    return %c0_i32, %c0_i32_0 : i32, i32
  }
  func.func @transform_3(%arg0: i32) -> (i32, i32) {
    %c0_i32 = arith.constant 0 : i32
    %c0_i32_0 = arith.constant 0 : i32
    %c0_i32_1 = arith.constant 0 : i32
    return %c0_i32, %c0_i32_0 : i32, i32
  }
  func.func @transform_4(%arg0: i32) -> (i32, i32) {
    %c0_i32 = arith.constant 0 : i32
    %c0_i32_0 = arith.constant 0 : i32
    %c0_i32_1 = arith.constant 0 : i32
    return %c0_i32, %c0_i32_0 : i32, i32
  }
  func.func @transform_5(%arg0: i32) -> (i32, i32) {
    %c0_i32 = arith.constant 0 : i32
    %c0_i32_0 = arith.constant 0 : i32
    return %arg0, %c0_i32 : i32, i32
  }
  func.func @transform_6(%arg0: i32) -> (i32, i32) {
    %c0_i32 = arith.constant 0 : i32
    %c0_i32_0 = arith.constant 0 : i32
    return %arg0, %c0_i32 : i32, i32
  }
  func.func @transform_7(%arg0: i32) -> (i32, i32) {
    %c0_i32 = arith.constant 0 : i32
    %c0_i32_0 = arith.constant 0 : i32
    return %arg0, %c0_i32 : i32, i32
  }
}

module attributes {stable_mosaic.version = 11 : i64} {
  func.func @_attn_wo_res_kernel(%arg0: i32, %arg1: i32, %arg2: memref<1x8x32xbf16, #tpu.memory_space<vmem>>, %arg3: memref<1x8x32xbf16, #tpu.memory_space<vmem>>, %arg4: memref<1x8x32xbf16, #tpu.memory_space<vmem>>, %arg5: memref<1x8x8xi32, #tpu.memory_space<vmem>>, %arg6: memref<1x8x32xf32, #tpu.memory_space<vmem>>, %arg7: memref<32x32xbf16, #tpu.memory_space<vmem>>, %arg8: memref<1x32xf32, #tpu.memory_space<vmem>>, %arg9: memref<1x8x32xf32, #tpu.memory_space<vmem>>) attributes {dimension_semantics = [#tpu.dimension_semantics<parallel>, #tpu.dimension_semantics<parallel>], iteration_bounds = array<i64: 2, 1>, scalar_prefetch = 0 : i64, scratch_operands = 0 : i64, tpu.core_type = #tpu.core_type<tc>, window_params = [{transform_indices = @transform_0, window_bounds = array<i64: 1, 8, 32>}, {transform_indices = @transform_1, window_bounds = array<i64: 1, 8, 32>}, {transform_indices = @transform_2, window_bounds = array<i64: 1, 8, 32>}, {transform_indices = @transform_3, window_bounds = array<i64: 1, 8, 8>}, {transform_indices = @transform_4, window_bounds = array<i64: 1, 8, 32>}, {pipeline_mode = #tpu.pipeline_mode<synchronous>, transform_indices = @transform_5, window_bounds = array<i64: 32, 32>}, {pipeline_mode = #tpu.pipeline_mode<synchronous>, transform_indices = @transform_6, window_bounds = array<i64: 1, 32>}, {transform_indices = @transform_7, window_bounds = array<i64: 1, 8, 32>}]} {
    %c0 = arith.constant 0 : index
    %c0_0 = arith.constant 0 : index
    %c0_1 = arith.constant 0 : index
    %0 = vector.load %arg2[%c0, %c0_0, %c0_1] : memref<1x8x32xbf16, #tpu.memory_space<vmem>>, vector<1x8x32xbf16>
    %1 = vector.shape_cast %0 : vector<1x8x32xbf16> to vector<8x32xbf16>
    %2 = arith.extf %1 : vector<8x32xbf16> to vector<8x32xf32>
    %cst = arith.constant 0.353553385 : f32
    %3 = vector.broadcast %cst : f32 to vector<8x32xf32>
    %4 = arith.mulf %2, %3 : vector<8x32xf32>
    %5 = arith.truncf %4 : vector<8x32xf32> to vector<8x32xbf16>
    %c0_2 = arith.constant 0 : index
    %c0_3 = arith.constant 0 : index
    %c0_4 = arith.constant 0 : index
    %6 = vector.load %arg3[%c0_2, %c0_3, %c0_4] : memref<1x8x32xbf16, #tpu.memory_space<vmem>>, vector<1x8x32xbf16>
    %7 = vector.shape_cast %6 : vector<1x8x32xbf16> to vector<8x32xbf16>
    %c0_5 = arith.constant 0 : index
    %c0_6 = arith.constant 0 : index
    %c0_7 = arith.constant 0 : index
    %8 = vector.load %arg4[%c0_5, %c0_6, %c0_7] : memref<1x8x32xbf16, #tpu.memory_space<vmem>>, vector<1x8x32xbf16>
    %9 = vector.shape_cast %8 : vector<1x8x32xbf16> to vector<8x32xbf16>
    %c0_8 = arith.constant 0 : index
    %c0_9 = arith.constant 0 : index
    %10 = vector.load %arg7[%c0_8, %c0_9] : memref<32x32xbf16, #tpu.memory_space<vmem>>, vector<32x32xbf16>
    %c0_10 = arith.constant 0 : index
    %c0_11 = arith.constant 0 : index
    %c0_12 = arith.constant 0 : index
    %11 = vector.load %arg5[%c0_10, %c0_11, %c0_12] : memref<1x8x8xi32, #tpu.memory_space<vmem>>, vector<1x8x8xi32>
    %12 = vector.shape_cast %11 : vector<1x8x8xi32> to vector<8x8xi32>
    %c0_i32 = arith.constant 0 : i32
    %13 = vector.broadcast %c0_i32 : i32 to vector<8x8xi32>
    %14 = arith.cmpi eq, %12, %13 : vector<8x8xi32>
    %cst_13 = arith.constant -1.000000e+09 : f32
    %cst_14 = arith.constant 0.000000e+00 : f32
    %15 = vector.broadcast %cst_13 : f32 to vector<8x8xf32>
    %16 = vector.broadcast %cst_14 : f32 to vector<8x8xf32>
    %17 = arith.select %14, %15, %16 : vector<8x8xi1>, vector<8x8xf32>
    %cst_15 = arith.constant 0.000000e+00 : f32
    %18 = vector.broadcast %cst_15 : f32 to vector<8x32xf32>
    %19 = vector.extract_strided_slice %5 {offsets = [0, 0], sizes = [8, 8], strides = [1, 1]} : vector<8x32xbf16> to vector<8x8xbf16>
    %20 = vector.extract_strided_slice %7 {offsets = [0, 0], sizes = [8, 8], strides = [1, 1]} : vector<8x32xbf16> to vector<8x8xbf16>
    %cst_16 = arith.constant dense<0.000000e+00> : vector<8x8xf32>
    %21 = tpu.matmul %19, %20, %cst_16 {dimension_numbers = #tpu.dot_dimension_numbers<[1], [1], [0], [0], [0, 0, 1, 0], [], []>} : vector<8x8xbf16>, vector<8x8xbf16>, vector<8x8xf32> -> vector<8x8xf32>
    %22 = arith.addf %21, %17 : vector<8x8xf32>
    %cst_17 = arith.constant dense<0xFF800000> : vector<8xf32>
    %23 = vector.multi_reduction <maximumf>, %22, %cst_17 [1] : vector<8x8xf32> to vector<8xf32>
    %24 = vector.shape_cast %23 : vector<8xf32> to vector<8x1xf32>
    %25 = vector.broadcast %24 : vector<8x1xf32> to vector<8x8xf32>
    %26 = arith.subf %22, %25 : vector<8x8xf32>
    %27 = math.exp %26 : vector<8x8xf32>
    %cst_18 = arith.constant dense<0.000000e+00> : vector<8xf32>
    %28 = vector.multi_reduction <add>, %27, %cst_18 [1] : vector<8x8xf32> to vector<8xf32>
    %29 = vector.shape_cast %28 : vector<8xf32> to vector<8x1xf32>
    %30 = tpu.reciprocal %29 {approx = true} : vector<8x1xf32> -> vector<8x1xf32>
    %31 = vector.broadcast %30 : vector<8x1xf32> to vector<8x8xf32>
    %32 = arith.mulf %27, %31 : vector<8x8xf32>
    %33 = arith.truncf %32 : vector<8x8xf32> to vector<8x8xbf16>
    %34 = vector.extract_strided_slice %9 {offsets = [0, 0], sizes = [8, 8], strides = [1, 1]} : vector<8x32xbf16> to vector<8x8xbf16>
    %cst_19 = arith.constant dense<0.000000e+00> : vector<8x8xf32>
    %35 = tpu.matmul %33, %34, %cst_19 {dimension_numbers = #tpu.dot_dimension_numbers<[1], [0], [0], [1], [0, 0, 1, 1], [], []>} : vector<8x8xbf16>, vector<8x8xbf16>, vector<8x8xf32> -> vector<8x8xf32>
    %36 = arith.truncf %35 : vector<8x8xf32> to vector<8x8xbf16>
    %37 = vector.extract_strided_slice %10 {offsets = [0, 0], sizes = [8, 32], strides = [1, 1]} : vector<32x32xbf16> to vector<8x32xbf16>
    %cst_20 = arith.constant dense<0.000000e+00> : vector<8x32xf32>
    %38 = tpu.matmul %36, %37, %cst_20 {dimension_numbers = #tpu.dot_dimension_numbers<[1], [0], [0], [1], [0, 0, 1, 1], [], []>} : vector<8x8xbf16>, vector<8x32xbf16>, vector<8x32xf32> -> vector<8x32xf32>
    %39 = arith.addf %18, %38 : vector<8x32xf32>
    %40 = vector.extract_strided_slice %5 {offsets = [0, 8], sizes = [8, 8], strides = [1, 1]} : vector<8x32xbf16> to vector<8x8xbf16>
    %41 = vector.extract_strided_slice %7 {offsets = [0, 8], sizes = [8, 8], strides = [1, 1]} : vector<8x32xbf16> to vector<8x8xbf16>
    %cst_21 = arith.constant dense<0.000000e+00> : vector<8x8xf32>
    %42 = tpu.matmul %40, %41, %cst_21 {dimension_numbers = #tpu.dot_dimension_numbers<[1], [1], [0], [0], [0, 0, 1, 0], [], []>} : vector<8x8xbf16>, vector<8x8xbf16>, vector<8x8xf32> -> vector<8x8xf32>
    %43 = arith.addf %42, %17 : vector<8x8xf32>
    %cst_22 = arith.constant dense<0xFF800000> : vector<8xf32>
    %44 = vector.multi_reduction <maximumf>, %43, %cst_22 [1] : vector<8x8xf32> to vector<8xf32>
    %45 = vector.shape_cast %44 : vector<8xf32> to vector<8x1xf32>
    %46 = vector.broadcast %45 : vector<8x1xf32> to vector<8x8xf32>
    %47 = arith.subf %43, %46 : vector<8x8xf32>
    %48 = math.exp %47 : vector<8x8xf32>
    %cst_23 = arith.constant dense<0.000000e+00> : vector<8xf32>
    %49 = vector.multi_reduction <add>, %48, %cst_23 [1] : vector<8x8xf32> to vector<8xf32>
    %50 = vector.shape_cast %49 : vector<8xf32> to vector<8x1xf32>
    %51 = tpu.reciprocal %50 {approx = true} : vector<8x1xf32> -> vector<8x1xf32>
    %52 = vector.broadcast %51 : vector<8x1xf32> to vector<8x8xf32>
    %53 = arith.mulf %48, %52 : vector<8x8xf32>
    %54 = arith.truncf %53 : vector<8x8xf32> to vector<8x8xbf16>
    %55 = vector.extract_strided_slice %9 {offsets = [0, 8], sizes = [8, 8], strides = [1, 1]} : vector<8x32xbf16> to vector<8x8xbf16>
    %cst_24 = arith.constant dense<0.000000e+00> : vector<8x8xf32>
    %56 = tpu.matmul %54, %55, %cst_24 {dimension_numbers = #tpu.dot_dimension_numbers<[1], [0], [0], [1], [0, 0, 1, 1], [], []>} : vector<8x8xbf16>, vector<8x8xbf16>, vector<8x8xf32> -> vector<8x8xf32>
    %57 = arith.truncf %56 : vector<8x8xf32> to vector<8x8xbf16>
    %58 = vector.extract_strided_slice %10 {offsets = [8, 0], sizes = [8, 32], strides = [1, 1]} : vector<32x32xbf16> to vector<8x32xbf16>
    %cst_25 = arith.constant dense<0.000000e+00> : vector<8x32xf32>
    %59 = tpu.matmul %57, %58, %cst_25 {dimension_numbers = #tpu.dot_dimension_numbers<[1], [0], [0], [1], [0, 0, 1, 1], [], []>} : vector<8x8xbf16>, vector<8x32xbf16>, vector<8x32xf32> -> vector<8x32xf32>
    %60 = arith.addf %39, %59 : vector<8x32xf32>
    %61 = vector.extract_strided_slice %5 {offsets = [0, 16], sizes = [8, 8], strides = [1, 1]} : vector<8x32xbf16> to vector<8x8xbf16>
    %62 = vector.extract_strided_slice %7 {offsets = [0, 16], sizes = [8, 8], strides = [1, 1]} : vector<8x32xbf16> to vector<8x8xbf16>
    %cst_26 = arith.constant dense<0.000000e+00> : vector<8x8xf32>
    %63 = tpu.matmul %61, %62, %cst_26 {dimension_numbers = #tpu.dot_dimension_numbers<[1], [1], [0], [0], [0, 0, 1, 0], [], []>} : vector<8x8xbf16>, vector<8x8xbf16>, vector<8x8xf32> -> vector<8x8xf32>
    %64 = arith.addf %63, %17 : vector<8x8xf32>
    %cst_27 = arith.constant dense<0xFF800000> : vector<8xf32>
    %65 = vector.multi_reduction <maximumf>, %64, %cst_27 [1] : vector<8x8xf32> to vector<8xf32>
    %66 = vector.shape_cast %65 : vector<8xf32> to vector<8x1xf32>
    %67 = vector.broadcast %66 : vector<8x1xf32> to vector<8x8xf32>
    %68 = arith.subf %64, %67 : vector<8x8xf32>
    %69 = math.exp %68 : vector<8x8xf32>
    %cst_28 = arith.constant dense<0.000000e+00> : vector<8xf32>
    %70 = vector.multi_reduction <add>, %69, %cst_28 [1] : vector<8x8xf32> to vector<8xf32>
    %71 = vector.shape_cast %70 : vector<8xf32> to vector<8x1xf32>
    %72 = tpu.reciprocal %71 {approx = true} : vector<8x1xf32> -> vector<8x1xf32>
    %73 = vector.broadcast %72 : vector<8x1xf32> to vector<8x8xf32>
    %74 = arith.mulf %69, %73 : vector<8x8xf32>
    %75 = arith.truncf %74 : vector<8x8xf32> to vector<8x8xbf16>
    %76 = vector.extract_strided_slice %9 {offsets = [0, 16], sizes = [8, 8], strides = [1, 1]} : vector<8x32xbf16> to vector<8x8xbf16>
    %cst_29 = arith.constant dense<0.000000e+00> : vector<8x8xf32>
    %77 = tpu.matmul %75, %76, %cst_29 {dimension_numbers = #tpu.dot_dimension_numbers<[1], [0], [0], [1], [0, 0, 1, 1], [], []>} : vector<8x8xbf16>, vector<8x8xbf16>, vector<8x8xf32> -> vector<8x8xf32>
    %78 = arith.truncf %77 : vector<8x8xf32> to vector<8x8xbf16>
    %79 = vector.extract_strided_slice %10 {offsets = [16, 0], sizes = [8, 32], strides = [1, 1]} : vector<32x32xbf16> to vector<8x32xbf16>
    %cst_30 = arith.constant dense<0.000000e+00> : vector<8x32xf32>
    %80 = tpu.matmul %78, %79, %cst_30 {dimension_numbers = #tpu.dot_dimension_numbers<[1], [0], [0], [1], [0, 0, 1, 1], [], []>} : vector<8x8xbf16>, vector<8x32xbf16>, vector<8x32xf32> -> vector<8x32xf32>
    %81 = arith.addf %60, %80 : vector<8x32xf32>
    %82 = vector.extract_strided_slice %5 {offsets = [0, 24], sizes = [8, 8], strides = [1, 1]} : vector<8x32xbf16> to vector<8x8xbf16>
    %83 = vector.extract_strided_slice %7 {offsets = [0, 24], sizes = [8, 8], strides = [1, 1]} : vector<8x32xbf16> to vector<8x8xbf16>
    %cst_31 = arith.constant dense<0.000000e+00> : vector<8x8xf32>
    %84 = tpu.matmul %82, %83, %cst_31 {dimension_numbers = #tpu.dot_dimension_numbers<[1], [1], [0], [0], [0, 0, 1, 0], [], []>} : vector<8x8xbf16>, vector<8x8xbf16>, vector<8x8xf32> -> vector<8x8xf32>
    %85 = arith.addf %84, %17 : vector<8x8xf32>
    %cst_32 = arith.constant dense<0xFF800000> : vector<8xf32>
    %86 = vector.multi_reduction <maximumf>, %85, %cst_32 [1] : vector<8x8xf32> to vector<8xf32>
    %87 = vector.shape_cast %86 : vector<8xf32> to vector<8x1xf32>
    %88 = vector.broadcast %87 : vector<8x1xf32> to vector<8x8xf32>
    %89 = arith.subf %85, %88 : vector<8x8xf32>
    %90 = math.exp %89 : vector<8x8xf32>
    %cst_33 = arith.constant dense<0.000000e+00> : vector<8xf32>
    %91 = vector.multi_reduction <add>, %90, %cst_33 [1] : vector<8x8xf32> to vector<8xf32>
    %92 = vector.shape_cast %91 : vector<8xf32> to vector<8x1xf32>
    %93 = tpu.reciprocal %92 {approx = true} : vector<8x1xf32> -> vector<8x1xf32>
    %94 = vector.broadcast %93 : vector<8x1xf32> to vector<8x8xf32>
    %95 = arith.mulf %90, %94 : vector<8x8xf32>
    %96 = arith.truncf %95 : vector<8x8xf32> to vector<8x8xbf16>
    %97 = vector.extract_strided_slice %9 {offsets = [0, 24], sizes = [8, 8], strides = [1, 1]} : vector<8x32xbf16> to vector<8x8xbf16>
    %cst_34 = arith.constant dense<0.000000e+00> : vector<8x8xf32>
    %98 = tpu.matmul %96, %97, %cst_34 {dimension_numbers = #tpu.dot_dimension_numbers<[1], [0], [0], [1], [0, 0, 1, 1], [], []>} : vector<8x8xbf16>, vector<8x8xbf16>, vector<8x8xf32> -> vector<8x8xf32>
    %99 = arith.truncf %98 : vector<8x8xf32> to vector<8x8xbf16>
    %100 = vector.extract_strided_slice %10 {offsets = [24, 0], sizes = [8, 32], strides = [1, 1]} : vector<32x32xbf16> to vector<8x32xbf16>
    %cst_35 = arith.constant dense<0.000000e+00> : vector<8x32xf32>
    %101 = tpu.matmul %99, %100, %cst_35 {dimension_numbers = #tpu.dot_dimension_numbers<[1], [0], [0], [1], [0, 0, 1, 1], [], []>} : vector<8x8xbf16>, vector<8x32xbf16>, vector<8x32xf32> -> vector<8x32xf32>
    %102 = arith.addf %81, %101 : vector<8x32xf32>
    %c0_36 = arith.constant 0 : index
    %c0_37 = arith.constant 0 : index
    %c0_38 = arith.constant 0 : index
    %103 = vector.load %arg6[%c0_36, %c0_37, %c0_38] : memref<1x8x32xf32, #tpu.memory_space<vmem>>, vector<1x8x32xf32>
    %104 = vector.shape_cast %103 : vector<1x8x32xf32> to vector<8x32xf32>
    %105 = arith.addf %104, %102 : vector<8x32xf32>
    %c0_39 = arith.constant 0 : index
    %c0_40 = arith.constant 0 : index
    %106 = vector.load %arg8[%c0_39, %c0_40] : memref<1x32xf32, #tpu.memory_space<vmem>>, vector<1x32xf32>
    %107 = vector.broadcast %106 : vector<1x32xf32> to vector<8x32xf32>
    %108 = arith.addf %105, %107 : vector<8x32xf32>
    %c0_41 = arith.constant 0 : index
    %c0_42 = arith.constant 0 : index
    %c0_43 = arith.constant 0 : index
    %109 = vector.load %arg9[%c0_41, %c0_42, %c0_43] : memref<1x8x32xf32, #tpu.memory_space<vmem>>, vector<1x8x32xf32>
    %110 = vector.shape_cast %109 : vector<1x8x32xf32> to vector<8x32xf32>
    %111 = vector.shape_cast %108 : vector<8x32xf32> to vector<1x8x32xf32>
    tpu.vector_store %arg9[%c0_41, %c0_42, %c0_43], %111 {strides = array<i32>} : memref<1x8x32xf32, #tpu.memory_space<vmem>>, vector<1x8x32xf32>,
    return
  }
  func.func @transform_0(%arg0: i32, %arg1: i32) -> (i32, i32, i32) {
    %c0_i32 = arith.constant 0 : i32
    %c0_i32_0 = arith.constant 0 : i32
    return %arg0, %arg1, %c0_i32 : i32, i32, i32
  }
  func.func @transform_1(%arg0: i32, %arg1: i32) -> (i32, i32, i32) {
    %c0_i32 = arith.constant 0 : i32
    %c0_i32_0 = arith.constant 0 : i32
    %c0_i32_1 = arith.constant 0 : i32
    return %arg0, %c0_i32, %c0_i32_0 : i32, i32, i32
  }
  func.func @transform_2(%arg0: i32, %arg1: i32) -> (i32, i32, i32) {
    %c0_i32 = arith.constant 0 : i32
    %c0_i32_0 = arith.constant 0 : i32
    %c0_i32_1 = arith.constant 0 : i32
    return %arg0, %c0_i32, %c0_i32_0 : i32, i32, i32
  }
  func.func @transform_3(%arg0: i32, %arg1: i32) -> (i32, i32, i32) {
    %c0_i32 = arith.constant 0 : i32
    %c0_i32_0 = arith.constant 0 : i32
    %c0_i32_1 = arith.constant 0 : i32
    return %c0_i32, %arg1, %c0_i32_0 : i32, i32, i32
  }
  func.func @transform_4(%arg0: i32, %arg1: i32) -> (i32, i32, i32) {
    %c0_i32 = arith.constant 0 : i32
    %c0_i32_0 = arith.constant 0 : i32
    return %arg0, %arg1, %c0_i32 : i32, i32, i32
  }
  func.func @transform_5(%arg0: i32, %arg1: i32) -> (i32, i32) {
    %c0_i32 = arith.constant 0 : i32
    %c0_i32_0 = arith.constant 0 : i32
    %c0_i32_1 = arith.constant 0 : i32
    return %c0_i32, %c0_i32_0 : i32, i32
  }
  func.func @transform_6(%arg0: i32, %arg1: i32) -> (i32, i32) {
    %c0_i32 = arith.constant 0 : i32
    %c0_i32_0 = arith.constant 0 : i32
    %c0_i32_1 = arith.constant 0 : i32
    return %c0_i32, %c0_i32_0 : i32, i32
  }
  func.func @transform_7(%arg0: i32, %arg1: i32) -> (i32, i32, i32) {
    %c0_i32 = arith.constant 0 : i32
    %c0_i32_0 = arith.constant 0 : i32
    return %arg0, %arg1, %c0_i32 : i32, i32, i32
  }
}

module attributes {stable_mosaic.version = 11 : i64} {
  func.func @_kv_kernel(%arg0: i32, %arg1: memref<16x32xf32, #tpu.memory_space<vmem>>, %arg2: memref<32x64xbf16, #tpu.memory_space<vmem>>, %arg3: memref<1x64xf32, #tpu.memory_space<vmem>>, %arg4: memref<16x32xbf16, #tpu.memory_space<vmem>>, %arg5: memref<16x32xbf16, #tpu.memory_space<vmem>>) attributes {dimension_semantics = [#tpu.dimension_semantics<parallel>], iteration_bounds = array<i64: 1>, scalar_prefetch = 0 : i64, scratch_operands = 0 : i64, tpu.core_type = #tpu.core_type<tc>, window_params = [{transform_indices = @transform_0, window_bounds = array<i64: 16, 32>}, {pipeline_mode = #tpu.pipeline_mode<synchronous>, transform_indices = @transform_1, window_bounds = array<i64: 32, 64>}, {pipeline_mode = #tpu.pipeline_mode<synchronous>, transform_indices = @transform_2, window_bounds = array<i64: 1, 64>}, {transform_indices = @transform_3, window_bounds = array<i64: 16, 32>}, {transform_indices = @transform_4, window_bounds = array<i64: 16, 32>}]} {
    %c0 = arith.constant 0 : index
    %c0_0 = arith.constant 0 : index
    %0 = vector.load %arg1[%c0, %c0_0] : memref<16x32xf32, #tpu.memory_space<vmem>>, vector<16x32xf32>
    %1 = arith.truncf %0 : vector<16x32xf32> to vector<16x32xbf16>
    %c0_1 = arith.constant 0 : index
    %c0_2 = arith.constant 0 : index
    %2 = vector.load %arg2[%c0_1, %c0_2] : memref<32x64xbf16, #tpu.memory_space<vmem>>, vector<32x64xbf16>
    %cst = arith.constant dense<0.000000e+00> : vector<16x64xf32>
    %3 = tpu.matmul %1, %2, %cst {dimension_numbers = #tpu.dot_dimension_numbers<[1], [0], [0], [1], [0, 0, 1, 1], [], []>} : vector<16x32xbf16>, vector<32x64xbf16>, vector<16x64xf32> -> vector<16x64xf32>
    %c0_3 = arith.constant 0 : index
    %c0_4 = arith.constant 0 : index
    %4 = vector.load %arg3[%c0_3, %c0_4] : memref<1x64xf32, #tpu.memory_space<vmem>>, vector<1x64xf32>
    %5 = vector.broadcast %4 : vector<1x64xf32> to vector<16x64xf32>
    %6 = arith.addf %3, %5 : vector<16x64xf32>
    %7 = vector.extract_strided_slice %6 {offsets = [0, 0], sizes = [16, 32], strides = [1, 1]} : vector<16x64xf32> to vector<16x32xf32>
    %8 = arith.truncf %7 : vector<16x32xf32> to vector<16x32xbf16>
    %c0_5 = arith.constant 0 : index
    %c0_6 = arith.constant 0 : index
    %9 = vector.load %arg4[%c0_5, %c0_6] : memref<16x32xbf16, #tpu.memory_space<vmem>>, vector<16x32xbf16>
    tpu.vector_store %arg4[%c0_5, %c0_6], %8 {strides = array<i32>} : memref<16x32xbf16, #tpu.memory_space<vmem>>, vector<16x32xbf16>,
    %10 = vector.extract_strided_slice %6 {offsets = [0, 32], sizes = [16, 32], strides = [1, 1]} : vector<16x64xf32> to vector<16x32xf32>
    %11 = arith.truncf %10 : vector<16x32xf32> to vector<16x32xbf16>
    %c0_7 = arith.constant 0 : index
    %c0_8 = arith.constant 0 : index
    %12 = vector.load %arg5[%c0_7, %c0_8] : memref<16x32xbf16, #tpu.memory_space<vmem>>, vector<16x32xbf16>
    tpu.vector_store %arg5[%c0_7, %c0_8], %11 {strides = array<i32>} : memref<16x32xbf16, #tpu.memory_space<vmem>>, vector<16x32xbf16>,
    return
  }
  func.func @transform_0(%arg0: i32) -> (i32, i32) {
    %c0_i32 = arith.constant 0 : i32
    %c0_i32_0 = arith.constant 0 : i32
    return %arg0, %c0_i32 : i32, i32
  }
  func.func @transform_1(%arg0: i32) -> (i32, i32) {
    %c0_i32 = arith.constant 0 : i32
    %c0_i32_0 = arith.constant 0 : i32
    %c0_i32_1 = arith.constant 0 : i32
    return %c0_i32, %c0_i32_0 : i32, i32
  }
  func.func @transform_2(%arg0: i32) -> (i32, i32) {
    %c0_i32 = arith.constant 0 : i32
    %c0_i32_0 = arith.constant 0 : i32
    %c0_i32_1 = arith.constant 0 : i32
    return %c0_i32, %c0_i32_0 : i32, i32
  }
  func.func @transform_3(%arg0: i32) -> (i32, i32) {
    %c0_i32 = arith.constant 0 : i32
    %c0_i32_0 = arith.constant 0 : i32
    return %arg0, %c0_i32 : i32, i32
  }
  func.func @transform_4(%arg0: i32) -> (i32, i32) {
    %c0_i32 = arith.constant 0 : i32
    %c0_i32_0 = arith.constant 0 : i32
    return %arg0, %c0_i32 : i32, i32
  }
}

module attributes {stable_mosaic.version = 11 : i64} {
  func.func @_ln_linear_kernel(%arg0: i32, %arg1: memref<16x32xf32, #tpu.memory_space<vmem>>, %arg2: memref<1x32xf32, #tpu.memory_space<vmem>>, %arg3: memref<1x32xf32, #tpu.memory_space<vmem>>, %arg4: memref<32x32xbf16, #tpu.memory_space<vmem>>, %arg5: memref<1x32xf32, #tpu.memory_space<vmem>>, %arg6: memref<16x32xbf16, #tpu.memory_space<vmem>>) attributes {dimension_semantics = [#tpu.dimension_semantics<parallel>], iteration_bounds = array<i64: 1>, scalar_prefetch = 0 : i64, scratch_operands = 0 : i64, tpu.core_type = #tpu.core_type<tc>, window_params = [{transform_indices = @transform_0, window_bounds = array<i64: 16, 32>}, {pipeline_mode = #tpu.pipeline_mode<synchronous>, transform_indices = @transform_1, window_bounds = array<i64: 1, 32>}, {pipeline_mode = #tpu.pipeline_mode<synchronous>, transform_indices = @transform_2, window_bounds = array<i64: 1, 32>}, {pipeline_mode = #tpu.pipeline_mode<synchronous>, transform_indices = @transform_3, window_bounds = array<i64: 32, 32>}, {pipeline_mode = #tpu.pipeline_mode<synchronous>, transform_indices = @transform_4, window_bounds = array<i64: 1, 32>}, {transform_indices = @transform_5, window_bounds = array<i64: 16, 32>}]} {
    %c0 = arith.constant 0 : index
    %c0_0 = arith.constant 0 : index
    %0 = vector.load %arg1[%c0, %c0_0] : memref<16x32xf32, #tpu.memory_space<vmem>>, vector<16x32xf32>
    %c0_1 = arith.constant 0 : index
    %c0_2 = arith.constant 0 : index
    %1 = vector.load %arg2[%c0_1, %c0_2] : memref<1x32xf32, #tpu.memory_space<vmem>>, vector<1x32xf32>
    %c0_3 = arith.constant 0 : index
    %c0_4 = arith.constant 0 : index
    %2 = vector.load %arg3[%c0_3, %c0_4] : memref<1x32xf32, #tpu.memory_space<vmem>>, vector<1x32xf32>
    %cst = arith.constant dense<0.000000e+00> : vector<16xf32>
    %3 = vector.multi_reduction <add>, %0, %cst [1] : vector<16x32xf32> to vector<16xf32>
    %4 = vector.shape_cast %3 : vector<16xf32> to vector<16x1xf32>
    %cst_5 = arith.constant 3.200000e+01 : f32
    %5 = vector.broadcast %cst_5 : f32 to vector<16x1xf32>
    %6 = arith.divf %4, %5 : vector<16x1xf32>
    %7 = vector.broadcast %6 : vector<16x1xf32> to vector<16x32xf32>
    %8 = arith.subf %0, %7 : vector<16x32xf32>
    %9 = arith.mulf %8, %8 : vector<16x32xf32>
    %cst_6 = arith.constant dense<0.000000e+00> : vector<16xf32>
    %10 = vector.multi_reduction <add>, %9, %cst_6 [1] : vector<16x32xf32> to vector<16xf32>
    %11 = vector.shape_cast %10 : vector<16xf32> to vector<16x1xf32>
    %cst_7 = arith.constant 3.100000e+01 : f32
    %12 = vector.broadcast %cst_7 : f32 to vector<16x1xf32>
    %13 = arith.divf %11, %12 : vector<16x1xf32>
    %14 = math.sqrt %13 : vector<16x1xf32>
    %cst_8 = arith.constant 9.99999997E-7 : f32
    %15 = vector.broadcast %cst_8 : f32 to vector<16x1xf32>
    %16 = arith.addf %14, %15 : vector<16x1xf32>
    %17 = tpu.reciprocal %16 {approx = true} : vector<16x1xf32> -> vector<16x1xf32>
    %18 = vector.broadcast %1 : vector<1x32xf32> to vector<16x32xf32>
    %19 = arith.mulf %18, %8 : vector<16x32xf32>
    %20 = vector.broadcast %17 : vector<16x1xf32> to vector<16x32xf32>
    %21 = arith.mulf %19, %20 : vector<16x32xf32>
    %22 = vector.broadcast %2 : vector<1x32xf32> to vector<16x32xf32>
    %23 = arith.addf %21, %22 : vector<16x32xf32>
    %24 = arith.truncf %23 : vector<16x32xf32> to vector<16x32xbf16>
    %c0_9 = arith.constant 0 : index
    %c0_10 = arith.constant 0 : index
    %25 = vector.load %arg4[%c0_9, %c0_10] : memref<32x32xbf16, #tpu.memory_space<vmem>>, vector<32x32xbf16>
    %cst_11 = arith.constant dense<0.000000e+00> : vector<16x32xf32>
    %26 = tpu.matmul %24, %25, %cst_11 {dimension_numbers = #tpu.dot_dimension_numbers<[1], [0], [0], [1], [0, 0, 1, 1], [], []>} : vector<16x32xbf16>, vector<32x32xbf16>, vector<16x32xf32> -> vector<16x32xf32>
    %c0_12 = arith.constant 0 : index
    %c0_13 = arith.constant 0 : index
    %27 = vector.load %arg5[%c0_12, %c0_13] : memref<1x32xf32, #tpu.memory_space<vmem>>, vector<1x32xf32>
    %28 = vector.broadcast %27 : vector<1x32xf32> to vector<16x32xf32>
    %29 = arith.addf %26, %28 : vector<16x32xf32>
    %30 = arith.truncf %29 : vector<16x32xf32> to vector<16x32xbf16>
    %c0_14 = arith.constant 0 : index
    %c0_15 = arith.constant 0 : index
    %31 = vector.load %arg6[%c0_14, %c0_15] : memref<16x32xbf16, #tpu.memory_space<vmem>>, vector<16x32xbf16>
    tpu.vector_store %arg6[%c0_14, %c0_15], %30 {strides = array<i32>} : memref<16x32xbf16, #tpu.memory_space<vmem>>, vector<16x32xbf16>,
    return
  }
  func.func @transform_0(%arg0: i32) -> (i32, i32) {
    %c0_i32 = arith.constant 0 : i32
    %c0_i32_0 = arith.constant 0 : i32
    return %arg0, %c0_i32 : i32, i32
  }
  func.func @transform_1(%arg0: i32) -> (i32, i32) {
    %c0_i32 = arith.constant 0 : i32
    %c0_i32_0 = arith.constant 0 : i32
    %c0_i32_1 = arith.constant 0 : i32
    return %c0_i32, %c0_i32_0 : i32, i32
  }
  func.func @transform_2(%arg0: i32) -> (i32, i32) {
    %c0_i32 = arith.constant 0 : i32
    %c0_i32_0 = arith.constant 0 : i32
    %c0_i32_1 = arith.constant 0 : i32
    return %c0_i32, %c0_i32_0 : i32, i32
  }
  func.func @transform_3(%arg0: i32) -> (i32, i32) {
    %c0_i32 = arith.constant 0 : i32
    %c0_i32_0 = arith.constant 0 : i32
    %c0_i32_1 = arith.constant 0 : i32
    return %c0_i32, %c0_i32_0 : i32, i32
  }
  func.func @transform_4(%arg0: i32) -> (i32, i32) {
    %c0_i32 = arith.constant 0 : i32
    %c0_i32_0 = arith.constant 0 : i32
    %c0_i32_1 = arith.constant 0 : i32
    return %c0_i32, %c0_i32_0 : i32, i32
  }
  func.func @transform_5(%arg0: i32) -> (i32, i32) {
    %c0_i32 = arith.constant 0 : i32
    %c0_i32_0 = arith.constant 0 : i32
    return %arg0, %c0_i32 : i32, i32
  }
}

module attributes {stable_mosaic.version = 11 : i64} {
  func.func @_ln_ffn_residual_kernel(%arg0: i32, %arg1: memref<16x32xf32, #tpu.memory_space<vmem>>, %arg2: memref<1x32xf32, #tpu.memory_space<vmem>>, %arg3: memref<1x32xf32, #tpu.memory_space<vmem>>, %arg4: memref<32x64xbf16, #tpu.memory_space<vmem>>, %arg5: memref<1x64xf32, #tpu.memory_space<vmem>>, %arg6: memref<64x32xbf16, #tpu.memory_space<vmem>>, %arg7: memref<1x32xf32, #tpu.memory_space<vmem>>, %arg8: memref<16x32xf32, #tpu.memory_space<vmem>>) attributes {dimension_semantics = [#tpu.dimension_semantics<parallel>], iteration_bounds = array<i64: 1>, scalar_prefetch = 0 : i64, scratch_operands = 0 : i64, tpu.core_type = #tpu.core_type<tc>, window_params = [{transform_indices = @transform_0, window_bounds = array<i64: 16, 32>}, {pipeline_mode = #tpu.pipeline_mode<synchronous>, transform_indices = @transform_1, window_bounds = array<i64: 1, 32>}, {pipeline_mode = #tpu.pipeline_mode<synchronous>, transform_indices = @transform_2, window_bounds = array<i64: 1, 32>}, {pipeline_mode = #tpu.pipeline_mode<synchronous>, transform_indices = @transform_3, window_bounds = array<i64: 32, 64>}, {pipeline_mode = #tpu.pipeline_mode<synchronous>, transform_indices = @transform_4, window_bounds = array<i64: 1, 64>}, {pipeline_mode = #tpu.pipeline_mode<synchronous>, transform_indices = @transform_5, window_bounds = array<i64: 64, 32>}, {pipeline_mode = #tpu.pipeline_mode<synchronous>, transform_indices = @transform_6, window_bounds = array<i64: 1, 32>}, {transform_indices = @transform_7, window_bounds = array<i64: 16, 32>}]} {
    %c0 = arith.constant 0 : index
    %c0_0 = arith.constant 0 : index
    %0 = vector.load %arg1[%c0, %c0_0] : memref<16x32xf32, #tpu.memory_space<vmem>>, vector<16x32xf32>
    %c0_1 = arith.constant 0 : index
    %c0_2 = arith.constant 0 : index
    %1 = vector.load %arg2[%c0_1, %c0_2] : memref<1x32xf32, #tpu.memory_space<vmem>>, vector<1x32xf32>
    %c0_3 = arith.constant 0 : index
    %c0_4 = arith.constant 0 : index
    %2 = vector.load %arg3[%c0_3, %c0_4] : memref<1x32xf32, #tpu.memory_space<vmem>>, vector<1x32xf32>
    %cst = arith.constant dense<0.000000e+00> : vector<16xf32>
    %3 = vector.multi_reduction <add>, %0, %cst [1] : vector<16x32xf32> to vector<16xf32>
    %4 = vector.shape_cast %3 : vector<16xf32> to vector<16x1xf32>
    %cst_5 = arith.constant 3.200000e+01 : f32
    %5 = vector.broadcast %cst_5 : f32 to vector<16x1xf32>
    %6 = arith.divf %4, %5 : vector<16x1xf32>
    %7 = vector.broadcast %6 : vector<16x1xf32> to vector<16x32xf32>
    %8 = arith.subf %0, %7 : vector<16x32xf32>
    %9 = arith.mulf %8, %8 : vector<16x32xf32>
    %cst_6 = arith.constant dense<0.000000e+00> : vector<16xf32>
    %10 = vector.multi_reduction <add>, %9, %cst_6 [1] : vector<16x32xf32> to vector<16xf32>
    %11 = vector.shape_cast %10 : vector<16xf32> to vector<16x1xf32>
    %cst_7 = arith.constant 3.100000e+01 : f32
    %12 = vector.broadcast %cst_7 : f32 to vector<16x1xf32>
    %13 = arith.divf %11, %12 : vector<16x1xf32>
    %14 = math.sqrt %13 : vector<16x1xf32>
    %cst_8 = arith.constant 9.99999997E-7 : f32
    %15 = vector.broadcast %cst_8 : f32 to vector<16x1xf32>
    %16 = arith.addf %14, %15 : vector<16x1xf32>
    %17 = tpu.reciprocal %16 {approx = true} : vector<16x1xf32> -> vector<16x1xf32>
    %18 = vector.broadcast %1 : vector<1x32xf32> to vector<16x32xf32>
    %19 = arith.mulf %18, %8 : vector<16x32xf32>
    %20 = vector.broadcast %17 : vector<16x1xf32> to vector<16x32xf32>
    %21 = arith.mulf %19, %20 : vector<16x32xf32>
    %22 = vector.broadcast %2 : vector<1x32xf32> to vector<16x32xf32>
    %23 = arith.addf %21, %22 : vector<16x32xf32>
    %24 = arith.truncf %23 : vector<16x32xf32> to vector<16x32xbf16>
    %c0_9 = arith.constant 0 : index
    %c0_10 = arith.constant 0 : index
    %25 = vector.load %arg4[%c0_9, %c0_10] : memref<32x64xbf16, #tpu.memory_space<vmem>>, vector<32x64xbf16>
    %cst_11 = arith.constant dense<0.000000e+00> : vector<16x64xf32>
    %26 = tpu.matmul %24, %25, %cst_11 {dimension_numbers = #tpu.dot_dimension_numbers<[1], [0], [0], [1], [0, 0, 1, 1], [], []>} : vector<16x32xbf16>, vector<32x64xbf16>, vector<16x64xf32> -> vector<16x64xf32>
    %c0_12 = arith.constant 0 : index
    %c0_13 = arith.constant 0 : index
    %27 = vector.load %arg5[%c0_12, %c0_13] : memref<1x64xf32, #tpu.memory_space<vmem>>, vector<1x64xf32>
    %28 = vector.broadcast %27 : vector<1x64xf32> to vector<16x64xf32>
    %29 = arith.addf %26, %28 : vector<16x64xf32>
    %cst_14 = arith.constant 0.000000e+00 : f32
    %30 = vector.broadcast %cst_14 : f32 to vector<16x64xf32>
    %31 = arith.maximumf %29, %30 : vector<16x64xf32>
    %32 = arith.truncf %31 : vector<16x64xf32> to vector<16x64xbf16>
    %c0_15 = arith.constant 0 : index
    %c0_16 = arith.constant 0 : index
    %33 = vector.load %arg6[%c0_15, %c0_16] : memref<64x32xbf16, #tpu.memory_space<vmem>>, vector<64x32xbf16>
    %cst_17 = arith.constant dense<0.000000e+00> : vector<16x32xf32>
    %34 = tpu.matmul %32, %33, %cst_17 {dimension_numbers = #tpu.dot_dimension_numbers<[1], [0], [0], [1], [0, 0, 1, 1], [], []>} : vector<16x64xbf16>, vector<64x32xbf16>, vector<16x32xf32> -> vector<16x32xf32>
    %c0_18 = arith.constant 0 : index
    %c0_19 = arith.constant 0 : index
    %35 = vector.load %arg7[%c0_18, %c0_19] : memref<1x32xf32, #tpu.memory_space<vmem>>, vector<1x32xf32>
    %36 = vector.broadcast %35 : vector<1x32xf32> to vector<16x32xf32>
    %37 = arith.addf %34, %36 : vector<16x32xf32>
    %38 = arith.addf %0, %37 : vector<16x32xf32>
    %c0_20 = arith.constant 0 : index
    %c0_21 = arith.constant 0 : index
    %39 = vector.load %arg8[%c0_20, %c0_21] : memref<16x32xf32, #tpu.memory_space<vmem>>, vector<16x32xf32>
    tpu.vector_store %arg8[%c0_20, %c0_21], %38 {strides = array<i32>} : memref<16x32xf32, #tpu.memory_space<vmem>>, vector<16x32xf32>,
    return
  }
  func.func @transform_0(%arg0: i32) -> (i32, i32) {
    %c0_i32 = arith.constant 0 : i32
    %c0_i32_0 = arith.constant 0 : i32
    return %arg0, %c0_i32 : i32, i32
  }
  func.func @transform_1(%arg0: i32) -> (i32, i32) {
    %c0_i32 = arith.constant 0 : i32
    %c0_i32_0 = arith.constant 0 : i32
    %c0_i32_1 = arith.constant 0 : i32
    return %c0_i32, %c0_i32_0 : i32, i32
  }
  func.func @transform_2(%arg0: i32) -> (i32, i32) {
    %c0_i32 = arith.constant 0 : i32
    %c0_i32_0 = arith.constant 0 : i32
    %c0_i32_1 = arith.constant 0 : i32
    return %c0_i32, %c0_i32_0 : i32, i32
  }
  func.func @transform_3(%arg0: i32) -> (i32, i32) {
    %c0_i32 = arith.constant 0 : i32
    %c0_i32_0 = arith.constant 0 : i32
    %c0_i32_1 = arith.constant 0 : i32
    return %c0_i32, %c0_i32_0 : i32, i32
  }
  func.func @transform_4(%arg0: i32) -> (i32, i32) {
    %c0_i32 = arith.constant 0 : i32
    %c0_i32_0 = arith.constant 0 : i32
    %c0_i32_1 = arith.constant 0 : i32
    return %c0_i32, %c0_i32_0 : i32, i32
  }
  func.func @transform_5(%arg0: i32) -> (i32, i32) {
    %c0_i32 = arith.constant 0 : i32
    %c0_i32_0 = arith.constant 0 : i32
    %c0_i32_1 = arith.constant 0 : i32
    return %c0_i32, %c0_i32_0 : i32, i32
  }
  func.func @transform_6(%arg0: i32) -> (i32, i32) {
    %c0_i32 = arith.constant 0 : i32
    %c0_i32_0 = arith.constant 0 : i32
    %c0_i32_1 = arith.constant 0 : i32
    return %c0_i32, %c0_i32_0 : i32, i32
  }
  func.func @transform_7(%arg0: i32) -> (i32, i32) {
    %c0_i32 = arith.constant 0 : i32
    %c0_i32_0 = arith.constant 0 : i32
    return %arg0, %c0_i32 : i32, i32
  }
}

module attributes {stable_mosaic.version = 11 : i64} {
  func.func @_attn_wo_res_kernel(%arg0: i32, %arg1: i32, %arg2: memref<1x8x32xbf16, #tpu.memory_space<vmem>>, %arg3: memref<1x8x32xbf16, #tpu.memory_space<vmem>>, %arg4: memref<1x8x32xbf16, #tpu.memory_space<vmem>>, %arg5: memref<1x1x8xi32, #tpu.memory_space<vmem>>, %arg6: memref<1x8x32xf32, #tpu.memory_space<vmem>>, %arg7: memref<32x32xbf16, #tpu.memory_space<vmem>>, %arg8: memref<1x32xf32, #tpu.memory_space<vmem>>, %arg9: memref<1x8x32xf32, #tpu.memory_space<vmem>>) attributes {dimension_semantics = [#tpu.dimension_semantics<parallel>, #tpu.dimension_semantics<parallel>], iteration_bounds = array<i64: 2, 1>, scalar_prefetch = 0 : i64, scratch_operands = 0 : i64, tpu.core_type = #tpu.core_type<tc>, window_params = [{transform_indices = @transform_0, window_bounds = array<i64: 1, 8, 32>}, {transform_indices = @transform_1, window_bounds = array<i64: 1, 8, 32>}, {transform_indices = @transform_2, window_bounds = array<i64: 1, 8, 32>}, {transform_indices = @transform_3, window_bounds = array<i64: 1, 1, 8>}, {transform_indices = @transform_4, window_bounds = array<i64: 1, 8, 32>}, {pipeline_mode = #tpu.pipeline_mode<synchronous>, transform_indices = @transform_5, window_bounds = array<i64: 32, 32>}, {pipeline_mode = #tpu.pipeline_mode<synchronous>, transform_indices = @transform_6, window_bounds = array<i64: 1, 32>}, {transform_indices = @transform_7, window_bounds = array<i64: 1, 8, 32>}]} {
    %c0 = arith.constant 0 : index
    %c0_0 = arith.constant 0 : index
    %c0_1 = arith.constant 0 : index
    %0 = vector.load %arg2[%c0, %c0_0, %c0_1] : memref<1x8x32xbf16, #tpu.memory_space<vmem>>, vector<1x8x32xbf16>
    %1 = vector.shape_cast %0 : vector<1x8x32xbf16> to vector<8x32xbf16>
    %2 = arith.extf %1 : vector<8x32xbf16> to vector<8x32xf32>
    %cst = arith.constant 0.353553385 : f32
    %3 = vector.broadcast %cst : f32 to vector<8x32xf32>
    %4 = arith.mulf %2, %3 : vector<8x32xf32>
    %5 = arith.truncf %4 : vector<8x32xf32> to vector<8x32xbf16>
    %c0_2 = arith.constant 0 : index
    %c0_3 = arith.constant 0 : index
    %c0_4 = arith.constant 0 : index
    %6 = vector.load %arg3[%c0_2, %c0_3, %c0_4] : memref<1x8x32xbf16, #tpu.memory_space<vmem>>, vector<1x8x32xbf16>
    %7 = vector.shape_cast %6 : vector<1x8x32xbf16> to vector<8x32xbf16>
    %c0_5 = arith.constant 0 : index
    %c0_6 = arith.constant 0 : index
    %c0_7 = arith.constant 0 : index
    %8 = vector.load %arg4[%c0_5, %c0_6, %c0_7] : memref<1x8x32xbf16, #tpu.memory_space<vmem>>, vector<1x8x32xbf16>
    %9 = vector.shape_cast %8 : vector<1x8x32xbf16> to vector<8x32xbf16>
    %c0_8 = arith.constant 0 : index
    %c0_9 = arith.constant 0 : index
    %10 = vector.load %arg7[%c0_8, %c0_9] : memref<32x32xbf16, #tpu.memory_space<vmem>>, vector<32x32xbf16>
    %c0_10 = arith.constant 0 : index
    %c0_11 = arith.constant 0 : index
    %c0_12 = arith.constant 0 : index
    %11 = vector.load %arg5[%c0_10, %c0_11, %c0_12] : memref<1x1x8xi32, #tpu.memory_space<vmem>>, vector<1x1x8xi32>
    %12 = vector.shape_cast %11 : vector<1x1x8xi32> to vector<1x8xi32>
    %c0_i32 = arith.constant 0 : i32
    %13 = vector.broadcast %c0_i32 : i32 to vector<1x8xi32>
    %14 = arith.cmpi eq, %12, %13 : vector<1x8xi32>
    %cst_13 = arith.constant -1.000000e+09 : f32
    %cst_14 = arith.constant 0.000000e+00 : f32
    %15 = vector.broadcast %cst_13 : f32 to vector<1x8xf32>
    %16 = vector.broadcast %cst_14 : f32 to vector<1x8xf32>
    %17 = arith.select %14, %15, %16 : vector<1x8xi1>, vector<1x8xf32>
    %cst_15 = arith.constant 0.000000e+00 : f32
    %18 = vector.broadcast %cst_15 : f32 to vector<8x32xf32>
    %19 = vector.extract_strided_slice %5 {offsets = [0, 0], sizes = [8, 8], strides = [1, 1]} : vector<8x32xbf16> to vector<8x8xbf16>
    %20 = vector.extract_strided_slice %7 {offsets = [0, 0], sizes = [8, 8], strides = [1, 1]} : vector<8x32xbf16> to vector<8x8xbf16>
    %cst_16 = arith.constant dense<0.000000e+00> : vector<8x8xf32>
    %21 = tpu.matmul %19, %20, %cst_16 {dimension_numbers = #tpu.dot_dimension_numbers<[1], [1], [0], [0], [0, 0, 1, 0], [], []>} : vector<8x8xbf16>, vector<8x8xbf16>, vector<8x8xf32> -> vector<8x8xf32>
    %22 = vector.broadcast %17 : vector<1x8xf32> to vector<8x8xf32>
    %23 = arith.addf %21, %22 : vector<8x8xf32>
    %cst_17 = arith.constant dense<0xFF800000> : vector<8xf32>
    %24 = vector.multi_reduction <maximumf>, %23, %cst_17 [1] : vector<8x8xf32> to vector<8xf32>
    %25 = vector.shape_cast %24 : vector<8xf32> to vector<8x1xf32>
    %26 = vector.broadcast %25 : vector<8x1xf32> to vector<8x8xf32>
    %27 = arith.subf %23, %26 : vector<8x8xf32>
    %28 = math.exp %27 : vector<8x8xf32>
    %cst_18 = arith.constant dense<0.000000e+00> : vector<8xf32>
    %29 = vector.multi_reduction <add>, %28, %cst_18 [1] : vector<8x8xf32> to vector<8xf32>
    %30 = vector.shape_cast %29 : vector<8xf32> to vector<8x1xf32>
    %31 = tpu.reciprocal %30 {approx = true} : vector<8x1xf32> -> vector<8x1xf32>
    %32 = vector.broadcast %31 : vector<8x1xf32> to vector<8x8xf32>
    %33 = arith.mulf %28, %32 : vector<8x8xf32>
    %34 = arith.truncf %33 : vector<8x8xf32> to vector<8x8xbf16>
    %35 = vector.extract_strided_slice %9 {offsets = [0, 0], sizes = [8, 8], strides = [1, 1]} : vector<8x32xbf16> to vector<8x8xbf16>
    %cst_19 = arith.constant dense<0.000000e+00> : vector<8x8xf32>
    %36 = tpu.matmul %34, %35, %cst_19 {dimension_numbers = #tpu.dot_dimension_numbers<[1], [0], [0], [1], [0, 0, 1, 1], [], []>} : vector<8x8xbf16>, vector<8x8xbf16>, vector<8x8xf32> -> vector<8x8xf32>
    %37 = arith.truncf %36 : vector<8x8xf32> to vector<8x8xbf16>
    %38 = vector.extract_strided_slice %10 {offsets = [0, 0], sizes = [8, 32], strides = [1, 1]} : vector<32x32xbf16> to vector<8x32xbf16>
    %cst_20 = arith.constant dense<0.000000e+00> : vector<8x32xf32>
    %39 = tpu.matmul %37, %38, %cst_20 {dimension_numbers = #tpu.dot_dimension_numbers<[1], [0], [0], [1], [0, 0, 1, 1], [], []>} : vector<8x8xbf16>, vector<8x32xbf16>, vector<8x32xf32> -> vector<8x32xf32>
    %40 = arith.addf %18, %39 : vector<8x32xf32>
    %41 = vector.extract_strided_slice %5 {offsets = [0, 8], sizes = [8, 8], strides = [1, 1]} : vector<8x32xbf16> to vector<8x8xbf16>
    %42 = vector.extract_strided_slice %7 {offsets = [0, 8], sizes = [8, 8], strides = [1, 1]} : vector<8x32xbf16> to vector<8x8xbf16>
    %cst_21 = arith.constant dense<0.000000e+00> : vector<8x8xf32>
    %43 = tpu.matmul %41, %42, %cst_21 {dimension_numbers = #tpu.dot_dimension_numbers<[1], [1], [0], [0], [0, 0, 1, 0], [], []>} : vector<8x8xbf16>, vector<8x8xbf16>, vector<8x8xf32> -> vector<8x8xf32>
    %44 = vector.broadcast %17 : vector<1x8xf32> to vector<8x8xf32>
    %45 = arith.addf %43, %44 : vector<8x8xf32>
    %cst_22 = arith.constant dense<0xFF800000> : vector<8xf32>
    %46 = vector.multi_reduction <maximumf>, %45, %cst_22 [1] : vector<8x8xf32> to vector<8xf32>
    %47 = vector.shape_cast %46 : vector<8xf32> to vector<8x1xf32>
    %48 = vector.broadcast %47 : vector<8x1xf32> to vector<8x8xf32>
    %49 = arith.subf %45, %48 : vector<8x8xf32>
    %50 = math.exp %49 : vector<8x8xf32>
    %cst_23 = arith.constant dense<0.000000e+00> : vector<8xf32>
    %51 = vector.multi_reduction <add>, %50, %cst_23 [1] : vector<8x8xf32> to vector<8xf32>
    %52 = vector.shape_cast %51 : vector<8xf32> to vector<8x1xf32>
    %53 = tpu.reciprocal %52 {approx = true} : vector<8x1xf32> -> vector<8x1xf32>
    %54 = vector.broadcast %53 : vector<8x1xf32> to vector<8x8xf32>
    %55 = arith.mulf %50, %54 : vector<8x8xf32>
    %56 = arith.truncf %55 : vector<8x8xf32> to vector<8x8xbf16>
    %57 = vector.extract_strided_slice %9 {offsets = [0, 8], sizes = [8, 8], strides = [1, 1]} : vector<8x32xbf16> to vector<8x8xbf16>
    %cst_24 = arith.constant dense<0.000000e+00> : vector<8x8xf32>
    %58 = tpu.matmul %56, %57, %cst_24 {dimension_numbers = #tpu.dot_dimension_numbers<[1], [0], [0], [1], [0, 0, 1, 1], [], []>} : vector<8x8xbf16>, vector<8x8xbf16>, vector<8x8xf32> -> vector<8x8xf32>
    %59 = arith.truncf %58 : vector<8x8xf32> to vector<8x8xbf16>
    %60 = vector.extract_strided_slice %10 {offsets = [8, 0], sizes = [8, 32], strides = [1, 1]} : vector<32x32xbf16> to vector<8x32xbf16>
    %cst_25 = arith.constant dense<0.000000e+00> : vector<8x32xf32>
    %61 = tpu.matmul %59, %60, %cst_25 {dimension_numbers = #tpu.dot_dimension_numbers<[1], [0], [0], [1], [0, 0, 1, 1], [], []>} : vector<8x8xbf16>, vector<8x32xbf16>, vector<8x32xf32> -> vector<8x32xf32>
    %62 = arith.addf %40, %61 : vector<8x32xf32>
    %63 = vector.extract_strided_slice %5 {offsets = [0, 16], sizes = [8, 8], strides = [1, 1]} : vector<8x32xbf16> to vector<8x8xbf16>
    %64 = vector.extract_strided_slice %7 {offsets = [0, 16], sizes = [8, 8], strides = [1, 1]} : vector<8x32xbf16> to vector<8x8xbf16>
    %cst_26 = arith.constant dense<0.000000e+00> : vector<8x8xf32>
    %65 = tpu.matmul %63, %64, %cst_26 {dimension_numbers = #tpu.dot_dimension_numbers<[1], [1], [0], [0], [0, 0, 1, 0], [], []>} : vector<8x8xbf16>, vector<8x8xbf16>, vector<8x8xf32> -> vector<8x8xf32>
    %66 = vector.broadcast %17 : vector<1x8xf32> to vector<8x8xf32>
    %67 = arith.addf %65, %66 : vector<8x8xf32>
    %cst_27 = arith.constant dense<0xFF800000> : vector<8xf32>
    %68 = vector.multi_reduction <maximumf>, %67, %cst_27 [1] : vector<8x8xf32> to vector<8xf32>
    %69 = vector.shape_cast %68 : vector<8xf32> to vector<8x1xf32>
    %70 = vector.broadcast %69 : vector<8x1xf32> to vector<8x8xf32>
    %71 = arith.subf %67, %70 : vector<8x8xf32>
    %72 = math.exp %71 : vector<8x8xf32>
    %cst_28 = arith.constant dense<0.000000e+00> : vector<8xf32>
    %73 = vector.multi_reduction <add>, %72, %cst_28 [1] : vector<8x8xf32> to vector<8xf32>
    %74 = vector.shape_cast %73 : vector<8xf32> to vector<8x1xf32>
    %75 = tpu.reciprocal %74 {approx = true} : vector<8x1xf32> -> vector<8x1xf32>
    %76 = vector.broadcast %75 : vector<8x1xf32> to vector<8x8xf32>
    %77 = arith.mulf %72, %76 : vector<8x8xf32>
    %78 = arith.truncf %77 : vector<8x8xf32> to vector<8x8xbf16>
    %79 = vector.extract_strided_slice %9 {offsets = [0, 16], sizes = [8, 8], strides = [1, 1]} : vector<8x32xbf16> to vector<8x8xbf16>
    %cst_29 = arith.constant dense<0.000000e+00> : vector<8x8xf32>
    %80 = tpu.matmul %78, %79, %cst_29 {dimension_numbers = #tpu.dot_dimension_numbers<[1], [0], [0], [1], [0, 0, 1, 1], [], []>} : vector<8x8xbf16>, vector<8x8xbf16>, vector<8x8xf32> -> vector<8x8xf32>
    %81 = arith.truncf %80 : vector<8x8xf32> to vector<8x8xbf16>
    %82 = vector.extract_strided_slice %10 {offsets = [16, 0], sizes = [8, 32], strides = [1, 1]} : vector<32x32xbf16> to vector<8x32xbf16>
    %cst_30 = arith.constant dense<0.000000e+00> : vector<8x32xf32>
    %83 = tpu.matmul %81, %82, %cst_30 {dimension_numbers = #tpu.dot_dimension_numbers<[1], [0], [0], [1], [0, 0, 1, 1], [], []>} : vector<8x8xbf16>, vector<8x32xbf16>, vector<8x32xf32> -> vector<8x32xf32>
    %84 = arith.addf %62, %83 : vector<8x32xf32>
    %85 = vector.extract_strided_slice %5 {offsets = [0, 24], sizes = [8, 8], strides = [1, 1]} : vector<8x32xbf16> to vector<8x8xbf16>
    %86 = vector.extract_strided_slice %7 {offsets = [0, 24], sizes = [8, 8], strides = [1, 1]} : vector<8x32xbf16> to vector<8x8xbf16>
    %cst_31 = arith.constant dense<0.000000e+00> : vector<8x8xf32>
    %87 = tpu.matmul %85, %86, %cst_31 {dimension_numbers = #tpu.dot_dimension_numbers<[1], [1], [0], [0], [0, 0, 1, 0], [], []>} : vector<8x8xbf16>, vector<8x8xbf16>, vector<8x8xf32> -> vector<8x8xf32>
    %88 = vector.broadcast %17 : vector<1x8xf32> to vector<8x8xf32>
    %89 = arith.addf %87, %88 : vector<8x8xf32>
    %cst_32 = arith.constant dense<0xFF800000> : vector<8xf32>
    %90 = vector.multi_reduction <maximumf>, %89, %cst_32 [1] : vector<8x8xf32> to vector<8xf32>
    %91 = vector.shape_cast %90 : vector<8xf32> to vector<8x1xf32>
    %92 = vector.broadcast %91 : vector<8x1xf32> to vector<8x8xf32>
    %93 = arith.subf %89, %92 : vector<8x8xf32>
    %94 = math.exp %93 : vector<8x8xf32>
    %cst_33 = arith.constant dense<0.000000e+00> : vector<8xf32>
    %95 = vector.multi_reduction <add>, %94, %cst_33 [1] : vector<8x8xf32> to vector<8xf32>
    %96 = vector.shape_cast %95 : vector<8xf32> to vector<8x1xf32>
    %97 = tpu.reciprocal %96 {approx = true} : vector<8x1xf32> -> vector<8x1xf32>
    %98 = vector.broadcast %97 : vector<8x1xf32> to vector<8x8xf32>
    %99 = arith.mulf %94, %98 : vector<8x8xf32>
    %100 = arith.truncf %99 : vector<8x8xf32> to vector<8x8xbf16>
    %101 = vector.extract_strided_slice %9 {offsets = [0, 24], sizes = [8, 8], strides = [1, 1]} : vector<8x32xbf16> to vector<8x8xbf16>
    %cst_34 = arith.constant dense<0.000000e+00> : vector<8x8xf32>
    %102 = tpu.matmul %100, %101, %cst_34 {dimension_numbers = #tpu.dot_dimension_numbers<[1], [0], [0], [1], [0, 0, 1, 1], [], []>} : vector<8x8xbf16>, vector<8x8xbf16>, vector<8x8xf32> -> vector<8x8xf32>
    %103 = arith.truncf %102 : vector<8x8xf32> to vector<8x8xbf16>
    %104 = vector.extract_strided_slice %10 {offsets = [24, 0], sizes = [8, 32], strides = [1, 1]} : vector<32x32xbf16> to vector<8x32xbf16>
    %cst_35 = arith.constant dense<0.000000e+00> : vector<8x32xf32>
    %105 = tpu.matmul %103, %104, %cst_35 {dimension_numbers = #tpu.dot_dimension_numbers<[1], [0], [0], [1], [0, 0, 1, 1], [], []>} : vector<8x8xbf16>, vector<8x32xbf16>, vector<8x32xf32> -> vector<8x32xf32>
    %106 = arith.addf %84, %105 : vector<8x32xf32>
    %c0_36 = arith.constant 0 : index
    %c0_37 = arith.constant 0 : index
    %c0_38 = arith.constant 0 : index
    %107 = vector.load %arg6[%c0_36, %c0_37, %c0_38] : memref<1x8x32xf32, #tpu.memory_space<vmem>>, vector<1x8x32xf32>
    %108 = vector.shape_cast %107 : vector<1x8x32xf32> to vector<8x32xf32>
    %109 = arith.addf %108, %106 : vector<8x32xf32>
    %c0_39 = arith.constant 0 : index
    %c0_40 = arith.constant 0 : index
    %110 = vector.load %arg8[%c0_39, %c0_40] : memref<1x32xf32, #tpu.memory_space<vmem>>, vector<1x32xf32>
    %111 = vector.broadcast %110 : vector<1x32xf32> to vector<8x32xf32>
    %112 = arith.addf %109, %111 : vector<8x32xf32>
    %c0_41 = arith.constant 0 : index
    %c0_42 = arith.constant 0 : index
    %c0_43 = arith.constant 0 : index
    %113 = vector.load %arg9[%c0_41, %c0_42, %c0_43] : memref<1x8x32xf32, #tpu.memory_space<vmem>>, vector<1x8x32xf32>
    %114 = vector.shape_cast %113 : vector<1x8x32xf32> to vector<8x32xf32>
    %115 = vector.shape_cast %112 : vector<8x32xf32> to vector<1x8x32xf32>
    tpu.vector_store %arg9[%c0_41, %c0_42, %c0_43], %115 {strides = array<i32>} : memref<1x8x32xf32, #tpu.memory_space<vmem>>, vector<1x8x32xf32>,
    return
  }
  func.func @transform_0(%arg0: i32, %arg1: i32) -> (i32, i32, i32) {
    %c0_i32 = arith.constant 0 : i32
    %c0_i32_0 = arith.constant 0 : i32
    return %arg0, %arg1, %c0_i32 : i32, i32, i32
  }
  func.func @transform_1(%arg0: i32, %arg1: i32) -> (i32, i32, i32) {
    %c0_i32 = arith.constant 0 : i32
    %c0_i32_0 = arith.constant 0 : i32
    %c0_i32_1 = arith.constant 0 : i32
    return %arg0, %c0_i32, %c0_i32_0 : i32, i32, i32
  }
  func.func @transform_2(%arg0: i32, %arg1: i32) -> (i32, i32, i32) {
    %c0_i32 = arith.constant 0 : i32
    %c0_i32_0 = arith.constant 0 : i32
    %c0_i32_1 = arith.constant 0 : i32
    return %arg0, %c0_i32, %c0_i32_0 : i32, i32, i32
  }
  func.func @transform_3(%arg0: i32, %arg1: i32) -> (i32, i32, i32) {
    %c0_i32 = arith.constant 0 : i32
    %c0_i32_0 = arith.constant 0 : i32
    %c0_i32_1 = arith.constant 0 : i32
    return %arg0, %c0_i32, %c0_i32_0 : i32, i32, i32
  }
  func.func @transform_4(%arg0: i32, %arg1: i32) -> (i32, i32, i32) {
    %c0_i32 = arith.constant 0 : i32
    %c0_i32_0 = arith.constant 0 : i32
    return %arg0, %arg1, %c0_i32 : i32, i32, i32
  }
  func.func @transform_5(%arg0: i32, %arg1: i32) -> (i32, i32) {
    %c0_i32 = arith.constant 0 : i32
    %c0_i32_0 = arith.constant 0 : i32
    %c0_i32_1 = arith.constant 0 : i32
    return %c0_i32, %c0_i32_0 : i32, i32
  }
  func.func @transform_6(%arg0: i32, %arg1: i32) -> (i32, i32) {
    %c0_i32 = arith.constant 0 : i32
    %c0_i32_0 = arith.constant 0 : i32
    %c0_i32_1 = arith.constant 0 : i32
    return %c0_i32, %c0_i32_0 : i32, i32
  }
  func.func @transform_7(%arg0: i32, %arg1: i32) -> (i32, i32, i32) {
    %c0_i32 = arith.constant 0 : i32
    %c0_i32_0 = arith.constant 0 : i32
    return %arg0, %arg1, %c0_i32 : i32, i32, i32
  }
}

</mosaic_0001>

<llo_original>
// kernel: decoder_layer.6
$region0: #{decoder_layer.6}
  #allocation0 [shape = 'u32[]', space=smem, size = 0x4, offset = 0x4, fixed_abs, tag = 'smem constant byte address 0x4 - core index']
  #allocation1 [shape = 'u32[144,128]{1,0:T(1,128)}', space=vmem, size = 0x12000, scoped, tag = 'internal scratch']
  %s0 = inlined_call_operand.vmem [shape: f32[16,32], index: 0, kind: input, shape index: {}]
  %s1 = inlined_call_operand.vmem [shape: f32[1,32], index: 1, kind: input, shape index: {}]
  %s2 = inlined_call_operand.vmem [shape: f32[1,32], index: 2, kind: input, shape index: {}]
  %s3 = inlined_call_operand.vmem [shape: bf16[32,96], index: 3, kind: input, shape index: {}]
  %s4 = inlined_call_operand.vmem [shape: f32[1,96], index: 4, kind: input, shape index: {}]
  %s5 = inlined_call_operand.vmem [shape: bf16[16,32], index: 5, kind: output, shape index: {0}]
  %s6 = inlined_call_operand.vmem [shape: bf16[16,32], index: 6, kind: output, shape index: {1}]
  %s7 = inlined_call_operand.vmem [shape: bf16[16,32], index: 7, kind: output, shape index: {2}]
  %8 = xla_tuple %s5, %s6, %s7
  %s9 = sld [smem:[#allocation0]]
  $region46: #{decoder_layer.6} parent=0
    _
  %s11 = ssub.s32 1, %s9
  %s12 = scalar_select 0, %s11, %s9
  // Predicated region
  $region2: #{decoder_layer.6} parent=0 // pred_check
    _
  $region3: #{decoder_layer.6} parent=0 // pred_check_branch
    %14 = sbr.rel (0) target = $region5
  $region4: #{decoder_layer.6} parent=0 // pred_region
    _
  $region5: #{decoder_layer.6} parent=0 // pred_fallthru
    _
  // Predicated region
  $region6: #{decoder_layer.6} parent=0 // pred_check
    _
  $region7: #{decoder_layer.6} parent=0 // pred_check_branch
    %16 = sbr.rel (0) target = $region9
  $region8: #{decoder_layer.6} parent=0 // pred_region
    _
  $region9: #{decoder_layer.6} parent=0 // pred_fallthru
    _
  // Predicated region
  $region10: #{decoder_layer.6} parent=0 // pred_check
    _
  $region11: #{decoder_layer.6} parent=0 // pred_check_branch
    %18 = sbr.rel (0) target = $region13
  $region12: #{decoder_layer.6} parent=0 // pred_region
    _
  $region13: #{decoder_layer.6} parent=0 // pred_fallthru
    _
  // Predicated region
  $region14: #{decoder_layer.6} parent=0 // pred_check
    _
  $region15: #{decoder_layer.6} parent=0 // pred_check_branch
    %20 = sbr.rel (0) target = $region17
  $region16: #{decoder_layer.6} parent=0 // pred_region
    _
  $region17: #{decoder_layer.6} parent=0 // pred_fallthru
    _
  // Predicated region
  $region18: #{decoder_layer.6} parent=0 // pred_check
    _
  $region19: #{decoder_layer.6} parent=0 // pred_check_branch
    %22 = sbr.rel (0) target = $region21
  $region20: #{decoder_layer.6} parent=0 // pred_region
    _
  $region21: #{decoder_layer.6} parent=0 // pred_fallthru
    _
  %v24 = vld [vmem:[%s0] sm:$0xff]
  %v25 = vld [vmem:[%s0 + $0x8] sm:$0xff]
  %v26 = vld [vmem:[%s1] sm:$0x1]
  %v27 = vld [vmem:[%s2] sm:$0x1]
  %vm28 = vcmask 261120
  %v29 = vsel %vm28, %v24, 0.0
  %30 = vadd.xlane.f32.xlu0 %v29
  %v31 = vpop.xlane.xlu0 %30
  %v32 = vsel %vm28, %v25, 0.0
  %33 = vadd.xlane.f32.xlu0 %v32
  %v34 = vpop.xlane.xlu0 %33
  %v35 = vrcp.pop 32.0
  %v36 = vmul.f32 %v31, %v35
  %v37 = vmul.f32 %v34, %v35
  %v38 = vsub.f32 %v24, %v36
  %v39 = vsub.f32 %v25, %v37
  %v40 = vmul.f32 %v38, %v38
  %v41 = vmul.f32 %v39, %v39
  %v42 = vsel %vm28, %v40, 0.0
  %43 = vadd.xlane.f32.xlu0 %v42
  %v44 = vpop.xlane.xlu0 %43
  %v45 = vsel %vm28, %v41, 0.0
  %46 = vadd.xlane.f32.xlu0 %v45
  %v47 = vpop.xlane.xlu0 %46
  %v48 = vrcp.pop 31.0
  %v49 = vmul.f32 %v44, %v48
  %v50 = vmul.f32 %v47, %v48
  %v51 = vrsqrt.pop %v49
  %v52 = vmul.f32 %v49, %v51
  %vm53 = vcmp.eq.f32.partialorder %v49, inf
  %v54 = vsel %vm53, %v49, %v52
  %vm55 = vcmp.eq.f32.partialorder %v49, 0.0
  %v56 = vand.u32 %v49, 2147483648
  %v57 = vsel %vm55, %v56, %v54
  %v58 = vrsqrt.pop %v50
  %v59 = vmul.f32 %v50, %v58
  %vm60 = vcmp.eq.f32.partialorder %v50, inf
  %v61 = vsel %vm60, %v50, %v59
  %vm62 = vcmp.eq.f32.partialorder %v50, 0.0
  %v63 = vand.u32 %v50, 2147483648
  %v64 = vsel %vm62, %v63, %v61
  %v65 = vadd.f32 %v57, 1e-06
  %v66 = vadd.f32 %v64, 1e-06
  %v67 = vrcp.pop %v65
  %v68 = vrcp.pop %v66
  %v70 = vlaneseq
  %v71 = vshrl.u32 %v70, 7
  %v72 = vsub.s32 0, %v71
  %v73 = vrot.slane %v26, %v72
  %v75 = vmul.f32 %v73, %v38
  %v76 = vmul.f32 %v73, %v39
  %v77 = vmul.f32 %v75, %v67
  %v78 = vmul.f32 %v76, %v68
  %v80 = vlaneseq
  %v81 = vshrl.u32 %v80, 7
  %v82 = vsub.s32 0, %v81
  %v83 = vrot.slane %v27, %v82
  %v85 = vadd.f32 %v77, %v83
  %v86 = vadd.f32 %v78, %v83
  %v87 = vpack.c.bf16 %v86, %v85
  %v88 = vld [vmem:[%s3] sm:$0xf]
  %v89 = vld [vmem:[%s3 + $0x4] sm:$0xf]
  %v90 = vld [vmem:[%s3 + $0x8] sm:$0xf]
  %v91 = vld [vmem:[%s3 + $0xc] sm:$0xf]
  %v92 = vld [vmem:[%s4] sm:$0x1]
  %v94 = vlaneseq
  %v95 = vshrl.u32 %v94, 7
  %v96 = vsub.s32 0, %v95
  %v97 = vrot.slane %v92, %v96
  %v103 = vunpack.c.l.b16 %v88
  %v104 = vunpack.c.l.b16 %v89
  %v105 = vunpack.c.l.b16 %v90
  %v106 = vunpack.c.l.b16 %v91
  %v107 = vpack.c.b16 %v104, %v103
  %v108 = vpack.c.b16 %v106, %v105
  %v112 = vsel %vm28, %v87, 0
  %114 = vmatprep.subr.bf16.mxu0 0
  %115 = vmatpush1.bf16.msra.mxu0 %v107
  %116 = vmatprep.subr.bf16.mxu0 0
  %117 = vmatpush1.bf16.msra.mxu0 %v108
  %118 = vmatprep.subr.bf16.mxu0 0
  %119 = vmatpush1.bf16.msra.mxu0 0
  %120 = vmatprep.subr.bf16.mxu0 0
  %121 = vmatpush1.bf16.msra.mxu0 0
  %122 = vmatprep.subr.bf16.mxu0 0
  %123 = vmatpush1.bf16.msra.mxu0 0
  %124 = vmatprep.subr.bf16.mxu0 0
  %125 = vmatpush1.bf16.msra.mxu0 0
  %126 = vmatprep.subr.bf16.mxu0 0
  %127 = vmatpush1.bf16.msra.mxu0 0
  %128 = vmatprep.subr.bf16.mxu0 0
  %129 = vmatpush1.bf16.msra.mxu0 0
  %130 = vmatprep.subr.bf16.mxu0 0
  %131 = vmatpush1.bf16.msra.mxu0 0
  %132 = vmatprep.subr.bf16.mxu0 0
  %133 = vmatpush1.bf16.msra.mxu0 0
  %134 = vmatprep.subr.bf16.mxu0 0
  %135 = vmatpush1.bf16.msra.mxu0 0
  %136 = vmatprep.subr.bf16.mxu0 0
  %137 = vmatpush1.bf16.msra.mxu0 0
  %138 = vmatprep.subr.bf16.mxu0 0
  %139 = vmatpush1.bf16.msra.mxu0 0
  %140 = vmatprep.subr.bf16.mxu0 0
  %141 = vmatpush1.bf16.msra.mxu0 0
  %142 = vmatprep.subr.bf16.mxu0 0
  %143 = vmatpush1.bf16.msra.mxu0 0
  %144 = vmatprep.subr.bf16.mxu0 0
  %145 = vmatpush1.bf16.msra.mxu0 0
  %146 = vmatprep.mubr.bf16.mxu0 0
  %147 = vmatmul.mubr.bf16.gmra.mrb[0].mxu0 %v112
  %v148 = vpop.f32.mrb[0].mxu0
  %v149 = vadd.f32 %v97, %v148
  %v150 = vpop.f32.mrb[0].mxu0
  %v151 = vpop.f32.mrb[0].mxu0
  %v152 = vadd.f32 %v97, %v151
  %v153 = vpop.f32.mrb[0].mxu0
  %154 = vdwg.mxu0
  %v155 = vpack.c.bf16 %v152, %v149
  %v157 = vunpack.c.l.b16 %v155
  %v158 = vunpack.c.h.b16 %v155
  %v159 = vpack.c.b16 %v157, %v157
  %v160 = vpack.c.b16 %v158, %v158
  %vm163 = vcmask 257024
  %164 = vst.msk [vmem:[%s5] sm:$0xf] %vm163, %v159
  %165 = vst.msk [vmem:[%s5 + $0x4] sm:$0xf] %vm163, %v160
  %166 = vrot.lane.b32.xlu0 %v159, 96
  %v167 = vpop.permute.xlu0 %166
  %168 = vrot.lane.b32.xlu0 %v160, 96
  %v169 = vpop.permute.xlu0 %168
  %172 = vst.msk [vmem:[%s6] sm:$0xf] %vm163, %v167
  %173 = vst.msk [vmem:[%s6 + $0x4] sm:$0xf] %vm163, %v169
  %174 = vrot.lane.b32.xlu0 %v159, 64
  %v175 = vpop.permute.xlu0 %174
  %176 = vrot.lane.b32.xlu0 %v160, 64
  %v177 = vpop.permute.xlu0 %176
  %180 = vst.msk [vmem:[%s7] sm:$0xf] %vm163, %v175
  %181 = vst.msk [vmem:[%s7 + $0x4] sm:$0xf] %vm163, %v177
  // Predicated region
  $region22: #{decoder_layer.6} parent=0 // pred_check
    _
  $region23: #{decoder_layer.6} parent=0 // pred_check_branch
    %183 = sbr.rel (0) target = $region25
  $region24: #{decoder_layer.6} parent=0 // pred_region
    _
  $region25: #{decoder_layer.6} parent=0 // pred_fallthru
    _
  // Predicated region
  $region26: #{decoder_layer.6} parent=0 // pred_check
    _
  $region27: #{decoder_layer.6} parent=0 // pred_check_branch
    %185 = sbr.rel (0) target = $region29
  $region28: #{decoder_layer.6} parent=0 // pred_region
    _
  $region29: #{decoder_layer.6} parent=0 // pred_fallthru
    _
  // Predicated region
  $region30: #{decoder_layer.6} parent=0 // pred_check
    _
  $region31: #{decoder_layer.6} parent=0 // pred_check_branch
    %187 = sbr.rel (0) target = $region33
  $region32: #{decoder_layer.6} parent=0 // pred_region
    _
  $region33: #{decoder_layer.6} parent=0 // pred_fallthru
    _
  // Predicated region
  $region34: #{decoder_layer.6} parent=0 // pred_check
    _
  $region35: #{decoder_layer.6} parent=0 // pred_check_branch
    %189 = sbr.rel (0) target = $region37
  $region36: #{decoder_layer.6} parent=0 // pred_region
    _
  $region37: #{decoder_layer.6} parent=0 // pred_fallthru
    _
  // Predicated region
  $region38: #{decoder_layer.6} parent=0 // pred_check
    _
  $region39: #{decoder_layer.6} parent=0 // pred_check_branch
    %191 = sbr.rel (0) target = $region41
  $region40: #{decoder_layer.6} parent=0 // pred_region
    _
  $region41: #{decoder_layer.6} parent=0 // pred_fallthru
    _
  // Predicated region
  $region42: #{decoder_layer.6} parent=0 // pred_check
    _
  $region43: #{decoder_layer.6} parent=0 // pred_check_branch
    %193 = sbr.rel (0) target = $region45
  $region44: #{decoder_layer.6} parent=0 // pred_region
    _
  $region45: #{decoder_layer.6} parent=0 // pred_fallthru
    _

// kernel: decoder_layer.8
$region0: #{decoder_layer.8}
  #allocation0 [shape = 'u32[]', space=smem, size = 0x4, offset = 0x4, fixed_abs, tag = 'smem constant byte address 0x4 - core index']
  #allocation1 [shape = 'u32[144,128]{1,0:T(1,128)}', space=vmem, size = 0x12000, scoped, tag = 'internal scratch']
  %s0 = inlined_call_operand.vmem [shape: f32[16,32], index: 0, kind: input, shape index: {}]
  %s1 = inlined_call_operand.vmem [shape: f32[1,32], index: 1, kind: input, shape index: {}]
  %s2 = inlined_call_operand.vmem [shape: f32[1,32], index: 2, kind: input, shape index: {}]
  %s3 = inlined_call_operand.vmem [shape: bf16[32,32], index: 3, kind: input, shape index: {}]
  %s4 = inlined_call_operand.vmem [shape: f32[1,32], index: 4, kind: input, shape index: {}]
  %s5 = inlined_call_operand.vmem [shape: bf16[16,32], index: 5, kind: output, shape index: {}]
  %s6 = sld [smem:[#allocation0]]
  $region30: #{decoder_layer.8} parent=0
    _
  %s8 = ssub.s32 1, %s6
  %s9 = scalar_select 0, %s8, %s6
  // Predicated region
  $region2: #{decoder_layer.8} parent=0 // pred_check
    _
  $region3: #{decoder_layer.8} parent=0 // pred_check_branch
    %11 = sbr.rel (0) target = $region5
  $region4: #{decoder_layer.8} parent=0 // pred_region
    _
  $region5: #{decoder_layer.8} parent=0 // pred_fallthru
    _
  // Predicated region
  $region6: #{decoder_layer.8} parent=0 // pred_check
    _
  $region7: #{decoder_layer.8} parent=0 // pred_check_branch
    %13 = sbr.rel (0) target = $region9
  $region8: #{decoder_layer.8} parent=0 // pred_region
    _
  $region9: #{decoder_layer.8} parent=0 // pred_fallthru
    _
  // Predicated region
  $region10: #{decoder_layer.8} parent=0 // pred_check
    _
  $region11: #{decoder_layer.8} parent=0 // pred_check_branch
    %15 = sbr.rel (0) target = $region13
  $region12: #{decoder_layer.8} parent=0 // pred_region
    _
  $region13: #{decoder_layer.8} parent=0 // pred_fallthru
    _
  // Predicated region
  $region14: #{decoder_layer.8} parent=0 // pred_check
    _
  $region15: #{decoder_layer.8} parent=0 // pred_check_branch
    %17 = sbr.rel (0) target = $region17
  $region16: #{decoder_layer.8} parent=0 // pred_region
    _
  $region17: #{decoder_layer.8} parent=0 // pred_fallthru
    _
  // Predicated region
  $region18: #{decoder_layer.8} parent=0 // pred_check
    _
  $region19: #{decoder_layer.8} parent=0 // pred_check_branch
    %19 = sbr.rel (0) target = $region21
  $region20: #{decoder_layer.8} parent=0 // pred_region
    _
  $region21: #{decoder_layer.8} parent=0 // pred_fallthru
    _
  %v21 = vld [vmem:[%s0] sm:$0xff]
  %v22 = vld [vmem:[%s0 + $0x8] sm:$0xff]
  %v23 = vld [vmem:[%s1] sm:$0x1]
  %v24 = vld [vmem:[%s2] sm:$0x1]
  %vm25 = vcmask 261120
  %v26 = vsel %vm25, %v21, 0.0
  %27 = vadd.xlane.f32.xlu0 %v26
  %v28 = vpop.xlane.xlu0 %27
  %v29 = vsel %vm25, %v22, 0.0
  %30 = vadd.xlane.f32.xlu0 %v29
  %v31 = vpop.xlane.xlu0 %30
  %v32 = vrcp.pop 32.0
  %v33 = vmul.f32 %v28, %v32
  %v34 = vmul.f32 %v31, %v32
  %v35 = vsub.f32 %v21, %v33
  %v36 = vsub.f32 %v22, %v34
  %v37 = vmul.f32 %v35, %v35
  %v38 = vmul.f32 %v36, %v36
  %v39 = vsel %vm25, %v37, 0.0
  %40 = vadd.xlane.f32.xlu0 %v39
  %v41 = vpop.xlane.xlu0 %40
  %v42 = vsel %vm25, %v38, 0.0
  %43 = vadd.xlane.f32.xlu0 %v42
  %v44 = vpop.xlane.xlu0 %43
  %v45 = vrcp.pop 31.0
  %v46 = vmul.f32 %v41, %v45
  %v47 = vmul.f32 %v44, %v45
  %v48 = vrsqrt.pop %v46
  %v49 = vmul.f32 %v46, %v48
  %vm50 = vcmp.eq.f32.partialorder %v46, inf
  %v51 = vsel %vm50, %v46, %v49
  %vm52 = vcmp.eq.f32.partialorder %v46, 0.0
  %v53 = vand.u32 %v46, 2147483648
  %v54 = vsel %vm52, %v53, %v51
  %v55 = vrsqrt.pop %v47
  %v56 = vmul.f32 %v47, %v55
  %vm57 = vcmp.eq.f32.partialorder %v47, inf
  %v58 = vsel %vm57, %v47, %v56
  %vm59 = vcmp.eq.f32.partialorder %v47, 0.0
  %v60 = vand.u32 %v47, 2147483648
  %v61 = vsel %vm59, %v60, %v58
  %v62 = vadd.f32 %v54, 1e-06
  %v63 = vadd.f32 %v61, 1e-06
  %v64 = vrcp.pop %v62
  %v65 = vrcp.pop %v63
  %v67 = vlaneseq
  %v68 = vshrl.u32 %v67, 7
  %v69 = vsub.s32 0, %v68
  %v70 = vrot.slane %v23, %v69
  %v72 = vmul.f32 %v70, %v35
  %v73 = vmul.f32 %v70, %v36
  %v74 = vmul.f32 %v72, %v64
  %v75 = vmul.f32 %v73, %v65
  %v77 = vlaneseq
  %v78 = vshrl.u32 %v77, 7
  %v79 = vsub.s32 0, %v78
  %v80 = vrot.slane %v24, %v79
  %v82 = vadd.f32 %v74, %v80
  %v83 = vadd.f32 %v75, %v80
  %v84 = vpack.c.bf16 %v83, %v82
  %v85 = vld [vmem:[%s3] sm:$0xf]
  %v86 = vld [vmem:[%s3 + $0x4] sm:$0xf]
  %v87 = vld [vmem:[%s3 + $0x8] sm:$0xf]
  %v88 = vld [vmem:[%s3 + $0xc] sm:$0xf]
  %v89 = vld [vmem:[%s4] sm:$0x1]
  %v91 = vlaneseq
  %v92 = vshrl.u32 %v91, 7
  %v93 = vsub.s32 0, %v92
  %v94 = vrot.slane %v89, %v93
  %v100 = vunpack.c.l.b16 %v85
  %v101 = vunpack.c.l.b16 %v86
  %v102 = vunpack.c.l.b16 %v87
  %v103 = vunpack.c.l.b16 %v88
  %v104 = vpack.c.b16 %v101, %v100
  %v105 = vpack.c.b16 %v103, %v102
  %v109 = vsel %vm25, %v84, 0
  %111 = vmatprep.subr.bf16.mxu0 0
  %112 = vmatpush1.bf16.msra.mxu0 %v104
  %113 = vmatprep.subr.bf16.mxu0 0
  %114 = vmatpush1.bf16.msra.mxu0 %v105
  %115 = vmatprep.subr.bf16.mxu0 0
  %116 = vmatpush1.bf16.msra.mxu0 0
  %117 = vmatprep.subr.bf16.mxu0 0
  %118 = vmatpush1.bf16.msra.mxu0 0
  %119 = vmatprep.subr.bf16.mxu0 0
  %120 = vmatpush1.bf16.msra.mxu0 0
  %121 = vmatprep.subr.bf16.mxu0 0
  %122 = vmatpush1.bf16.msra.mxu0 0
  %123 = vmatprep.subr.bf16.mxu0 0
  %124 = vmatpush1.bf16.msra.mxu0 0
  %125 = vmatprep.subr.bf16.mxu0 0
  %126 = vmatpush1.bf16.msra.mxu0 0
  %127 = vmatprep.subr.bf16.mxu0 0
  %128 = vmatpush1.bf16.msra.mxu0 0
  %129 = vmatprep.subr.bf16.mxu0 0
  %130 = vmatpush1.bf16.msra.mxu0 0
  %131 = vmatprep.subr.bf16.mxu0 0
  %132 = vmatpush1.bf16.msra.mxu0 0
  %133 = vmatprep.subr.bf16.mxu0 0
  %134 = vmatpush1.bf16.msra.mxu0 0
  %135 = vmatprep.subr.bf16.mxu0 0
  %136 = vmatpush1.bf16.msra.mxu0 0
  %137 = vmatprep.subr.bf16.mxu0 0
  %138 = vmatpush1.bf16.msra.mxu0 0
  %139 = vmatprep.subr.bf16.mxu0 0
  %140 = vmatpush1.bf16.msra.mxu0 0
  %141 = vmatprep.subr.bf16.mxu0 0
  %142 = vmatpush1.bf16.msra.mxu0 0
  %143 = vmatprep.mubr.bf16.mxu0 0
  %144 = vmatmul.mubr.bf16.gmra.mrb[0].mxu0 %v109
  %v145 = vpop.f32.mrb[0].mxu0
  %v146 = vadd.f32 %v94, %v145
  %v147 = vpop.f32.mrb[0].mxu0
  %v148 = vpop.f32.mrb[0].mxu0
  %v149 = vadd.f32 %v94, %v148
  %v150 = vpop.f32.mrb[0].mxu0
  %151 = vdwg.mxu0
  %v152 = vpack.c.bf16 %v149, %v146
  %v154 = vunpack.c.l.b16 %v152
  %v155 = vunpack.c.h.b16 %v152
  %v156 = vpack.c.b16 %v154, %v154
  %v157 = vpack.c.b16 %v155, %v155
  %vm160 = vcmask 257024
  %161 = vst.msk [vmem:[%s5] sm:$0xf] %vm160, %v156
  %162 = vst.msk [vmem:[%s5 + $0x4] sm:$0xf] %vm160, %v157
  // Predicated region
  $region22: #{decoder_layer.8} parent=0 // pred_check
    _
  $region23: #{decoder_layer.8} parent=0 // pred_check_branch
    %164 = sbr.rel (0) target = $region25
  $region24: #{decoder_layer.8} parent=0 // pred_region
    _
  $region25: #{decoder_layer.8} parent=0 // pred_fallthru
    _
  // Predicated region
  $region26: #{decoder_layer.8} parent=0 // pred_check
    _
  $region27: #{decoder_layer.8} parent=0 // pred_check_branch
    %166 = sbr.rel (0) target = $region29
  $region28: #{decoder_layer.8} parent=0 // pred_region
    _
  $region29: #{decoder_layer.8} parent=0 // pred_fallthru
    _

// kernel: decoder_layer.9
$region0: #{decoder_layer.9}
  #allocation0 [shape = 'u32[]', space=smem, size = 0x4, offset = 0x4, fixed_abs, tag = 'smem constant byte address 0x4 - core index']
  #allocation1 [shape = 'u32[144,128]{1,0:T(1,128)}', space=vmem, size = 0x12000, scoped, tag = 'internal scratch']
  %s0 = inlined_call_operand.vmem [shape: f32[16,32], index: 0, kind: input, shape index: {}]
  %s1 = inlined_call_operand.vmem [shape: bf16[32,64], index: 1, kind: input, shape index: {}]
  %s2 = inlined_call_operand.vmem [shape: f32[1,64], index: 2, kind: input, shape index: {}]
  %s3 = inlined_call_operand.vmem [shape: bf16[16,32], index: 3, kind: output, shape index: {0}]
  %s4 = inlined_call_operand.vmem [shape: bf16[16,32], index: 4, kind: output, shape index: {1}]
  %5 = xla_tuple %s3, %s4
  %s6 = sld [smem:[#allocation0]]
  $region30: #{decoder_layer.9} parent=0
    _
  %s8 = ssub.s32 1, %s6
  %s9 = scalar_select 0, %s8, %s6
  // Predicated region
  $region2: #{decoder_layer.9} parent=0 // pred_check
    _
  $region3: #{decoder_layer.9} parent=0 // pred_check_branch
    %11 = sbr.rel (0) target = $region5
  $region4: #{decoder_layer.9} parent=0 // pred_region
    _
  $region5: #{decoder_layer.9} parent=0 // pred_fallthru
    _
  // Predicated region
  $region6: #{decoder_layer.9} parent=0 // pred_check
    _
  $region7: #{decoder_layer.9} parent=0 // pred_check_branch
    %13 = sbr.rel (0) target = $region9
  $region8: #{decoder_layer.9} parent=0 // pred_region
    _
  $region9: #{decoder_layer.9} parent=0 // pred_fallthru
    _
  // Predicated region
  $region10: #{decoder_layer.9} parent=0 // pred_check
    _
  $region11: #{decoder_layer.9} parent=0 // pred_check_branch
    %15 = sbr.rel (0) target = $region13
  $region12: #{decoder_layer.9} parent=0 // pred_region
    _
  $region13: #{decoder_layer.9} parent=0 // pred_fallthru
    _
  %v17 = vld [vmem:[%s0] sm:$0xff]
  %v18 = vld [vmem:[%s0 + $0x8] sm:$0xff]
  %v19 = vpack.c.bf16 %v18, %v17
  %v20 = vld [vmem:[%s1] sm:$0xf]
  %v21 = vld [vmem:[%s1 + $0x4] sm:$0xf]
  %v22 = vld [vmem:[%s1 + $0x8] sm:$0xf]
  %v23 = vld [vmem:[%s1 + $0xc] sm:$0xf]
  %v24 = vld [vmem:[%s2] sm:$0x1]
  %v26 = vlaneseq
  %v27 = vshrl.u32 %v26, 7
  %v28 = vsub.s32 0, %v27
  %v29 = vrot.slane %v24, %v28
  %v35 = vunpack.c.l.b16 %v20
  %v36 = vunpack.c.l.b16 %v21
  %v37 = vunpack.c.l.b16 %v22
  %v38 = vunpack.c.l.b16 %v23
  %v39 = vpack.c.b16 %v36, %v35
  %v40 = vpack.c.b16 %v38, %v37
  %vm43 = vcmask 261120
  %v45 = vsel %vm43, %v19, 0
  %47 = vmatprep.subr.bf16.mxu0 0
  %48 = vmatpush1.bf16.msra.mxu0 %v39
  %49 = vmatprep.subr.bf16.mxu0 0
  %50 = vmatpush1.bf16.msra.mxu0 %v40
  %51 = vmatprep.subr.bf16.mxu0 0
  %52 = vmatpush1.bf16.msra.mxu0 0
  %53 = vmatprep.subr.bf16.mxu0 0
  %54 = vmatpush1.bf16.msra.mxu0 0
  %55 = vmatprep.subr.bf16.mxu0 0
  %56 = vmatpush1.bf16.msra.mxu0 0
  %57 = vmatprep.subr.bf16.mxu0 0
  %58 = vmatpush1.bf16.msra.mxu0 0
  %59 = vmatprep.subr.bf16.mxu0 0
  %60 = vmatpush1.bf16.msra.mxu0 0
  %61 = vmatprep.subr.bf16.mxu0 0
  %62 = vmatpush1.bf16.msra.mxu0 0
  %63 = vmatprep.subr.bf16.mxu0 0
  %64 = vmatpush1.bf16.msra.mxu0 0
  %65 = vmatprep.subr.bf16.mxu0 0
  %66 = vmatpush1.bf16.msra.mxu0 0
  %67 = vmatprep.subr.bf16.mxu0 0
  %68 = vmatpush1.bf16.msra.mxu0 0
  %69 = vmatprep.subr.bf16.mxu0 0
  %70 = vmatpush1.bf16.msra.mxu0 0
  %71 = vmatprep.subr.bf16.mxu0 0
  %72 = vmatpush1.bf16.msra.mxu0 0
  %73 = vmatprep.subr.bf16.mxu0 0
  %74 = vmatpush1.bf16.msra.mxu0 0
  %75 = vmatprep.subr.bf16.mxu0 0
  %76 = vmatpush1.bf16.msra.mxu0 0
  %77 = vmatprep.subr.bf16.mxu0 0
  %78 = vmatpush1.bf16.msra.mxu0 0
  %79 = vmatprep.mubr.bf16.mxu0 0
  %80 = vmatmul.mubr.bf16.gmra.mrb[0].mxu0 %v45
  %v81 = vpop.f32.mrb[0].mxu0
  %v82 = vadd.f32 %v29, %v81
  %v83 = vpop.f32.mrb[0].mxu0
  %v84 = vpop.f32.mrb[0].mxu0
  %v85 = vadd.f32 %v29, %v84
  %v86 = vpop.f32.mrb[0].mxu0
  %87 = vdwg.mxu0
  %v88 = vpack.c.bf16 %v85, %v82
  %v90 = vunpack.c.l.b16 %v88
  %v91 = vunpack.c.h.b16 %v88
  %v92 = vpack.c.b16 %v90, %v90
  %v93 = vpack.c.b16 %v91, %v91
  %vm96 = vcmask 257024
  %97 = vst.msk [vmem:[%s3] sm:$0xf] %vm96, %v92
  %98 = vst.msk [vmem:[%s3 + $0x4] sm:$0xf] %vm96, %v93
  %99 = vrot.lane.b32.xlu0 %v92, 96
  %v100 = vpop.permute.xlu0 %99
  %101 = vrot.lane.b32.xlu0 %v93, 96
  %v102 = vpop.permute.xlu0 %101
  %105 = vst.msk [vmem:[%s4] sm:$0xf] %vm96, %v100
  %106 = vst.msk [vmem:[%s4 + $0x4] sm:$0xf] %vm96, %v102
  // Predicated region
  $region14: #{decoder_layer.9} parent=0 // pred_check
    _
  $region15: #{decoder_layer.9} parent=0 // pred_check_branch
    %108 = sbr.rel (0) target = $region17
  $region16: #{decoder_layer.9} parent=0 // pred_region
    _
  $region17: #{decoder_layer.9} parent=0 // pred_fallthru
    _
  // Predicated region
  $region18: #{decoder_layer.9} parent=0 // pred_check
    _
  $region19: #{decoder_layer.9} parent=0 // pred_check_branch
    %110 = sbr.rel (0) target = $region21
  $region20: #{decoder_layer.9} parent=0 // pred_region
    _
  $region21: #{decoder_layer.9} parent=0 // pred_fallthru
    _
  // Predicated region
  $region22: #{decoder_layer.9} parent=0 // pred_check
    _
  $region23: #{decoder_layer.9} parent=0 // pred_check_branch
    %112 = sbr.rel (0) target = $region25
  $region24: #{decoder_layer.9} parent=0 // pred_region
    _
  $region25: #{decoder_layer.9} parent=0 // pred_fallthru
    _
  // Predicated region
  $region26: #{decoder_layer.9} parent=0 // pred_check
    _
  $region27: #{decoder_layer.9} parent=0 // pred_check_branch
    %114 = sbr.rel (0) target = $region29
  $region28: #{decoder_layer.9} parent=0 // pred_region
    _
  $region29: #{decoder_layer.9} parent=0 // pred_fallthru
    _

// kernel: decoder_layer.7
$region0: #{decoder_layer.7}
  #allocation0 [shape = 'u32[]', space=smem, size = 0x4, offset = 0x4, fixed_abs, tag = 'smem constant byte address 0x4 - core index']
  #allocation1 [shape = 'u32[144,128]{1,0:T(1,128)}', space=vmem, size = 0x12000, scoped, tag = 'internal scratch']
  %s0 = inlined_call_operand.vmem [shape: bf16[2,8,32], index: 0, kind: input, shape index: {}]
  %s1 = inlined_call_operand.vmem [shape: bf16[2,8,32], index: 1, kind: input, shape index: {}]
  %s2 = inlined_call_operand.vmem [shape: bf16[2,8,32], index: 2, kind: input, shape index: {}]
  %s3 = inlined_call_operand.vmem [shape: s32[1,8,8], index: 3, kind: input, shape index: {}]
  %s4 = inlined_call_operand.vmem [shape: f32[2,8,32], index: 4, kind: input, shape index: {}]
  %s5 = inlined_call_operand.vmem [shape: bf16[32,32], index: 5, kind: input, shape index: {}]
  %s6 = inlined_call_operand.vmem [shape: f32[1,32], index: 6, kind: input, shape index: {}]
  %s7 = inlined_call_operand.vmem [shape: f32[2,8,32], index: 7, kind: output, shape index: {}]
  %s8 = sld [smem:[#allocation0]]
  $region61: #{decoder_layer.7} parent=0
    _
  %s10 = ssub.s32 1, %s8
  %s11 = scalar_select 0, %s10, %s8
  loop: start=0, step=1, limit=4
  $region2: #{decoder_layer.7} parent=0 // loop_pre_header
    _
  $region3: #{decoder_layer.7} parent=0 // loop_header
    %s13 = sphi 0, %s17
    %p14 = scmp.ge.s32.totalorder %s13, 4
    %s20 = sphi 0, %s32
    %s21 = sphi 0, %s28
    %s22 = sphi 0, %s20
    %s23 = sphi 0, %s21
    %s24 = sphi 0, %s22
    %s25 = sphi 0, %s23
    %s37 = sphi 0, %s39
    %s40 = sphi 0, %s37
    %s41 = sphi 0, %s40
    %s57 = sphi 0, %s41
    %s63 = sphi 0, %s65
    %s66 = sphi 0, %s63
    %s67 = sphi 0, %s66
    %s83 = sphi 0, %s67
    %s89 = sphi 0, %s91
    %s92 = sphi 0, %s89
    %s93 = sphi 0, %s92
    %s109 = sphi 0, %s93
    %s115 = sphi 0, %s117
    %s118 = sphi 0, %s115
    %s119 = sphi 0, %s118
    %s135 = sphi 0, %s119
    %s143 = sphi 0, %s145
    %s146 = sphi 0, %s143
    %s147 = sphi 0, %s146
    %s163 = sphi 0, %s147
    %s167 = sphi 0, %s167
    %s169 = sphi 0, %s167
    %s170 = sphi 0, %s169
    %s184 = sphi 0, %s170
    %s188 = sphi 0, %s188
    %s190 = sphi 0, %s188
    %s191 = sphi 0, %s190
    %s205 = sphi 0, %s191
    %s213 = sphi 0, %s215
    %s216 = sphi 0, %s213
    %s217 = sphi 0, %s216
    %s233 = sphi 0, %s217
  $region4: #{decoder_layer.7} parent=0 // loop_header_branch
    %16 = sbr.rel (%p14) target = $region8
  $region5: #{decoder_layer.7} parent=0 // loop_body
    %s18 = ssub.s32 %s13, 1
    %s19 = ssub.s32 %s13, 2
    %s26 = sadd.s32 1, %s21
    %p27 = scmp.ge.s32.totalorder %s26, 1
    %s28 = scalar_select %p27, 0, %s26
    %s29 = sadd.s32 1, %s20
    %s30 = scalar_select %p27, %s29, %s20
    %p31 = scmp.ge.s32.totalorder %s30, 2
    %s32 = scalar_select %p31, 0, %s30
    %s33 = ssub.s32 %s20, %s32
    %s34 = ssub.s32 %s21, %s28
    %s35 = sor.u32 %s33, %s34
    %p36 = scmp.eq.s32.totalorder %s35, 0
    %s38 = sadd.s32 %s37, 1
    %s39 = scalar_select %p36, %s37, %s38
    %p42 = pneg %p36
    %p43 = scmp.eq.s32.totalorder %s13, 1
    %p44 = por %p42, %p43
    %p45 = scmp.ne.s32.totalorder %s37, %s40
    %p46 = scmp.eq.s32.totalorder %s13, 0
    %p47 = por %p45, %p46
    %p48 = scmp.ne.s32.totalorder %s37, %s40
    %p49 = scmp.eq.s32.totalorder %s18, 1
    %p50 = por %p48, %p49
    %p51 = scmp.ne.s32.totalorder %s40, %s41
    %p52 = scmp.eq.s32.totalorder %s18, 0
    %p53 = por %p51, %p52
    %p54 = scmp.ne.s32.totalorder %s40, %s41
    %p55 = scmp.eq.s32.totalorder %s19, 1
    %p56 = por %p54, %p55
    %p58 = scmp.ne.s32.totalorder %s41, %s57
    %p59 = scmp.eq.s32.totalorder %s19, 0
    %p60 = por %p58, %p59
    %s61 = ssub.s32 %s20, %s32
    %p62 = scmp.eq.s32.totalorder %s61, 0
    %s64 = sadd.s32 %s63, 1
    %s65 = scalar_select %p62, %s63, %s64
    %p68 = pneg %p62
    %p69 = scmp.eq.s32.totalorder %s13, 1
    %p70 = por %p68, %p69
    %p71 = scmp.ne.s32.totalorder %s63, %s66
    %p72 = scmp.eq.s32.totalorder %s13, 0
    %p73 = por %p71, %p72
    %p74 = scmp.ne.s32.totalorder %s63, %s66
    %p75 = scmp.eq.s32.totalorder %s18, 1
    %p76 = por %p74, %p75
    %p77 = scmp.ne.s32.totalorder %s66, %s67
    %p78 = scmp.eq.s32.totalorder %s18, 0
    %p79 = por %p77, %p78
    %p80 = scmp.ne.s32.totalorder %s66, %s67
    %p81 = scmp.eq.s32.totalorder %s19, 1
    %p82 = por %p80, %p81
    %p84 = scmp.ne.s32.totalorder %s67, %s83
    %p85 = scmp.eq.s32.totalorder %s19, 0
    %p86 = por %p84, %p85
    %s87 = ssub.s32 %s20, %s32
    %p88 = scmp.eq.s32.totalorder %s87, 0
    %s90 = sadd.s32 %s89, 1
    %s91 = scalar_select %p88, %s89, %s90
    %p94 = pneg %p88
    %p95 = scmp.eq.s32.totalorder %s13, 1
    %p96 = por %p94, %p95
    %p97 = scmp.ne.s32.totalorder %s89, %s92
    %p98 = scmp.eq.s32.totalorder %s13, 0
    %p99 = por %p97, %p98
    %p100 = scmp.ne.s32.totalorder %s89, %s92
    %p101 = scmp.eq.s32.totalorder %s18, 1
    %p102 = por %p100, %p101
    %p103 = scmp.ne.s32.totalorder %s92, %s93
    %p104 = scmp.eq.s32.totalorder %s18, 0
    %p105 = por %p103, %p104
    %p106 = scmp.ne.s32.totalorder %s92, %s93
    %p107 = scmp.eq.s32.totalorder %s19, 1
    %p108 = por %p106, %p107
    %p110 = scmp.ne.s32.totalorder %s93, %s109
    %p111 = scmp.eq.s32.totalorder %s19, 0
    %p112 = por %p110, %p111
    %s113 = ssub.s32 %s21, %s28
    %p114 = scmp.eq.s32.totalorder %s113, 0
    %s116 = sadd.s32 %s115, 1
    %s117 = scalar_select %p114, %s115, %s116
    %p120 = pneg %p114
    %p121 = scmp.eq.s32.totalorder %s13, 1
    %p122 = por %p120, %p121
    %p123 = scmp.ne.s32.totalorder %s115, %s118
    %p124 = scmp.eq.s32.totalorder %s13, 0
    %p125 = por %p123, %p124
    %p126 = scmp.ne.s32.totalorder %s115, %s118
    %p127 = scmp.eq.s32.totalorder %s18, 1
    %p128 = por %p126, %p127
    %p129 = scmp.ne.s32.totalorder %s118, %s119
    %p130 = scmp.eq.s32.totalorder %s18, 0
    %p131 = por %p129, %p130
    %p132 = scmp.ne.s32.totalorder %s118, %s119
    %p133 = scmp.eq.s32.totalorder %s19, 1
    %p134 = por %p132, %p133
    %p136 = scmp.ne.s32.totalorder %s119, %s135
    %p137 = scmp.eq.s32.totalorder %s19, 0
    %p138 = por %p136, %p137
    %s139 = ssub.s32 %s20, %s32
    %s140 = ssub.s32 %s21, %s28
    %s141 = sor.u32 %s139, %s140
    %p142 = scmp.eq.s32.totalorder %s141, 0
    %s144 = sadd.s32 %s143, 1
    %s145 = scalar_select %p142, %s143, %s144
    %p148 = pneg %p142
    %p149 = scmp.eq.s32.totalorder %s13, 1
    %p150 = por %p148, %p149
    %p151 = scmp.ne.s32.totalorder %s143, %s146
    %p152 = scmp.eq.s32.totalorder %s13, 0
    %p153 = por %p151, %p152
    %p154 = scmp.ne.s32.totalorder %s143, %s146
    %p155 = scmp.eq.s32.totalorder %s18, 1
    %p156 = por %p154, %p155
    %p157 = scmp.ne.s32.totalorder %s146, %s147
    %p158 = scmp.eq.s32.totalorder %s18, 0
    %p159 = por %p157, %p158
    %p160 = scmp.ne.s32.totalorder %s146, %s147
    %p161 = scmp.eq.s32.totalorder %s19, 1
    %p162 = por %p160, %p161
    %p164 = scmp.ne.s32.totalorder %s147, %s163
    %p165 = scmp.eq.s32.totalorder %s19, 0
    %p166 = por %p164, %p165
    %s168 = sadd.s32 %s167, 1
    %p171 = scmp.eq.s32.totalorder %s13, 1
    %p172 = scmp.ne.s32.totalorder %s167, %s169
    %p173 = scmp.eq.s32.totalorder %s13, 0
    %p174 = por %p172, %p173
    %p175 = scmp.ne.s32.totalorder %s167, %s169
    %p176 = scmp.eq.s32.totalorder %s18, 1
    %p177 = por %p175, %p176
    %p178 = scmp.ne.s32.totalorder %s169, %s170
    %p179 = scmp.eq.s32.totalorder %s18, 0
    %p180 = por %p178, %p179
    %p181 = scmp.ne.s32.totalorder %s169, %s170
    %p182 = scmp.eq.s32.totalorder %s19, 1
    %p183 = por %p181, %p182
    %p185 = scmp.ne.s32.totalorder %s170, %s184
    %p186 = scmp.eq.s32.totalorder %s19, 0
    %p187 = por %p185, %p186
    %s189 = sadd.s32 %s188, 1
    %p192 = scmp.eq.s32.totalorder %s13, 1
    %p193 = scmp.ne.s32.totalorder %s188, %s190
    %p194 = scmp.eq.s32.totalorder %s13, 0
    %p195 = por %p193, %p194
    %p196 = scmp.ne.s32.totalorder %s188, %s190
    %p197 = scmp.eq.s32.totalorder %s18, 1
    %p198 = por %p196, %p197
    %p199 = scmp.ne.s32.totalorder %s190, %s191
    %p200 = scmp.eq.s32.totalorder %s18, 0
    %p201 = por %p199, %p200
    %p202 = scmp.ne.s32.totalorder %s190, %s191
    %p203 = scmp.eq.s32.totalorder %s19, 1
    %p204 = por %p202, %p203
    %p206 = scmp.ne.s32.totalorder %s191, %s205
    %p207 = scmp.eq.s32.totalorder %s19, 0
    %p208 = por %p206, %p207
    %s209 = ssub.s32 %s20, %s32
    %s210 = ssub.s32 %s21, %s28
    %s211 = sor.u32 %s209, %s210
    %p212 = scmp.eq.s32.totalorder %s211, 0
    %s214 = sadd.s32 %s213, 1
    %s215 = scalar_select %p212, %s213, %s214
    %p218 = pneg %p212
    %p219 = scmp.eq.s32.totalorder %s13, 1
    %p220 = por %p218, %p219
    %p221 = scmp.ne.s32.totalorder %s213, %s216
    %p222 = scmp.eq.s32.totalorder %s13, 0
    %p223 = por %p221, %p222
    %p224 = scmp.ne.s32.totalorder %s213, %s216
    %p225 = scmp.eq.s32.totalorder %s18, 1
    %p226 = por %p224, %p225
    %p227 = scmp.ne.s32.totalorder %s216, %s217
    %p228 = scmp.eq.s32.totalorder %s18, 0
    %p229 = por %p227, %p228
    %p230 = scmp.ne.s32.totalorder %s216, %s217
    %p231 = scmp.eq.s32.totalorder %s19, 1
    %p232 = por %p230, %p231
    %p234 = scmp.ne.s32.totalorder %s217, %s233
    %p235 = scmp.eq.s32.totalorder %s19, 0
    %p236 = por %p234, %p235
    %p237 = scmp.le.s32.totalorder 1, %s13
    %p238 = scmp.lt.s32.totalorder %s13, 3
    %p239 = pnand %p237, %p238
    %p240 = pneg %p239
    // Predicated region
    $region9: #{decoder_layer.7} parent=5 // pred_check
      _
    $region10: #{decoder_layer.7} parent=5 // pred_check_branch
      %242 = sbr.rel (%p239) target = $region12
    $region11: #{decoder_layer.7} parent=5 // pred_region
      %s243 = ssub.s32 %s13, 1
      // Predicated region
      $region13: #{decoder_layer.7} parent=11 // pred_check
        %p244 = pneg %p131
      $region14: #{decoder_layer.7} parent=11 // pred_check_branch
        %246 = sbr.rel (%p244) target = $region16
      $region15: #{decoder_layer.7} parent=11 // pred_region
        %p247 = scmp.lt.s32.totalorder %s23, 0
        %s248 = scalar_select %p247, %s23, 0
        %s249 = smul.addr %s248, 8
        %s250 = scalar_lea.vmem %s3, %s249
      $region16: #{decoder_layer.7} parent=11 // pred_fallthru
        _
      // Predicated region
      $region17: #{decoder_layer.7} parent=11 // pred_check
        %p251 = pneg %p180
      $region18: #{decoder_layer.7} parent=11 // pred_check_branch
        %253 = sbr.rel (%p251) target = $region20
      $region19: #{decoder_layer.7} parent=11 // pred_region
        _
      $region20: #{decoder_layer.7} parent=11 // pred_fallthru
        _
      // Predicated region
      $region21: #{decoder_layer.7} parent=11 // pred_check
        %p254 = pneg %p201
      $region22: #{decoder_layer.7} parent=11 // pred_check_branch
        %256 = sbr.rel (%p254) target = $region24
      $region23: #{decoder_layer.7} parent=11 // pred_region
        _
      $region24: #{decoder_layer.7} parent=11 // pred_fallthru
        _
    $region12: #{decoder_layer.7} parent=5 // pred_fallthru
      _
    %p257 = scmp.lt.s32.totalorder %s13, 2
    // Predicated region
    $region25: #{decoder_layer.7} parent=5 // pred_check
      %p258 = pneg %p257
    $region26: #{decoder_layer.7} parent=5 // pred_check_branch
      %260 = sbr.rel (%p258) target = $region28
    $region27: #{decoder_layer.7} parent=5 // pred_region
      // Predicated region
      $region29: #{decoder_layer.7} parent=27 // pred_check
        %p261 = pneg %p47
      $region30: #{decoder_layer.7} parent=27 // pred_check_branch
        %263 = sbr.rel (%p261) target = $region32
      $region31: #{decoder_layer.7} parent=27 // pred_region
        %p264 = scmp.lt.s32.totalorder %s20, 1
        %s265 = scalar_select %p264, %s20, 1
        %p266 = scmp.lt.s32.totalorder %s21, 0
        %s267 = scalar_select %p266, %s21, 0
        %s268 = sadd.s32 %s267, %s265
        %s269 = smul.addr %s268, 4
        %s270 = scalar_lea.vmem %s0, %s269
      $region32: #{decoder_layer.7} parent=27 // pred_fallthru
        _
      // Predicated region
      $region33: #{decoder_layer.7} parent=27 // pred_check
        %p271 = pneg %p73
      $region34: #{decoder_layer.7} parent=27 // pred_check_branch
        %273 = sbr.rel (%p271) target = $region36
      $region35: #{decoder_layer.7} parent=27 // pred_region
        %p274 = scmp.lt.s32.totalorder %s20, 1
        %s275 = scalar_select %p274, %s20, 1
        %s276 = smul.addr %s275, 4
        %s277 = scalar_lea.vmem %s1, %s276
      $region36: #{decoder_layer.7} parent=27 // pred_fallthru
        _
      // Predicated region
      $region37: #{decoder_layer.7} parent=27 // pred_check
        %p278 = pneg %p99
      $region38: #{decoder_layer.7} parent=27 // pred_check_branch
        %280 = sbr.rel (%p278) target = $region40
      $region39: #{decoder_layer.7} parent=27 // pred_region
        %p281 = scmp.lt.s32.totalorder %s20, 1
        %s282 = scalar_select %p281, %s20, 1
        %s283 = smul.addr %s282, 4
        %s284 = scalar_lea.vmem %s2, %s283
      $region40: #{decoder_layer.7} parent=27 // pred_fallthru
        _
      // Predicated region
      $region41: #{decoder_layer.7} parent=27 // pred_check
        %p285 = pneg %p153
      $region42: #{decoder_layer.7} parent=27 // pred_check_branch
        %287 = sbr.rel (%p285) target = $region44
      $region43: #{decoder_layer.7} parent=27 // pred_region
        %p288 = scmp.lt.s32.totalorder %s20, 1
        %s289 = scalar_select %p288, %s20, 1
        %p290 = scmp.lt.s32.totalorder %s21, 0
        %s291 = scalar_select %p290, %s21, 0
        %s292 = sadd.s32 %s291, %s289
        %s293 = smul.addr %s292, 8
        %s294 = scalar_lea.vmem %s4, %s293
      $region44: #{decoder_layer.7} parent=27 // pred_fallthru
        _
    $region28: #{decoder_layer.7} parent=5 // pred_fallthru
      _
    %p295 = scmp.le.s32.totalorder 1, %s13
    %p296 = scmp.lt.s32.totalorder %s13, 3
    %p297 = pnand %p295, %p296
    %p298 = pneg %p297
    // Predicated region
    $region45: #{decoder_layer.7} parent=5 // pred_check
      _
    $region46: #{decoder_layer.7} parent=5 // pred_check_branch
      %300 = sbr.rel (%p297) target = $region48
    $region47: #{decoder_layer.7} parent=5 // pred_region
      %s301 = ssub.s32 %s13, 1
      %p302 = scmp.lt.s32.totalorder %s22, 1
      %s303 = scalar_select %p302, %s22, 1
      %p304 = scmp.lt.s32.totalorder %s23, 0
      %s305 = scalar_select %p304, %s23, 0
      %s306 = sadd.s32 %s305, %s303
      %s307 = smul.addr %s306, 4
      %s308 = scalar_lea.vmem %s0, %s307
      %p309 = pneg %p53
      %p310 = pneg %p50
      %p311 = scmp.lt.s32.totalorder %s22, 1
      %s312 = scalar_select %p311, %s22, 1
      %s313 = smul.addr %s312, 4
      %s314 = scalar_lea.vmem %s1, %s313
      %p315 = pneg %p79
      %p316 = pneg %p76
      %p317 = scmp.lt.s32.totalorder %s22, 1
      %s318 = scalar_select %p317, %s22, 1
      %s319 = smul.addr %s318, 4
      %s320 = scalar_lea.vmem %s2, %s319
      %p321 = pneg %p105
      %p322 = pneg %p102
      %p323 = scmp.lt.s32.totalorder %s23, 0
      %s324 = scalar_select %p323, %s23, 0
      %s325 = smul.addr %s324, 8
      %s326 = scalar_lea.vmem %s3, %s325
      %p327 = pneg %p131
      %p328 = pneg %p128
      %p329 = scmp.lt.s32.totalorder %s22, 1
      %s330 = scalar_select %p329, %s22, 1
      %p331 = scmp.lt.s32.totalorder %s23, 0
      %s332 = scalar_select %p331, %s23, 0
      %s333 = sadd.s32 %s332, %s330
      %s334 = smul.addr %s333, 8
      %s335 = scalar_lea.vmem %s4, %s334
      %p336 = pneg %p159
      %p337 = pneg %p156
      %p338 = pneg %p180
      %p339 = pneg %p177
      %p340 = pneg %p201
      %p341 = pneg %p198
      %p342 = pneg %p229
      %p343 = pneg %p226
      %p344 = scmp.lt.s32.totalorder %s22, 1
      %s345 = scalar_select %p344, %s22, 1
      %p346 = scmp.lt.s32.totalorder %s23, 0
      %s347 = scalar_select %p346, %s23, 0
      %s348 = sadd.s32 %s347, %s345
      %s349 = smul.addr %s348, 8
      %s350 = scalar_lea.vmem %s7, %s349
      %p351 = scmp.lt.s32.totalorder %s22, 1
      %s352 = scalar_select %p351, %s22, 1
      %p353 = scmp.lt.s32.totalorder %s23, 0
      %s354 = scalar_select %p353, %s23, 0
      %s355 = sadd.s32 %s354, %s352
      %s356 = smul.addr %s355, 4
      %s357 = scalar_lea.vmem %s0, %s356
      %p358 = scmp.lt.s32.totalorder %s22, 1
      %s359 = scalar_select %p358, %s22, 1
      %s360 = smul.addr %s359, 4
      %s361 = scalar_lea.vmem %s1, %s360
      %p362 = scmp.lt.s32.totalorder %s22, 1
      %s363 = scalar_select %p362, %s22, 1
      %s364 = smul.addr %s363, 4
      %s365 = scalar_lea.vmem %s2, %s364
      %p366 = scmp.lt.s32.totalorder %s23, 0
      %s367 = scalar_select %p366, %s23, 0
      %s368 = smul.addr %s367, 8
      %s369 = scalar_lea.vmem %s3, %s368
      %p370 = scmp.lt.s32.totalorder %s22, 1
      %s371 = scalar_select %p370, %s22, 1
      %p372 = scmp.lt.s32.totalorder %s23, 0
      %s373 = scalar_select %p372, %s23, 0
      %s374 = sadd.s32 %s373, %s371
      %s375 = smul.addr %s374, 8
      %s376 = scalar_lea.vmem %s4, %s375
      %p377 = scmp.lt.s32.totalorder %s22, 1
      %s378 = scalar_select %p377, %s22, 1
      %p379 = scmp.lt.s32.totalorder %s23, 0
      %s380 = scalar_select %p379, %s23, 0
      %s381 = sadd.s32 %s380, %s378
      %s382 = smul.addr %s381, 8
      %s383 = scalar_lea.vmem %s7, %s382
      %v385 = vld [vmem:[%s357] sm:$0xf]
      %v386 = vunpack.c.l.bf16 %v385
      %v387 = vmul.f32 %v386, 0.35355338
      %v388 = vpack.c.bf16 %v387, %v387
      %v389 = vld [vmem:[%s361] sm:$0xf]
      %v390 = vld [vmem:[%s365] sm:$0xf]
      %v391 = vld [vmem:[%s5] sm:$0xf]
      %v392 = vld [vmem:[%s5 + $0x4] sm:$0xf]
      %v393 = vld [vmem:[%s5 + $0x8] sm:$0xf]
      %v394 = vld [vmem:[%s5 + $0xc] sm:$0xf]
      %v395 = vld [vmem:[%s369] sm:$0xff]
      %vm396 = vcmp.eq.s32.totalorder %v395, 0
      %v397 = vsel %vm396, -1e+09, 0.0
      %vm398 = vcmask 64512
      %v400 = vsel %vm398, %v388, 0
      %v403 = vsel %vm398, %v389, 0
      %405 = vmatprep.subr.bf16.mxu0 0
      %406 = vmatpush1.bf16.xpose.msra.mxu0 %v403
      %407 = vmatprep.subr.bf16.mxu0 0
      %408 = vmatpush1.bf16.xpose.msra.mxu0 0
      %409 = vmatprep.subr.bf16.mxu0 0
      %410 = vmatpush1.bf16.xpose.msra.mxu0 0
      %411 = vmatprep.subr.bf16.mxu0 0
      %412 = vmatpush1.bf16.xpose.msra.mxu0 0
      %413 = vmatprep.subr.bf16.mxu0 0
      %414 = vmatpush1.bf16.xpose.msra.mxu0 0
      %415 = vmatprep.subr.bf16.mxu0 0
      %416 = vmatpush1.bf16.xpose.msra.mxu0 0
      %417 = vmatprep.subr.bf16.mxu0 0
      %418 = vmatpush1.bf16.xpose.msra.mxu0 0
      %419 = vmatprep.subr.bf16.mxu0 0
      %420 = vmatpush1.bf16.xpose.msra.mxu0 0
      %421 = vmatprep.subr.bf16.mxu0 0
      %422 = vmatpush1.bf16.xpose.msra.mxu0 0
      %423 = vmatprep.subr.bf16.mxu0 0
      %424 = vmatpush1.bf16.xpose.msra.mxu0 0
      %425 = vmatprep.subr.bf16.mxu0 0
      %426 = vmatpush1.bf16.xpose.msra.mxu0 0
      %427 = vmatprep.subr.bf16.mxu0 0
      %428 = vmatpush1.bf16.xpose.msra.mxu0 0
      %429 = vmatprep.subr.bf16.mxu0 0
      %430 = vmatpush1.bf16.xpose.msra.mxu0 0
      %431 = vmatprep.subr.bf16.mxu0 0
      %432 = vmatpush1.bf16.xpose.msra.mxu0 0
      %433 = vmatprep.subr.bf16.mxu0 0
      %434 = vmatpush1.bf16.xpose.msra.mxu0 0
      %435 = vmatprep.subr.bf16.mxu0 0
      %436 = vmatpush1.bf16.xpose.msra.mxu0 0
      %437 = vmatprep.mubr.bf16.mxu0 0
      %438 = vmatmul.mubr.bf16.gmra.mrb[0].mxu0 %v400
      %v439 = vpop.f32.mrb[0].mxu0
      %v440 = vadd.f32 %v397, %v439
      %v441 = vpop.f32.mrb[0].mxu0
      %v442 = vpop.f32.mrb[0].mxu0
      %v443 = vpop.f32.mrb[0].mxu0
      %444 = vdwg.mxu0
      %v445 = vsel %vm398, %v440, -inf
      %446 = vmax.xlane.f32.xlu0 %v445
      %v447 = vpop.xlane.xlu0 %446
      %v448 = vsub.f32 %v440, %v447
      %v449 = vmul.f32 %v448, 1.442695
      %v450 = vpow.pop %v449
      %v451 = vsel %vm398, %v450, 0.0
      %452 = vadd.xlane.f32.xlu0 %v451
      %v453 = vpop.xlane.xlu0 %452
      %v454 = vrcp.pop %v453
      %v455 = vmul.f32 %v450, %v454
      %v456 = vpack.c.bf16 %v455, %v455
      %v458 = vsel %vm398, %v456, 0
      %vm460 = vcmask 1043456
      %v462 = vsel %vm460, %v390, 0
      %464 = vmatprep.subr.bf16.mxu0 0
      %465 = vmatpush1.bf16.msra.mxu0 %v462
      %466 = vmatprep.subr.bf16.mxu0 0
      %467 = vmatpush1.bf16.msra.mxu0 0
      %468 = vmatprep.subr.bf16.mxu0 0
      %469 = vmatpush1.bf16.msra.mxu0 0
      %470 = vmatprep.subr.bf16.mxu0 0
      %471 = vmatpush1.bf16.msra.mxu0 0
      %472 = vmatprep.subr.bf16.mxu0 0
      %473 = vmatpush1.bf16.msra.mxu0 0
      %474 = vmatprep.subr.bf16.mxu0 0
      %475 = vmatpush1.bf16.msra.mxu0 0
      %476 = vmatprep.subr.bf16.mxu0 0
      %477 = vmatpush1.bf16.msra.mxu0 0
      %478 = vmatprep.subr.bf16.mxu0 0
      %479 = vmatpush1.bf16.msra.mxu0 0
      %480 = vmatprep.subr.bf16.mxu0 0
      %481 = vmatpush1.bf16.msra.mxu0 0
      %482 = vmatprep.subr.bf16.mxu0 0
      %483 = vmatpush1.bf16.msra.mxu0 0
      %484 = vmatprep.subr.bf16.mxu0 0
      %485 = vmatpush1.bf16.msra.mxu0 0
      %486 = vmatprep.subr.bf16.mxu0 0
      %487 = vmatpush1.bf16.msra.mxu0 0
      %488 = vmatprep.subr.bf16.mxu0 0
      %489 = vmatpush1.bf16.msra.mxu0 0
      %490 = vmatprep.subr.bf16.mxu0 0
      %491 = vmatpush1.bf16.msra.mxu0 0
      %492 = vmatprep.subr.bf16.mxu0 0
      %493 = vmatpush1.bf16.msra.mxu0 0
      %494 = vmatprep.subr.bf16.mxu0 0
      %495 = vmatpush1.bf16.msra.mxu0 0
      %496 = vmatprep.mubr.bf16.mxu0 0
      %497 = vmatmul.mubr.bf16.gmra.mrb[0].mxu0 %v458
      %v498 = vpop.f32.mrb[0].mxu0
      %v499 = vadd.f32 0.0, %v498
      %v500 = vpop.f32.mrb[0].mxu0
      %v501 = vpop.f32.mrb[0].mxu0
      %v502 = vpop.f32.mrb[0].mxu0
      %503 = vdwg.mxu0
      %v504 = vpack.c.bf16 %v499, %v499
      %506 = vrot.lane.b32.xlu0 %v388, 120
      %v507 = vpop.permute.xlu0 %506
      %v509 = vunpack.c.l.b16 %v389
      %v510 = vpack.c.b16 %v509, %v509
      %511 = vrot.lane.b32.xlu0 %v510, 120
      %v512 = vpop.permute.xlu0 %511
      %v514 = vsel %vm398, %v507, 0
      %v517 = vsel %vm398, %v512, 0
      %519 = vmatprep.subr.bf16.mxu0 0
      %520 = vmatpush1.bf16.xpose.msra.mxu0 %v517
      %521 = vmatprep.subr.bf16.mxu0 0
      %522 = vmatpush1.bf16.xpose.msra.mxu0 0
      %523 = vmatprep.subr.bf16.mxu0 0
      %524 = vmatpush1.bf16.xpose.msra.mxu0 0
      %525 = vmatprep.subr.bf16.mxu0 0
      %526 = vmatpush1.bf16.xpose.msra.mxu0 0
      %527 = vmatprep.subr.bf16.mxu0 0
      %528 = vmatpush1.bf16.xpose.msra.mxu0 0
      %529 = vmatprep.subr.bf16.mxu0 0
      %530 = vmatpush1.bf16.xpose.msra.mxu0 0
      %531 = vmatprep.subr.bf16.mxu0 0
      %532 = vmatpush1.bf16.xpose.msra.mxu0 0
      %533 = vmatprep.subr.bf16.mxu0 0
      %534 = vmatpush1.bf16.xpose.msra.mxu0 0
      %535 = vmatprep.subr.bf16.mxu0 0
      %536 = vmatpush1.bf16.xpose.msra.mxu0 0
      %537 = vmatprep.subr.bf16.mxu0 0
      %538 = vmatpush1.bf16.xpose.msra.mxu0 0
      %539 = vmatprep.subr.bf16.mxu0 0
      %540 = vmatpush1.bf16.xpose.msra.mxu0 0
      %541 = vmatprep.subr.bf16.mxu0 0
      %542 = vmatpush1.bf16.xpose.msra.mxu0 0
      %543 = vmatprep.subr.bf16.mxu0 0
      %544 = vmatpush1.bf16.xpose.msra.mxu0 0
      %545 = vmatprep.subr.bf16.mxu0 0
      %546 = vmatpush1.bf16.xpose.msra.mxu0 0
      %547 = vmatprep.subr.bf16.mxu0 0
      %548 = vmatpush1.bf16.xpose.msra.mxu0 0
      %549 = vmatprep.subr.bf16.mxu0 0
      %550 = vmatpush1.bf16.xpose.msra.mxu0 0
      %551 = vmatprep.mubr.bf16.mxu0 0
      %552 = vmatmul.mubr.bf16.gmra.mrb[0].mxu0 %v514
      %v553 = vpop.f32.mrb[0].mxu0
      %v554 = vadd.f32 %v397, %v553
      %v555 = vpop.f32.mrb[0].mxu0
      %v556 = vpop.f32.mrb[0].mxu0
      %v557 = vpop.f32.mrb[0].mxu0
      %558 = vdwg.mxu0
      %v559 = vsel %vm398, %v554, -inf
      %560 = vmax.xlane.f32.xlu0 %v559
      %v561 = vpop.xlane.xlu0 %560
      %v562 = vsub.f32 %v554, %v561
      %v563 = vmul.f32 %v562, 1.442695
      %v564 = vpow.pop %v563
      %v565 = vsel %vm398, %v564, 0.0
      %566 = vadd.xlane.f32.xlu0 %v565
      %v567 = vpop.xlane.xlu0 %566
      %v568 = vrcp.pop %v567
      %v569 = vmul.f32 %v564, %v568
      %v570 = vpack.c.bf16 %v569, %v569
      %v572 = vunpack.c.l.b16 %v390
      %v573 = vpack.c.b16 %v572, %v572
      %574 = vrot.lane.b32.xlu0 %v573, 120
      %v575 = vpop.permute.xlu0 %574
      %v577 = vsel %vm398, %v570, 0
      %v580 = vsel %vm460, %v575, 0
      %582 = vmatprep.subr.bf16.mxu0 0
      %583 = vmatpush1.bf16.msra.mxu0 %v580
      %584 = vmatprep.subr.bf16.mxu0 0
      %585 = vmatpush1.bf16.msra.mxu0 0
      %586 = vmatprep.subr.bf16.mxu0 0
      %587 = vmatpush1.bf16.msra.mxu0 0
      %588 = vmatprep.subr.bf16.mxu0 0
      %589 = vmatpush1.bf16.msra.mxu0 0
      %590 = vmatprep.subr.bf16.mxu0 0
      %591 = vmatpush1.bf16.msra.mxu0 0
      %592 = vmatprep.subr.bf16.mxu0 0
      %593 = vmatpush1.bf16.msra.mxu0 0
      %594 = vmatprep.subr.bf16.mxu0 0
      %595 = vmatpush1.bf16.msra.mxu0 0
      %596 = vmatprep.subr.bf16.mxu0 0
      %597 = vmatpush1.bf16.msra.mxu0 0
      %598 = vmatprep.subr.bf16.mxu0 0
      %599 = vmatpush1.bf16.msra.mxu0 0
      %600 = vmatprep.subr.bf16.mxu0 0
      %601 = vmatpush1.bf16.msra.mxu0 0
      %602 = vmatprep.subr.bf16.mxu0 0
      %603 = vmatpush1.bf16.msra.mxu0 0
      %604 = vmatprep.subr.bf16.mxu0 0
      %605 = vmatpush1.bf16.msra.mxu0 0
      %606 = vmatprep.subr.bf16.mxu0 0
      %607 = vmatpush1.bf16.msra.mxu0 0
      %608 = vmatprep.subr.bf16.mxu0 0
      %609 = vmatpush1.bf16.msra.mxu0 0
      %610 = vmatprep.subr.bf16.mxu0 0
      %611 = vmatpush1.bf16.msra.mxu0 0
      %612 = vmatprep.subr.bf16.mxu0 0
      %613 = vmatpush1.bf16.msra.mxu0 0
      %614 = vmatprep.mubr.bf16.mxu0 0
      %615 = vmatmul.mubr.bf16.gmra.mrb[0].mxu0 %v577
      %v616 = vpop.f32.mrb[0].mxu0
      %v617 = vadd.f32 0.0, %v616
      %v618 = vpop.f32.mrb[0].mxu0
      %v619 = vpop.f32.mrb[0].mxu0
      %v620 = vpop.f32.mrb[0].mxu0
      %621 = vdwg.mxu0
      %v622 = vpack.c.bf16 %v617, %v617
      %v624 = vsel %vm398, %v622, 0
      %v627 = vsel %vm460, %v392, 0
      %629 = vmatprep.subr.bf16.mxu0 0
      %630 = vmatpush1.bf16.msra.mxu0 %v627
      %631 = vmatprep.subr.bf16.mxu0 0
      %632 = vmatpush1.bf16.msra.mxu0 0
      %633 = vmatprep.subr.bf16.mxu0 0
      %634 = vmatpush1.bf16.msra.mxu0 0
      %635 = vmatprep.subr.bf16.mxu0 0
      %636 = vmatpush1.bf16.msra.mxu0 0
      %637 = vmatprep.subr.bf16.mxu0 0
      %638 = vmatpush1.bf16.msra.mxu0 0
      %639 = vmatprep.subr.bf16.mxu0 0
      %640 = vmatpush1.bf16.msra.mxu0 0
      %641 = vmatprep.subr.bf16.mxu0 0
      %642 = vmatpush1.bf16.msra.mxu0 0
      %643 = vmatprep.subr.bf16.mxu0 0
      %644 = vmatpush1.bf16.msra.mxu0 0
      %645 = vmatprep.subr.bf16.mxu0 0
      %646 = vmatpush1.bf16.msra.mxu0 0
      %647 = vmatprep.subr.bf16.mxu0 0
      %648 = vmatpush1.bf16.msra.mxu0 0
      %649 = vmatprep.subr.bf16.mxu0 0
      %650 = vmatpush1.bf16.msra.mxu0 0
      %651 = vmatprep.subr.bf16.mxu0 0
      %652 = vmatpush1.bf16.msra.mxu0 0
      %653 = vmatprep.subr.bf16.mxu0 0
      %654 = vmatpush1.bf16.msra.mxu0 0
      %655 = vmatprep.subr.bf16.mxu0 0
      %656 = vmatpush1.bf16.msra.mxu0 0
      %657 = vmatprep.subr.bf16.mxu0 0
      %658 = vmatpush1.bf16.msra.mxu0 0
      %659 = vmatprep.subr.bf16.mxu0 0
      %660 = vmatpush1.bf16.msra.mxu0 0
      %661 = vmatprep.mubr.bf16.mxu0 0
      %662 = vmatmul.mubr.bf16.gmra.mrb[0].mxu0 %v624
      %v663 = vpop.f32.mrb[0].mxu0
      %v664 = vadd.f32 0.0, %v663
      %v665 = vpop.f32.mrb[0].mxu0
      %v666 = vpop.f32.mrb[0].mxu0
      %v667 = vpop.f32.mrb[0].mxu0
      %668 = vdwg.mxu0
      %v670 = vsel %vm398, %v504, 0
      %v673 = vsel %vm460, %v391, 0
      %675 = vmatprep.subr.bf16.mxu0 0
      %676 = vmatpush1.bf16.msra.mxu0 %v673
      %677 = vmatprep.subr.bf16.mxu0 0
      %678 = vmatpush1.bf16.msra.mxu0 0
      %679 = vmatprep.subr.bf16.mxu0 0
      %680 = vmatpush1.bf16.msra.mxu0 0
      %681 = vmatprep.subr.bf16.mxu0 0
      %682 = vmatpush1.bf16.msra.mxu0 0
      %683 = vmatprep.subr.bf16.mxu0 0
      %684 = vmatpush1.bf16.msra.mxu0 0
      %685 = vmatprep.subr.bf16.mxu0 0
      %686 = vmatpush1.bf16.msra.mxu0 0
      %687 = vmatprep.subr.bf16.mxu0 0
      %688 = vmatpush1.bf16.msra.mxu0 0
      %689 = vmatprep.subr.bf16.mxu0 0
      %690 = vmatpush1.bf16.msra.mxu0 0
      %691 = vmatprep.subr.bf16.mxu0 0
      %692 = vmatpush1.bf16.msra.mxu0 0
      %693 = vmatprep.subr.bf16.mxu0 0
      %694 = vmatpush1.bf16.msra.mxu0 0
      %695 = vmatprep.subr.bf16.mxu0 0
      %696 = vmatpush1.bf16.msra.mxu0 0
      %697 = vmatprep.subr.bf16.mxu0 0
      %698 = vmatpush1.bf16.msra.mxu0 0
      %699 = vmatprep.subr.bf16.mxu0 0
      %700 = vmatpush1.bf16.msra.mxu0 0
      %701 = vmatprep.subr.bf16.mxu0 0
      %702 = vmatpush1.bf16.msra.mxu0 0
      %703 = vmatprep.subr.bf16.mxu0 0
      %704 = vmatpush1.bf16.msra.mxu0 0
      %705 = vmatprep.subr.bf16.mxu0 0
      %706 = vmatpush1.bf16.msra.mxu0 0
      %707 = vmatprep.mubr.bf16.mxu0 0
      %708 = vmatmul.mubr.bf16.gmra.mrb[0].mxu0 %v670
      %v709 = vpop.f32.mrb[0].mxu0
      %v710 = vadd.f32 %v664, %v709
      %v711 = vpop.f32.mrb[0].mxu0
      %v712 = vpop.f32.mrb[0].mxu0
      %v713 = vpop.f32.mrb[0].mxu0
      %714 = vdwg.mxu0
      %715 = vrot.lane.b32.xlu0 %v388, 112
      %v716 = vpop.permute.xlu0 %715
      %717 = vrot.lane.b32.xlu0 %v510, 112
      %v718 = vpop.permute.xlu0 %717
      %v720 = vsel %vm398, %v716, 0
      %v723 = vsel %vm398, %v718, 0
      %725 = vmatprep.subr.bf16.mxu0 0
      %726 = vmatpush1.bf16.xpose.msra.mxu0 %v723
      %727 = vmatprep.subr.bf16.mxu0 0
      %728 = vmatpush1.bf16.xpose.msra.mxu0 0
      %729 = vmatprep.subr.bf16.mxu0 0
      %730 = vmatpush1.bf16.xpose.msra.mxu0 0
      %731 = vmatprep.subr.bf16.mxu0 0
      %732 = vmatpush1.bf16.xpose.msra.mxu0 0
      %733 = vmatprep.subr.bf16.mxu0 0
      %734 = vmatpush1.bf16.xpose.msra.mxu0 0
      %735 = vmatprep.subr.bf16.mxu0 0
      %736 = vmatpush1.bf16.xpose.msra.mxu0 0
      %737 = vmatprep.subr.bf16.mxu0 0
      %738 = vmatpush1.bf16.xpose.msra.mxu0 0
      %739 = vmatprep.subr.bf16.mxu0 0
      %740 = vmatpush1.bf16.xpose.msra.mxu0 0
      %741 = vmatprep.subr.bf16.mxu0 0
      %742 = vmatpush1.bf16.xpose.msra.mxu0 0
      %743 = vmatprep.subr.bf16.mxu0 0
      %744 = vmatpush1.bf16.xpose.msra.mxu0 0
      %745 = vmatprep.subr.bf16.mxu0 0
      %746 = vmatpush1.bf16.xpose.msra.mxu0 0
      %747 = vmatprep.subr.bf16.mxu0 0
      %748 = vmatpush1.bf16.xpose.msra.mxu0 0
      %749 = vmatprep.subr.bf16.mxu0 0
      %750 = vmatpush1.bf16.xpose.msra.mxu0 0
      %751 = vmatprep.subr.bf16.mxu0 0
      %752 = vmatpush1.bf16.xpose.msra.mxu0 0
      %753 = vmatprep.subr.bf16.mxu0 0
      %754 = vmatpush1.bf16.xpose.msra.mxu0 0
      %755 = vmatprep.subr.bf16.mxu0 0
      %756 = vmatpush1.bf16.xpose.msra.mxu0 0
      %757 = vmatprep.mubr.bf16.mxu0 0
      %758 = vmatmul.mubr.bf16.gmra.mrb[0].mxu0 %v720
      %v759 = vpop.f32.mrb[0].mxu0
      %v760 = vadd.f32 %v397, %v759
      %v761 = vpop.f32.mrb[0].mxu0
      %v762 = vpop.f32.mrb[0].mxu0
      %v763 = vpop.f32.mrb[0].mxu0
      %764 = vdwg.mxu0
      %v765 = vsel %vm398, %v760, -inf
      %766 = vmax.xlane.f32.xlu0 %v765
      %v767 = vpop.xlane.xlu0 %766
      %v768 = vsub.f32 %v760, %v767
      %v769 = vmul.f32 %v768, 1.442695
      %v770 = vpow.pop %v769
      %v771 = vsel %vm398, %v770, 0.0
      %772 = vadd.xlane.f32.xlu0 %v771
      %v773 = vpop.xlane.xlu0 %772
      %v774 = vrcp.pop %v773
      %v775 = vmul.f32 %v770, %v774
      %v776 = vpack.c.bf16 %v775, %v775
      %777 = vrot.lane.b32.xlu0 %v573, 112
      %v778 = vpop.permute.xlu0 %777
      %v780 = vsel %vm398, %v776, 0
      %v783 = vsel %vm460, %v778, 0
      %785 = vmatprep.subr.bf16.mxu0 0
      %786 = vmatpush1.bf16.msra.mxu0 %v783
      %787 = vmatprep.subr.bf16.mxu0 0
      %788 = vmatpush1.bf16.msra.mxu0 0
      %789 = vmatprep.subr.bf16.mxu0 0
      %790 = vmatpush1.bf16.msra.mxu0 0
      %791 = vmatprep.subr.bf16.mxu0 0
      %792 = vmatpush1.bf16.msra.mxu0 0
      %793 = vmatprep.subr.bf16.mxu0 0
      %794 = vmatpush1.bf16.msra.mxu0 0
      %795 = vmatprep.subr.bf16.mxu0 0
      %796 = vmatpush1.bf16.msra.mxu0 0
      %797 = vmatprep.subr.bf16.mxu0 0
      %798 = vmatpush1.bf16.msra.mxu0 0
      %799 = vmatprep.subr.bf16.mxu0 0
      %800 = vmatpush1.bf16.msra.mxu0 0
      %801 = vmatprep.subr.bf16.mxu0 0
      %802 = vmatpush1.bf16.msra.mxu0 0
      %803 = vmatprep.subr.bf16.mxu0 0
      %804 = vmatpush1.bf16.msra.mxu0 0
      %805 = vmatprep.subr.bf16.mxu0 0
      %806 = vmatpush1.bf16.msra.mxu0 0
      %807 = vmatprep.subr.bf16.mxu0 0
      %808 = vmatpush1.bf16.msra.mxu0 0
      %809 = vmatprep.subr.bf16.mxu0 0
      %810 = vmatpush1.bf16.msra.mxu0 0
      %811 = vmatprep.subr.bf16.mxu0 0
      %812 = vmatpush1.bf16.msra.mxu0 0
      %813 = vmatprep.subr.bf16.mxu0 0
      %814 = vmatpush1.bf16.msra.mxu0 0
      %815 = vmatprep.subr.bf16.mxu0 0
      %816 = vmatpush1.bf16.msra.mxu0 0
      %817 = vmatprep.mubr.bf16.mxu0 0
      %818 = vmatmul.mubr.bf16.gmra.mrb[0].mxu0 %v780
      %v819 = vpop.f32.mrb[0].mxu0
      %v820 = vadd.f32 0.0, %v819
      %v821 = vpop.f32.mrb[0].mxu0
      %v822 = vpop.f32.mrb[0].mxu0
      %v823 = vpop.f32.mrb[0].mxu0
      %824 = vdwg.mxu0
      %v825 = vpack.c.bf16 %v820, %v820
      %v827 = vsel %vm398, %v825, 0
      %v830 = vsel %vm460, %v393, 0
      %832 = vmatprep.subr.bf16.mxu0 0
      %833 = vmatpush1.bf16.msra.mxu0 %v830
      %834 = vmatprep.subr.bf16.mxu0 0
      %835 = vmatpush1.bf16.msra.mxu0 0
      %836 = vmatprep.subr.bf16.mxu0 0
      %837 = vmatpush1.bf16.msra.mxu0 0
      %838 = vmatprep.subr.bf16.mxu0 0
      %839 = vmatpush1.bf16.msra.mxu0 0
      %840 = vmatprep.subr.bf16.mxu0 0
      %841 = vmatpush1.bf16.msra.mxu0 0
      %842 = vmatprep.subr.bf16.mxu0 0
      %843 = vmatpush1.bf16.msra.mxu0 0
      %844 = vmatprep.subr.bf16.mxu0 0
      %845 = vmatpush1.bf16.msra.mxu0 0
      %846 = vmatprep.subr.bf16.mxu0 0
      %847 = vmatpush1.bf16.msra.mxu0 0
      %848 = vmatprep.subr.bf16.mxu0 0
      %849 = vmatpush1.bf16.msra.mxu0 0
      %850 = vmatprep.subr.bf16.mxu0 0
      %851 = vmatpush1.bf16.msra.mxu0 0
      %852 = vmatprep.subr.bf16.mxu0 0
      %853 = vmatpush1.bf16.msra.mxu0 0
      %854 = vmatprep.subr.bf16.mxu0 0
      %855 = vmatpush1.bf16.msra.mxu0 0
      %856 = vmatprep.subr.bf16.mxu0 0
      %857 = vmatpush1.bf16.msra.mxu0 0
      %858 = vmatprep.subr.bf16.mxu0 0
      %859 = vmatpush1.bf16.msra.mxu0 0
      %860 = vmatprep.subr.bf16.mxu0 0
      %861 = vmatpush1.bf16.msra.mxu0 0
      %862 = vmatprep.subr.bf16.mxu0 0
      %863 = vmatpush1.bf16.msra.mxu0 0
      %864 = vmatprep.mubr.bf16.mxu0 0
      %865 = vmatmul.mubr.bf16.gmra.mrb[0].mxu0 %v827
      %v866 = vpop.f32.mrb[0].mxu0
      %v867 = vadd.f32 0.0, %v866
      %v868 = vpop.f32.mrb[0].mxu0
      %v869 = vpop.f32.mrb[0].mxu0
      %v870 = vpop.f32.mrb[0].mxu0
      %871 = vdwg.mxu0
      %v872 = vadd.f32 %v710, %v867
      %873 = vrot.lane.b32.xlu0 %v388, 104
      %v874 = vpop.permute.xlu0 %873
      %875 = vrot.lane.b32.xlu0 %v510, 104
      %v876 = vpop.permute.xlu0 %875
      %v878 = vsel %vm398, %v874, 0
      %v881 = vsel %vm398, %v876, 0
      %883 = vmatprep.subr.bf16.mxu0 0
      %884 = vmatpush1.bf16.xpose.msra.mxu0 %v881
      %885 = vmatprep.subr.bf16.mxu0 0
      %886 = vmatpush1.bf16.xpose.msra.mxu0 0
      %887 = vmatprep.subr.bf16.mxu0 0
      %888 = vmatpush1.bf16.xpose.msra.mxu0 0
      %889 = vmatprep.subr.bf16.mxu0 0
      %890 = vmatpush1.bf16.xpose.msra.mxu0 0
      %891 = vmatprep.subr.bf16.mxu0 0
      %892 = vmatpush1.bf16.xpose.msra.mxu0 0
      %893 = vmatprep.subr.bf16.mxu0 0
      %894 = vmatpush1.bf16.xpose.msra.mxu0 0
      %895 = vmatprep.subr.bf16.mxu0 0
      %896 = vmatpush1.bf16.xpose.msra.mxu0 0
      %897 = vmatprep.subr.bf16.mxu0 0
      %898 = vmatpush1.bf16.xpose.msra.mxu0 0
      %899 = vmatprep.subr.bf16.mxu0 0
      %900 = vmatpush1.bf16.xpose.msra.mxu0 0
      %901 = vmatprep.subr.bf16.mxu0 0
      %902 = vmatpush1.bf16.xpose.msra.mxu0 0
      %903 = vmatprep.subr.bf16.mxu0 0
      %904 = vmatpush1.bf16.xpose.msra.mxu0 0
      %905 = vmatprep.subr.bf16.mxu0 0
      %906 = vmatpush1.bf16.xpose.msra.mxu0 0
      %907 = vmatprep.subr.bf16.mxu0 0
      %908 = vmatpush1.bf16.xpose.msra.mxu0 0
      %909 = vmatprep.subr.bf16.mxu0 0
      %910 = vmatpush1.bf16.xpose.msra.mxu0 0
      %911 = vmatprep.subr.bf16.mxu0 0
      %912 = vmatpush1.bf16.xpose.msra.mxu0 0
      %913 = vmatprep.subr.bf16.mxu0 0
      %914 = vmatpush1.bf16.xpose.msra.mxu0 0
      %915 = vmatprep.mubr.bf16.mxu0 0
      %916 = vmatmul.mubr.bf16.gmra.mrb[0].mxu0 %v878
      %v917 = vpop.f32.mrb[0].mxu0
      %v918 = vadd.f32 %v397, %v917
      %v919 = vpop.f32.mrb[0].mxu0
      %v920 = vpop.f32.mrb[0].mxu0
      %v921 = vpop.f32.mrb[0].mxu0
      %922 = vdwg.mxu0
      %v923 = vsel %vm398, %v918, -inf
      %924 = vmax.xlane.f32.xlu0 %v923
      %v925 = vpop.xlane.xlu0 %924
      %v926 = vsub.f32 %v918, %v925
      %v927 = vmul.f32 %v926, 1.442695
      %v928 = vpow.pop %v927
      %v929 = vsel %vm398, %v928, 0.0
      %930 = vadd.xlane.f32.xlu0 %v929
      %v931 = vpop.xlane.xlu0 %930
      %v932 = vrcp.pop %v931
      %v933 = vmul.f32 %v928, %v932
      %v934 = vpack.c.bf16 %v933, %v933
      %935 = vrot.lane.b32.xlu0 %v573, 104
      %v936 = vpop.permute.xlu0 %935
      %v938 = vsel %vm398, %v934, 0
      %v941 = vsel %vm460, %v936, 0
      %943 = vmatprep.subr.bf16.mxu0 0
      %944 = vmatpush1.bf16.msra.mxu0 %v941
      %945 = vmatprep.subr.bf16.mxu0 0
      %946 = vmatpush1.bf16.msra.mxu0 0
      %947 = vmatprep.subr.bf16.mxu0 0
      %948 = vmatpush1.bf16.msra.mxu0 0
      %949 = vmatprep.subr.bf16.mxu0 0
      %950 = vmatpush1.bf16.msra.mxu0 0
      %951 = vmatprep.subr.bf16.mxu0 0
      %952 = vmatpush1.bf16.msra.mxu0 0
      %953 = vmatprep.subr.bf16.mxu0 0
      %954 = vmatpush1.bf16.msra.mxu0 0
      %955 = vmatprep.subr.bf16.mxu0 0
      %956 = vmatpush1.bf16.msra.mxu0 0
      %957 = vmatprep.subr.bf16.mxu0 0
      %958 = vmatpush1.bf16.msra.mxu0 0
      %959 = vmatprep.subr.bf16.mxu0 0
      %960 = vmatpush1.bf16.msra.mxu0 0
      %961 = vmatprep.subr.bf16.mxu0 0
      %962 = vmatpush1.bf16.msra.mxu0 0
      %963 = vmatprep.subr.bf16.mxu0 0
      %964 = vmatpush1.bf16.msra.mxu0 0
      %965 = vmatprep.subr.bf16.mxu0 0
      %966 = vmatpush1.bf16.msra.mxu0 0
      %967 = vmatprep.subr.bf16.mxu0 0
      %968 = vmatpush1.bf16.msra.mxu0 0
      %969 = vmatprep.subr.bf16.mxu0 0
      %970 = vmatpush1.bf16.msra.mxu0 0
      %971 = vmatprep.subr.bf16.mxu0 0
      %972 = vmatpush1.bf16.msra.mxu0 0
      %973 = vmatprep.subr.bf16.mxu0 0
      %974 = vmatpush1.bf16.msra.mxu0 0
      %975 = vmatprep.mubr.bf16.mxu0 0
      %976 = vmatmul.mubr.bf16.gmra.mrb[0].mxu0 %v938
      %v977 = vpop.f32.mrb[0].mxu0
      %v978 = vadd.f32 0.0, %v977
      %v979 = vpop.f32.mrb[0].mxu0
      %v980 = vpop.f32.mrb[0].mxu0
      %v981 = vpop.f32.mrb[0].mxu0
      %982 = vdwg.mxu0
      %v983 = vpack.c.bf16 %v978, %v978
      %v985 = vsel %vm398, %v983, 0
      %v988 = vsel %vm460, %v394, 0
      %990 = vmatprep.subr.bf16.mxu0 0
      %991 = vmatpush1.bf16.msra.mxu0 %v988
      %992 = vmatprep.subr.bf16.mxu0 0
      %993 = vmatpush1.bf16.msra.mxu0 0
      %994 = vmatprep.subr.bf16.mxu0 0
      %995 = vmatpush1.bf16.msra.mxu0 0
      %996 = vmatprep.subr.bf16.mxu0 0
      %997 = vmatpush1.bf16.msra.mxu0 0
      %998 = vmatprep.subr.bf16.mxu0 0
      %999 = vmatpush1.bf16.msra.mxu0 0
      %1000 = vmatprep.subr.bf16.mxu0 0
      %1001 = vmatpush1.bf16.msra.mxu0 0
      %1002 = vmatprep.subr.bf16.mxu0 0
      %1003 = vmatpush1.bf16.msra.mxu0 0
      %1004 = vmatprep.subr.bf16.mxu0 0
      %1005 = vmatpush1.bf16.msra.mxu0 0
      %1006 = vmatprep.subr.bf16.mxu0 0
      %1007 = vmatpush1.bf16.msra.mxu0 0
      %1008 = vmatprep.subr.bf16.mxu0 0
      %1009 = vmatpush1.bf16.msra.mxu0 0
      %1010 = vmatprep.subr.bf16.mxu0 0
      %1011 = vmatpush1.bf16.msra.mxu0 0
      %1012 = vmatprep.subr.bf16.mxu0 0
      %1013 = vmatpush1.bf16.msra.mxu0 0
      %1014 = vmatprep.subr.bf16.mxu0 0
      %1015 = vmatpush1.bf16.msra.mxu0 0
      %1016 = vmatprep.subr.bf16.mxu0 0
      %1017 = vmatpush1.bf16.msra.mxu0 0
      %1018 = vmatprep.subr.bf16.mxu0 0
      %1019 = vmatpush1.bf16.msra.mxu0 0
      %1020 = vmatprep.subr.bf16.mxu0 0
      %1021 = vmatpush1.bf16.msra.mxu0 0
      %1022 = vmatprep.mubr.bf16.mxu0 0
      %1023 = vmatmul.mubr.bf16.gmra.mrb[0].mxu0 %v985
      %v1024 = vpop.f32.mrb[0].mxu0
      %v1025 = vadd.f32 0.0, %v1024
      %v1026 = vpop.f32.mrb[0].mxu0
      %v1027 = vpop.f32.mrb[0].mxu0
      %v1028 = vpop.f32.mrb[0].mxu0
      %1029 = vdwg.mxu0
      %v1030 = vadd.f32 %v872, %v1025
      %v1031 = vld [vmem:[%s376] sm:$0xff]
      %v1032 = vadd.f32 %v1031, %v1030
      %v1033 = vld [vmem:[%s6] sm:$0x1]
      %v1035 = vlaneseq
      %v1036 = vshrl.u32 %v1035, 7
      %v1037 = vsub.s32 0, %v1036
      %v1038 = vrot.slane %v1033, %v1037
      %v1040 = vadd.f32 %v1032, %v1038
      %vm1041 = vcmask 261120
      %1042 = vst.msk [vmem:[%s383] sm:$0xff] %vm1041, %v1040
      %p1043 = scmp.lt.s32.totalorder %s22, 1
      %s1044 = scalar_select %p1043, %s22, 1
      %p1045 = scmp.lt.s32.totalorder %s23, 0
      %s1046 = scalar_select %p1045, %s23, 0
      %s1047 = sadd.s32 %s1046, %s1044
      %s1048 = smul.addr %s1047, 8
      %s1049 = scalar_lea.vmem %s7, %s1048
      // Predicated region
      $region49: #{decoder_layer.7} parent=47 // pred_check
        %p1050 = pneg %p226
      $region50: #{decoder_layer.7} parent=47 // pred_check_branch
        %1052 = sbr.rel (%p1050) target = $region52
      $region51: #{decoder_layer.7} parent=47 // pred_region
        _
      $region52: #{decoder_layer.7} parent=47 // pred_fallthru
        _
    $region48: #{decoder_layer.7} parent=5 // pred_fallthru
      _
    %p1053 = scmp.le.s32.totalorder 2, %s13
    // Predicated region
    $region53: #{decoder_layer.7} parent=5 // pred_check
      %p1054 = pneg %p1053
    $region54: #{decoder_layer.7} parent=5 // pred_check_branch
      %1056 = sbr.rel (%p1054) target = $region56
    $region55: #{decoder_layer.7} parent=5 // pred_region
      %s1057 = ssub.s32 %s13, 2
      // Predicated region
      $region57: #{decoder_layer.7} parent=55 // pred_check
        %p1058 = pneg %p232
      $region58: #{decoder_layer.7} parent=55 // pred_check_branch
        %1060 = sbr.rel (%p1058) target = $region60
      $region59: #{decoder_layer.7} parent=55 // pred_region
        %p1061 = scmp.lt.s32.totalorder %s24, 1
        %s1062 = scalar_select %p1061, %s24, 1
        %p1063 = scmp.lt.s32.totalorder %s25, 0
        %s1064 = scalar_select %p1063, %s25, 0
        %s1065 = sadd.s32 %s1064, %s1062
        %s1066 = smul.addr %s1065, 8
        %s1067 = scalar_lea.vmem %s7, %s1066
      $region60: #{decoder_layer.7} parent=55 // pred_fallthru
        _
    $region56: #{decoder_layer.7} parent=5 // pred_fallthru
      _
  $region6: #{decoder_layer.7} parent=0 // loop_footer
    %s17 = sadd.s32 1, %s13
  $region7: #{decoder_layer.7} parent=0 // loop_footer_branch
    %12 = sbr.rel target = $region3
  $region8: #{decoder_layer.7} parent=0 // loop_exit
    _

// kernel: decoder_layer.11
$region0: #{decoder_layer.11}
  #allocation0 [shape = 'u32[]', space=smem, size = 0x4, offset = 0x4, fixed_abs, tag = 'smem constant byte address 0x4 - core index']
  #allocation1 [shape = 'u32[144,128]{1,0:T(1,128)}', space=vmem, size = 0x12000, scoped, tag = 'internal scratch']
  %s0 = inlined_call_operand.vmem [shape: f32[16,32], index: 0, kind: input, shape index: {}]
  %s1 = inlined_call_operand.vmem [shape: f32[1,32], index: 1, kind: input, shape index: {}]
  %s2 = inlined_call_operand.vmem [shape: f32[1,32], index: 2, kind: input, shape index: {}]
  %s3 = inlined_call_operand.vmem [shape: bf16[32,64], index: 3, kind: input, shape index: {}]
  %s4 = inlined_call_operand.vmem [shape: f32[1,64], index: 4, kind: input, shape index: {}]
  %s5 = inlined_call_operand.vmem [shape: bf16[64,32], index: 5, kind: input, shape index: {}]
  %s6 = inlined_call_operand.vmem [shape: f32[1,32], index: 6, kind: input, shape index: {}]
  %s7 = inlined_call_operand.hbm [shape: f32[16,32], index: 7, kind: output, shape index: {}]
  %s8 = sld [smem:[#allocation0]]
  $region38: #{decoder_layer.11} parent=0
    _
  %s10 = ssub.s32 1, %s8
  %s11 = scalar_select 0, %s10, %s8
  $region1: #{decoder_layer.11} parent=0
    #allocation2 [shape = 'u8[8192]{0}', space=vmem, size = 0x2000, scoped, tag = 'output window, operand 0, single buffered']
    #allocation3 [shape = 's32[1]{0}', space=sflag, size = 0x4, scoped, tag = 'scoped memory for decoder_layer.11']
    %12 = vsyncpa [#allocation3], 0
    // Predicated region
    $region2: #{decoder_layer.11} parent=1 // pred_check
      _
    $region3: #{decoder_layer.11} parent=1 // pred_check_branch
      %14 = sbr.rel (0) target = $region5
    $region4: #{decoder_layer.11} parent=1 // pred_region
      _
    $region5: #{decoder_layer.11} parent=1 // pred_fallthru
      _
    // Predicated region
    $region6: #{decoder_layer.11} parent=1 // pred_check
      _
    $region7: #{decoder_layer.11} parent=1 // pred_check_branch
      %16 = sbr.rel (0) target = $region9
    $region8: #{decoder_layer.11} parent=1 // pred_region
      _
    $region9: #{decoder_layer.11} parent=1 // pred_fallthru
      _
    // Predicated region
    $region10: #{decoder_layer.11} parent=1 // pred_check
      _
    $region11: #{decoder_layer.11} parent=1 // pred_check_branch
      %18 = sbr.rel (0) target = $region13
    $region12: #{decoder_layer.11} parent=1 // pred_region
      _
    $region13: #{decoder_layer.11} parent=1 // pred_fallthru
      _
    // Predicated region
    $region14: #{decoder_layer.11} parent=1 // pred_check
      _
    $region15: #{decoder_layer.11} parent=1 // pred_check_branch
      %20 = sbr.rel (0) target = $region17
    $region16: #{decoder_layer.11} parent=1 // pred_region
      _
    $region17: #{decoder_layer.11} parent=1 // pred_fallthru
      _
    // Predicated region
    $region18: #{decoder_layer.11} parent=1 // pred_check
      _
    $region19: #{decoder_layer.11} parent=1 // pred_check_branch
      %22 = sbr.rel (0) target = $region21
    $region20: #{decoder_layer.11} parent=1 // pred_region
      _
    $region21: #{decoder_layer.11} parent=1 // pred_fallthru
      _
    // Predicated region
    $region22: #{decoder_layer.11} parent=1 // pred_check
      _
    $region23: #{decoder_layer.11} parent=1 // pred_check_branch
      %24 = sbr.rel (0) target = $region25
    $region24: #{decoder_layer.11} parent=1 // pred_region
      _
    $region25: #{decoder_layer.11} parent=1 // pred_fallthru
      _
    // Predicated region
    $region26: #{decoder_layer.11} parent=1 // pred_check
      _
    $region27: #{decoder_layer.11} parent=1 // pred_check_branch
      %26 = sbr.rel (0) target = $region29
    $region28: #{decoder_layer.11} parent=1 // pred_region
      _
    $region29: #{decoder_layer.11} parent=1 // pred_fallthru
      _
    %v28 = vld [vmem:[%s0] sm:$0xff]
    %v29 = vld [vmem:[%s0 + $0x8] sm:$0xff]
    %v30 = vld [vmem:[%s1] sm:$0x1]
    %v31 = vld [vmem:[%s2] sm:$0x1]
    %vm32 = vcmask 261120
    %v33 = vsel %vm32, %v28, 0.0
    %34 = vadd.xlane.f32.xlu0 %v33
    %v35 = vpop.xlane.xlu0 %34
    %v36 = vsel %vm32, %v29, 0.0
    %37 = vadd.xlane.f32.xlu0 %v36
    %v38 = vpop.xlane.xlu0 %37
    %v39 = vrcp.pop 32.0
    %v40 = vmul.f32 %v35, %v39
    %v41 = vmul.f32 %v38, %v39
    %v42 = vsub.f32 %v28, %v40
    %v43 = vsub.f32 %v29, %v41
    %v44 = vmul.f32 %v42, %v42
    %v45 = vmul.f32 %v43, %v43
    %v46 = vsel %vm32, %v44, 0.0
    %47 = vadd.xlane.f32.xlu0 %v46
    %v48 = vpop.xlane.xlu0 %47
    %v49 = vsel %vm32, %v45, 0.0
    %50 = vadd.xlane.f32.xlu0 %v49
    %v51 = vpop.xlane.xlu0 %50
    %v52 = vrcp.pop 31.0
    %v53 = vmul.f32 %v48, %v52
    %v54 = vmul.f32 %v51, %v52
    %v55 = vrsqrt.pop %v53
    %v56 = vmul.f32 %v53, %v55
    %vm57 = vcmp.eq.f32.partialorder %v53, inf
    %v58 = vsel %vm57, %v53, %v56
    %vm59 = vcmp.eq.f32.partialorder %v53, 0.0
    %v60 = vand.u32 %v53, 2147483648
    %v61 = vsel %vm59, %v60, %v58
    %v62 = vrsqrt.pop %v54
    %v63 = vmul.f32 %v54, %v62
    %vm64 = vcmp.eq.f32.partialorder %v54, inf
    %v65 = vsel %vm64, %v54, %v63
    %vm66 = vcmp.eq.f32.partialorder %v54, 0.0
    %v67 = vand.u32 %v54, 2147483648
    %v68 = vsel %vm66, %v67, %v65
    %v69 = vadd.f32 %v61, 1e-06
    %v70 = vadd.f32 %v68, 1e-06
    %v71 = vrcp.pop %v69
    %v72 = vrcp.pop %v70
    %v74 = vlaneseq
    %v75 = vshrl.u32 %v74, 7
    %v76 = vsub.s32 0, %v75
    %v77 = vrot.slane %v30, %v76
    %v79 = vmul.f32 %v77, %v42
    %v80 = vmul.f32 %v77, %v43
    %v81 = vmul.f32 %v79, %v71
    %v82 = vmul.f32 %v80, %v72
    %v84 = vlaneseq
    %v85 = vshrl.u32 %v84, 7
    %v86 = vsub.s32 0, %v85
    %v87 = vrot.slane %v31, %v86
    %v89 = vadd.f32 %v81, %v87
    %v90 = vadd.f32 %v82, %v87
    %v91 = vpack.c.bf16 %v90, %v89
    %v92 = vld [vmem:[%s3] sm:$0xf]
    %v93 = vld [vmem:[%s3 + $0x4] sm:$0xf]
    %v94 = vld [vmem:[%s3 + $0x8] sm:$0xf]
    %v95 = vld [vmem:[%s3 + $0xc] sm:$0xf]
    %v96 = vld [vmem:[%s4] sm:$0x1]
    %v98 = vlaneseq
    %v99 = vshrl.u32 %v98, 7
    %v100 = vsub.s32 0, %v99
    %v101 = vrot.slane %v96, %v100
    %v107 = vunpack.c.l.b16 %v92
    %v108 = vunpack.c.l.b16 %v93
    %v109 = vunpack.c.l.b16 %v94
    %v110 = vunpack.c.l.b16 %v95
    %v111 = vpack.c.b16 %v108, %v107
    %v112 = vpack.c.b16 %v110, %v109
    %v116 = vsel %vm32, %v91, 0
    %118 = vmatprep.subr.bf16.mxu0 0
    %119 = vmatpush1.bf16.msra.mxu0 %v111
    %120 = vmatprep.subr.bf16.mxu0 0
    %121 = vmatpush1.bf16.msra.mxu0 %v112
    %122 = vmatprep.subr.bf16.mxu0 0
    %123 = vmatpush1.bf16.msra.mxu0 0
    %124 = vmatprep.subr.bf16.mxu0 0
    %125 = vmatpush1.bf16.msra.mxu0 0
    %126 = vmatprep.subr.bf16.mxu0 0
    %127 = vmatpush1.bf16.msra.mxu0 0
    %128 = vmatprep.subr.bf16.mxu0 0
    %129 = vmatpush1.bf16.msra.mxu0 0
    %130 = vmatprep.subr.bf16.mxu0 0
    %131 = vmatpush1.bf16.msra.mxu0 0
    %132 = vmatprep.subr.bf16.mxu0 0
    %133 = vmatpush1.bf16.msra.mxu0 0
    %134 = vmatprep.subr.bf16.mxu0 0
    %135 = vmatpush1.bf16.msra.mxu0 0
    %136 = vmatprep.subr.bf16.mxu0 0
    %137 = vmatpush1.bf16.msra.mxu0 0
    %138 = vmatprep.subr.bf16.mxu0 0
    %139 = vmatpush1.bf16.msra.mxu0 0
    %140 = vmatprep.subr.bf16.mxu0 0
    %141 = vmatpush1.bf16.msra.mxu0 0
    %142 = vmatprep.subr.bf16.mxu0 0
    %143 = vmatpush1.bf16.msra.mxu0 0
    %144 = vmatprep.subr.bf16.mxu0 0
    %145 = vmatpush1.bf16.msra.mxu0 0
    %146 = vmatprep.subr.bf16.mxu0 0
    %147 = vmatpush1.bf16.msra.mxu0 0
    %148 = vmatprep.subr.bf16.mxu0 0
    %149 = vmatpush1.bf16.msra.mxu0 0
    %150 = vmatprep.mubr.bf16.mxu0 0
    %151 = vmatmul.mubr.bf16.gmra.mrb[0].mxu0 %v116
    %v152 = vpop.f32.mrb[0].mxu0
    %v153 = vadd.f32 %v101, %v152
    %v154 = vpop.f32.mrb[0].mxu0
    %v155 = vpop.f32.mrb[0].mxu0
    %v156 = vadd.f32 %v101, %v155
    %v157 = vpop.f32.mrb[0].mxu0
    %158 = vdwg.mxu0
    %v159 = vmax.f32 %v153, 0.0
    %v160 = vmax.f32 %v156, 0.0
    %v161 = vpack.c.bf16 %v160, %v159
    %v162 = vld [vmem:[%s5] sm:$0xf]
    %v163 = vld [vmem:[%s5 + $0x4] sm:$0xf]
    %v164 = vld [vmem:[%s5 + $0x8] sm:$0xf]
    %v165 = vld [vmem:[%s5 + $0xc] sm:$0xf]
    %v166 = vld [vmem:[%s5 + $0x10] sm:$0xf]
    %v167 = vld [vmem:[%s5 + $0x14] sm:$0xf]
    %v168 = vld [vmem:[%s5 + $0x18] sm:$0xf]
    %v169 = vld [vmem:[%s5 + $0x1c] sm:$0xf]
    %v170 = vld [vmem:[%s6] sm:$0x1]
    %v172 = vlaneseq
    %v173 = vshrl.u32 %v172, 7
    %v174 = vsub.s32 0, %v173
    %v175 = vrot.slane %v170, %v174
    %v185 = vunpack.c.l.b16 %v162
    %v186 = vunpack.c.l.b16 %v163
    %v187 = vunpack.c.l.b16 %v164
    %v188 = vunpack.c.l.b16 %v165
    %v189 = vunpack.c.l.b16 %v166
    %v190 = vunpack.c.l.b16 %v167
    %v191 = vunpack.c.l.b16 %v168
    %v192 = vunpack.c.l.b16 %v169
    %v193 = vpack.c.b16 %v186, %v185
    %v194 = vpack.c.b16 %v188, %v187
    %v195 = vpack.c.b16 %v190, %v189
    %v196 = vpack.c.b16 %v192, %v191
    %vm201 = vcmask 523264
    %v203 = vsel %vm201, %v161, 0
    %205 = vmatprep.subr.bf16.mxu0 0
    %206 = vmatpush1.bf16.msra.mxu0 %v193
    %207 = vmatprep.subr.bf16.mxu0 0
    %208 = vmatpush1.bf16.msra.mxu0 %v194
    %209 = vmatprep.subr.bf16.mxu0 0
    %210 = vmatpush1.bf16.msra.mxu0 %v195
    %211 = vmatprep.subr.bf16.mxu0 0
    %212 = vmatpush1.bf16.msra.mxu0 %v196
    %213 = vmatprep.subr.bf16.mxu0 0
    %214 = vmatpush1.bf16.msra.mxu0 0
    %215 = vmatprep.subr.bf16.mxu0 0
    %216 = vmatpush1.bf16.msra.mxu0 0
    %217 = vmatprep.subr.bf16.mxu0 0
    %218 = vmatpush1.bf16.msra.mxu0 0
    %219 = vmatprep.subr.bf16.mxu0 0
    %220 = vmatpush1.bf16.msra.mxu0 0
    %221 = vmatprep.subr.bf16.mxu0 0
    %222 = vmatpush1.bf16.msra.mxu0 0
    %223 = vmatprep.subr.bf16.mxu0 0
    %224 = vmatpush1.bf16.msra.mxu0 0
    %225 = vmatprep.subr.bf16.mxu0 0
    %226 = vmatpush1.bf16.msra.mxu0 0
    %227 = vmatprep.subr.bf16.mxu0 0
    %228 = vmatpush1.bf16.msra.mxu0 0
    %229 = vmatprep.subr.bf16.mxu0 0
    %230 = vmatpush1.bf16.msra.mxu0 0
    %231 = vmatprep.subr.bf16.mxu0 0
    %232 = vmatpush1.bf16.msra.mxu0 0
    %233 = vmatprep.subr.bf16.mxu0 0
    %234 = vmatpush1.bf16.msra.mxu0 0
    %235 = vmatprep.subr.bf16.mxu0 0
    %236 = vmatpush1.bf16.msra.mxu0 0
    %237 = vmatprep.mubr.bf16.mxu0 0
    %238 = vmatmul.mubr.bf16.gmra.mrb[0].mxu0 %v203
    %v239 = vpop.f32.mrb[0].mxu0
    %v240 = vadd.f32 %v175, %v239
    %v241 = vpop.f32.mrb[0].mxu0
    %v242 = vpop.f32.mrb[0].mxu0
    %v243 = vadd.f32 %v175, %v242
    %v244 = vpop.f32.mrb[0].mxu0
    %245 = vdwg.mxu0
    %v246 = vadd.f32 %v28, %v240
    %v247 = vadd.f32 %v29, %v243
    %248 = vst.msk [vmem:[#allocation2] sm:$0xff] %vm32, %v246
    %249 = vst.msk [vmem:[#allocation2 + $0x8] sm:$0xff] %vm32, %v247
    // Predicated region
    $region30: #{decoder_layer.11} parent=1 // pred_check
      _
    $region31: #{decoder_layer.11} parent=1 // pred_check_branch
      %251 = sbr.rel (0) target = $region33
    $region32: #{decoder_layer.11} parent=1 // pred_region
      %s253 = ssub.s32 256, 256
      %254 = vsyncadd [#allocation3], %s253
      %s255 = sshll.u32 [#allocation2], 4
      %s256 = int_to_ptr.vmem [resolvable:$true] %s255
      %261 = dma.vmem_to_hbm [thread:$0]  %s256, 256, %s7, [#allocation3], 128, 128, 8
    $region33: #{decoder_layer.11} parent=1 // pred_fallthru
      _
    // Predicated region
    $region34: #{decoder_layer.11} parent=1 // pred_check
      _
    $region35: #{decoder_layer.11} parent=1 // pred_check_branch
      %263 = sbr.rel (0) target = $region37
    $region36: #{decoder_layer.11} parent=1 // pred_region
      %264 = dma.done [#allocation3], 256
    $region37: #{decoder_layer.11} parent=1 // pred_fallthru
      _
    %265 = vsyncpa [#allocation3], 1

// kernel: decoder_layer.10
$region0: #{decoder_layer.10}
  #allocation0 [shape = 'u32[]', space=smem, size = 0x4, offset = 0x4, fixed_abs, tag = 'smem constant byte address 0x4 - core index']
  #allocation1 [shape = 'u32[144,128]{1,0:T(1,128)}', space=vmem, size = 0x12000, scoped, tag = 'internal scratch']
  %s0 = inlined_call_operand.vmem [shape: bf16[2,8,32], index: 0, kind: input, shape index: {}]
  %s1 = inlined_call_operand.vmem [shape: bf16[2,8,32], index: 1, kind: input, shape index: {}]
  %s2 = inlined_call_operand.vmem [shape: bf16[2,8,32], index: 2, kind: input, shape index: {}]
  %s3 = inlined_call_operand.vmem [shape: s32[2,1,8], index: 3, kind: input, shape index: {}]
  %s4 = inlined_call_operand.vmem [shape: f32[2,8,32], index: 4, kind: input, shape index: {}]
  %s5 = inlined_call_operand.vmem [shape: bf16[32,32], index: 5, kind: input, shape index: {}]
  %s6 = inlined_call_operand.vmem [shape: f32[1,32], index: 6, kind: input, shape index: {}]
  %s7 = inlined_call_operand.vmem [shape: f32[2,8,32], index: 7, kind: output, shape index: {}]
  %s8 = sld [smem:[#allocation0]]
  $region61: #{decoder_layer.10} parent=0
    _
  %s10 = ssub.s32 1, %s8
  %s11 = scalar_select 0, %s10, %s8
  loop: start=0, step=1, limit=4
  $region2: #{decoder_layer.10} parent=0 // loop_pre_header
    _
  $region3: #{decoder_layer.10} parent=0 // loop_header
    %s13 = sphi 0, %s17
    %p14 = scmp.ge.s32.totalorder %s13, 4
    %s20 = sphi 0, %s32
    %s21 = sphi 0, %s28
    %s22 = sphi 0, %s20
    %s23 = sphi 0, %s21
    %s24 = sphi 0, %s22
    %s25 = sphi 0, %s23
    %s37 = sphi 0, %s39
    %s40 = sphi 0, %s37
    %s41 = sphi 0, %s40
    %s57 = sphi 0, %s41
    %s63 = sphi 0, %s65
    %s66 = sphi 0, %s63
    %s67 = sphi 0, %s66
    %s83 = sphi 0, %s67
    %s89 = sphi 0, %s91
    %s92 = sphi 0, %s89
    %s93 = sphi 0, %s92
    %s109 = sphi 0, %s93
    %s115 = sphi 0, %s117
    %s118 = sphi 0, %s115
    %s119 = sphi 0, %s118
    %s135 = sphi 0, %s119
    %s143 = sphi 0, %s145
    %s146 = sphi 0, %s143
    %s147 = sphi 0, %s146
    %s163 = sphi 0, %s147
    %s167 = sphi 0, %s167
    %s169 = sphi 0, %s167
    %s170 = sphi 0, %s169
    %s184 = sphi 0, %s170
    %s188 = sphi 0, %s188
    %s190 = sphi 0, %s188
    %s191 = sphi 0, %s190
    %s205 = sphi 0, %s191
    %s213 = sphi 0, %s215
    %s216 = sphi 0, %s213
    %s217 = sphi 0, %s216
    %s233 = sphi 0, %s217
  $region4: #{decoder_layer.10} parent=0 // loop_header_branch
    %16 = sbr.rel (%p14) target = $region8
  $region5: #{decoder_layer.10} parent=0 // loop_body
    %s18 = ssub.s32 %s13, 1
    %s19 = ssub.s32 %s13, 2
    %s26 = sadd.s32 1, %s21
    %p27 = scmp.ge.s32.totalorder %s26, 1
    %s28 = scalar_select %p27, 0, %s26
    %s29 = sadd.s32 1, %s20
    %s30 = scalar_select %p27, %s29, %s20
    %p31 = scmp.ge.s32.totalorder %s30, 2
    %s32 = scalar_select %p31, 0, %s30
    %s33 = ssub.s32 %s20, %s32
    %s34 = ssub.s32 %s21, %s28
    %s35 = sor.u32 %s33, %s34
    %p36 = scmp.eq.s32.totalorder %s35, 0
    %s38 = sadd.s32 %s37, 1
    %s39 = scalar_select %p36, %s37, %s38
    %p42 = pneg %p36
    %p43 = scmp.eq.s32.totalorder %s13, 1
    %p44 = por %p42, %p43
    %p45 = scmp.ne.s32.totalorder %s37, %s40
    %p46 = scmp.eq.s32.totalorder %s13, 0
    %p47 = por %p45, %p46
    %p48 = scmp.ne.s32.totalorder %s37, %s40
    %p49 = scmp.eq.s32.totalorder %s18, 1
    %p50 = por %p48, %p49
    %p51 = scmp.ne.s32.totalorder %s40, %s41
    %p52 = scmp.eq.s32.totalorder %s18, 0
    %p53 = por %p51, %p52
    %p54 = scmp.ne.s32.totalorder %s40, %s41
    %p55 = scmp.eq.s32.totalorder %s19, 1
    %p56 = por %p54, %p55
    %p58 = scmp.ne.s32.totalorder %s41, %s57
    %p59 = scmp.eq.s32.totalorder %s19, 0
    %p60 = por %p58, %p59
    %s61 = ssub.s32 %s20, %s32
    %p62 = scmp.eq.s32.totalorder %s61, 0
    %s64 = sadd.s32 %s63, 1
    %s65 = scalar_select %p62, %s63, %s64
    %p68 = pneg %p62
    %p69 = scmp.eq.s32.totalorder %s13, 1
    %p70 = por %p68, %p69
    %p71 = scmp.ne.s32.totalorder %s63, %s66
    %p72 = scmp.eq.s32.totalorder %s13, 0
    %p73 = por %p71, %p72
    %p74 = scmp.ne.s32.totalorder %s63, %s66
    %p75 = scmp.eq.s32.totalorder %s18, 1
    %p76 = por %p74, %p75
    %p77 = scmp.ne.s32.totalorder %s66, %s67
    %p78 = scmp.eq.s32.totalorder %s18, 0
    %p79 = por %p77, %p78
    %p80 = scmp.ne.s32.totalorder %s66, %s67
    %p81 = scmp.eq.s32.totalorder %s19, 1
    %p82 = por %p80, %p81
    %p84 = scmp.ne.s32.totalorder %s67, %s83
    %p85 = scmp.eq.s32.totalorder %s19, 0
    %p86 = por %p84, %p85
    %s87 = ssub.s32 %s20, %s32
    %p88 = scmp.eq.s32.totalorder %s87, 0
    %s90 = sadd.s32 %s89, 1
    %s91 = scalar_select %p88, %s89, %s90
    %p94 = pneg %p88
    %p95 = scmp.eq.s32.totalorder %s13, 1
    %p96 = por %p94, %p95
    %p97 = scmp.ne.s32.totalorder %s89, %s92
    %p98 = scmp.eq.s32.totalorder %s13, 0
    %p99 = por %p97, %p98
    %p100 = scmp.ne.s32.totalorder %s89, %s92
    %p101 = scmp.eq.s32.totalorder %s18, 1
    %p102 = por %p100, %p101
    %p103 = scmp.ne.s32.totalorder %s92, %s93
    %p104 = scmp.eq.s32.totalorder %s18, 0
    %p105 = por %p103, %p104
    %p106 = scmp.ne.s32.totalorder %s92, %s93
    %p107 = scmp.eq.s32.totalorder %s19, 1
    %p108 = por %p106, %p107
    %p110 = scmp.ne.s32.totalorder %s93, %s109
    %p111 = scmp.eq.s32.totalorder %s19, 0
    %p112 = por %p110, %p111
    %s113 = ssub.s32 %s20, %s32
    %p114 = scmp.eq.s32.totalorder %s113, 0
    %s116 = sadd.s32 %s115, 1
    %s117 = scalar_select %p114, %s115, %s116
    %p120 = pneg %p114
    %p121 = scmp.eq.s32.totalorder %s13, 1
    %p122 = por %p120, %p121
    %p123 = scmp.ne.s32.totalorder %s115, %s118
    %p124 = scmp.eq.s32.totalorder %s13, 0
    %p125 = por %p123, %p124
    %p126 = scmp.ne.s32.totalorder %s115, %s118
    %p127 = scmp.eq.s32.totalorder %s18, 1
    %p128 = por %p126, %p127
    %p129 = scmp.ne.s32.totalorder %s118, %s119
    %p130 = scmp.eq.s32.totalorder %s18, 0
    %p131 = por %p129, %p130
    %p132 = scmp.ne.s32.totalorder %s118, %s119
    %p133 = scmp.eq.s32.totalorder %s19, 1
    %p134 = por %p132, %p133
    %p136 = scmp.ne.s32.totalorder %s119, %s135
    %p137 = scmp.eq.s32.totalorder %s19, 0
    %p138 = por %p136, %p137
    %s139 = ssub.s32 %s20, %s32
    %s140 = ssub.s32 %s21, %s28
    %s141 = sor.u32 %s139, %s140
    %p142 = scmp.eq.s32.totalorder %s141, 0
    %s144 = sadd.s32 %s143, 1
    %s145 = scalar_select %p142, %s143, %s144
    %p148 = pneg %p142
    %p149 = scmp.eq.s32.totalorder %s13, 1
    %p150 = por %p148, %p149
    %p151 = scmp.ne.s32.totalorder %s143, %s146
    %p152 = scmp.eq.s32.totalorder %s13, 0
    %p153 = por %p151, %p152
    %p154 = scmp.ne.s32.totalorder %s143, %s146
    %p155 = scmp.eq.s32.totalorder %s18, 1
    %p156 = por %p154, %p155
    %p157 = scmp.ne.s32.totalorder %s146, %s147
    %p158 = scmp.eq.s32.totalorder %s18, 0
    %p159 = por %p157, %p158
    %p160 = scmp.ne.s32.totalorder %s146, %s147
    %p161 = scmp.eq.s32.totalorder %s19, 1
    %p162 = por %p160, %p161
    %p164 = scmp.ne.s32.totalorder %s147, %s163
    %p165 = scmp.eq.s32.totalorder %s19, 0
    %p166 = por %p164, %p165
    %s168 = sadd.s32 %s167, 1
    %p171 = scmp.eq.s32.totalorder %s13, 1
    %p172 = scmp.ne.s32.totalorder %s167, %s169
    %p173 = scmp.eq.s32.totalorder %s13, 0
    %p174 = por %p172, %p173
    %p175 = scmp.ne.s32.totalorder %s167, %s169
    %p176 = scmp.eq.s32.totalorder %s18, 1
    %p177 = por %p175, %p176
    %p178 = scmp.ne.s32.totalorder %s169, %s170
    %p179 = scmp.eq.s32.totalorder %s18, 0
    %p180 = por %p178, %p179
    %p181 = scmp.ne.s32.totalorder %s169, %s170
    %p182 = scmp.eq.s32.totalorder %s19, 1
    %p183 = por %p181, %p182
    %p185 = scmp.ne.s32.totalorder %s170, %s184
    %p186 = scmp.eq.s32.totalorder %s19, 0
    %p187 = por %p185, %p186
    %s189 = sadd.s32 %s188, 1
    %p192 = scmp.eq.s32.totalorder %s13, 1
    %p193 = scmp.ne.s32.totalorder %s188, %s190
    %p194 = scmp.eq.s32.totalorder %s13, 0
    %p195 = por %p193, %p194
    %p196 = scmp.ne.s32.totalorder %s188, %s190
    %p197 = scmp.eq.s32.totalorder %s18, 1
    %p198 = por %p196, %p197
    %p199 = scmp.ne.s32.totalorder %s190, %s191
    %p200 = scmp.eq.s32.totalorder %s18, 0
    %p201 = por %p199, %p200
    %p202 = scmp.ne.s32.totalorder %s190, %s191
    %p203 = scmp.eq.s32.totalorder %s19, 1
    %p204 = por %p202, %p203
    %p206 = scmp.ne.s32.totalorder %s191, %s205
    %p207 = scmp.eq.s32.totalorder %s19, 0
    %p208 = por %p206, %p207
    %s209 = ssub.s32 %s20, %s32
    %s210 = ssub.s32 %s21, %s28
    %s211 = sor.u32 %s209, %s210
    %p212 = scmp.eq.s32.totalorder %s211, 0
    %s214 = sadd.s32 %s213, 1
    %s215 = scalar_select %p212, %s213, %s214
    %p218 = pneg %p212
    %p219 = scmp.eq.s32.totalorder %s13, 1
    %p220 = por %p218, %p219
    %p221 = scmp.ne.s32.totalorder %s213, %s216
    %p222 = scmp.eq.s32.totalorder %s13, 0
    %p223 = por %p221, %p222
    %p224 = scmp.ne.s32.totalorder %s213, %s216
    %p225 = scmp.eq.s32.totalorder %s18, 1
    %p226 = por %p224, %p225
    %p227 = scmp.ne.s32.totalorder %s216, %s217
    %p228 = scmp.eq.s32.totalorder %s18, 0
    %p229 = por %p227, %p228
    %p230 = scmp.ne.s32.totalorder %s216, %s217
    %p231 = scmp.eq.s32.totalorder %s19, 1
    %p232 = por %p230, %p231
    %p234 = scmp.ne.s32.totalorder %s217, %s233
    %p235 = scmp.eq.s32.totalorder %s19, 0
    %p236 = por %p234, %p235
    %p237 = scmp.le.s32.totalorder 1, %s13
    %p238 = scmp.lt.s32.totalorder %s13, 3
    %p239 = pnand %p237, %p238
    %p240 = pneg %p239
    // Predicated region
    $region9: #{decoder_layer.10} parent=5 // pred_check
      _
    $region10: #{decoder_layer.10} parent=5 // pred_check_branch
      %242 = sbr.rel (%p239) target = $region12
    $region11: #{decoder_layer.10} parent=5 // pred_region
      %s243 = ssub.s32 %s13, 1
      // Predicated region
      $region13: #{decoder_layer.10} parent=11 // pred_check
        %p244 = pneg %p180
      $region14: #{decoder_layer.10} parent=11 // pred_check_branch
        %246 = sbr.rel (%p244) target = $region16
      $region15: #{decoder_layer.10} parent=11 // pred_region
        _
      $region16: #{decoder_layer.10} parent=11 // pred_fallthru
        _
      // Predicated region
      $region17: #{decoder_layer.10} parent=11 // pred_check
        %p247 = pneg %p201
      $region18: #{decoder_layer.10} parent=11 // pred_check_branch
        %249 = sbr.rel (%p247) target = $region20
      $region19: #{decoder_layer.10} parent=11 // pred_region
        _
      $region20: #{decoder_layer.10} parent=11 // pred_fallthru
        _
    $region12: #{decoder_layer.10} parent=5 // pred_fallthru
      _
    %p250 = scmp.lt.s32.totalorder %s13, 2
    // Predicated region
    $region21: #{decoder_layer.10} parent=5 // pred_check
      %p251 = pneg %p250
    $region22: #{decoder_layer.10} parent=5 // pred_check_branch
      %253 = sbr.rel (%p251) target = $region24
    $region23: #{decoder_layer.10} parent=5 // pred_region
      // Predicated region
      $region25: #{decoder_layer.10} parent=23 // pred_check
        %p254 = pneg %p47
      $region26: #{decoder_layer.10} parent=23 // pred_check_branch
        %256 = sbr.rel (%p254) target = $region28
      $region27: #{decoder_layer.10} parent=23 // pred_region
        %p257 = scmp.lt.s32.totalorder %s20, 1
        %s258 = scalar_select %p257, %s20, 1
        %p259 = scmp.lt.s32.totalorder %s21, 0
        %s260 = scalar_select %p259, %s21, 0
        %s261 = sadd.s32 %s260, %s258
        %s262 = smul.addr %s261, 4
        %s263 = scalar_lea.vmem %s0, %s262
      $region28: #{decoder_layer.10} parent=23 // pred_fallthru
        _
      // Predicated region
      $region29: #{decoder_layer.10} parent=23 // pred_check
        %p264 = pneg %p73
      $region30: #{decoder_layer.10} parent=23 // pred_check_branch
        %266 = sbr.rel (%p264) target = $region32
      $region31: #{decoder_layer.10} parent=23 // pred_region
        %p267 = scmp.lt.s32.totalorder %s20, 1
        %s268 = scalar_select %p267, %s20, 1
        %s269 = smul.addr %s268, 4
        %s270 = scalar_lea.vmem %s1, %s269
      $region32: #{decoder_layer.10} parent=23 // pred_fallthru
        _
      // Predicated region
      $region33: #{decoder_layer.10} parent=23 // pred_check
        %p271 = pneg %p99
      $region34: #{decoder_layer.10} parent=23 // pred_check_branch
        %273 = sbr.rel (%p271) target = $region36
      $region35: #{decoder_layer.10} parent=23 // pred_region
        %p274 = scmp.lt.s32.totalorder %s20, 1
        %s275 = scalar_select %p274, %s20, 1
        %s276 = smul.addr %s275, 4
        %s277 = scalar_lea.vmem %s2, %s276
      $region36: #{decoder_layer.10} parent=23 // pred_fallthru
        _
      // Predicated region
      $region37: #{decoder_layer.10} parent=23 // pred_check
        %p278 = pneg %p125
      $region38: #{decoder_layer.10} parent=23 // pred_check_branch
        %280 = sbr.rel (%p278) target = $region40
      $region39: #{decoder_layer.10} parent=23 // pred_region
        %p281 = scmp.lt.s32.totalorder %s20, 1
        %s282 = scalar_select %p281, %s20, 1
        %s283 = scalar_lea.vmem %s3, %s282
      $region40: #{decoder_layer.10} parent=23 // pred_fallthru
        _
      // Predicated region
      $region41: #{decoder_layer.10} parent=23 // pred_check
        %p284 = pneg %p153
      $region42: #{decoder_layer.10} parent=23 // pred_check_branch
        %286 = sbr.rel (%p284) target = $region44
      $region43: #{decoder_layer.10} parent=23 // pred_region
        %p287 = scmp.lt.s32.totalorder %s20, 1
        %s288 = scalar_select %p287, %s20, 1
        %p289 = scmp.lt.s32.totalorder %s21, 0
        %s290 = scalar_select %p289, %s21, 0
        %s291 = sadd.s32 %s290, %s288
        %s292 = smul.addr %s291, 8
        %s293 = scalar_lea.vmem %s4, %s292
      $region44: #{decoder_layer.10} parent=23 // pred_fallthru
        _
    $region24: #{decoder_layer.10} parent=5 // pred_fallthru
      _
    %p294 = scmp.le.s32.totalorder 1, %s13
    %p295 = scmp.lt.s32.totalorder %s13, 3
    %p296 = pnand %p294, %p295
    %p297 = pneg %p296
    // Predicated region
    $region45: #{decoder_layer.10} parent=5 // pred_check
      _
    $region46: #{decoder_layer.10} parent=5 // pred_check_branch
      %299 = sbr.rel (%p296) target = $region48
    $region47: #{decoder_layer.10} parent=5 // pred_region
      %s300 = ssub.s32 %s13, 1
      %p301 = scmp.lt.s32.totalorder %s22, 1
      %s302 = scalar_select %p301, %s22, 1
      %p303 = scmp.lt.s32.totalorder %s23, 0
      %s304 = scalar_select %p303, %s23, 0
      %s305 = sadd.s32 %s304, %s302
      %s306 = smul.addr %s305, 4
      %s307 = scalar_lea.vmem %s0, %s306
      %p308 = pneg %p53
      %p309 = pneg %p50
      %p310 = scmp.lt.s32.totalorder %s22, 1
      %s311 = scalar_select %p310, %s22, 1
      %s312 = smul.addr %s311, 4
      %s313 = scalar_lea.vmem %s1, %s312
      %p314 = pneg %p79
      %p315 = pneg %p76
      %p316 = scmp.lt.s32.totalorder %s22, 1
      %s317 = scalar_select %p316, %s22, 1
      %s318 = smul.addr %s317, 4
      %s319 = scalar_lea.vmem %s2, %s318
      %p320 = pneg %p105
      %p321 = pneg %p102
      %p322 = scmp.lt.s32.totalorder %s22, 1
      %s323 = scalar_select %p322, %s22, 1
      %s324 = scalar_lea.vmem %s3, %s323
      %p325 = pneg %p131
      %p326 = pneg %p128
      %p327 = scmp.lt.s32.totalorder %s22, 1
      %s328 = scalar_select %p327, %s22, 1
      %p329 = scmp.lt.s32.totalorder %s23, 0
      %s330 = scalar_select %p329, %s23, 0
      %s331 = sadd.s32 %s330, %s328
      %s332 = smul.addr %s331, 8
      %s333 = scalar_lea.vmem %s4, %s332
      %p334 = pneg %p159
      %p335 = pneg %p156
      %p336 = pneg %p180
      %p337 = pneg %p177
      %p338 = pneg %p201
      %p339 = pneg %p198
      %p340 = pneg %p229
      %p341 = pneg %p226
      %p342 = scmp.lt.s32.totalorder %s22, 1
      %s343 = scalar_select %p342, %s22, 1
      %p344 = scmp.lt.s32.totalorder %s23, 0
      %s345 = scalar_select %p344, %s23, 0
      %s346 = sadd.s32 %s345, %s343
      %s347 = smul.addr %s346, 8
      %s348 = scalar_lea.vmem %s7, %s347
      %p349 = scmp.lt.s32.totalorder %s22, 1
      %s350 = scalar_select %p349, %s22, 1
      %p351 = scmp.lt.s32.totalorder %s23, 0
      %s352 = scalar_select %p351, %s23, 0
      %s353 = sadd.s32 %s352, %s350
      %s354 = smul.addr %s353, 4
      %s355 = scalar_lea.vmem %s0, %s354
      %p356 = scmp.lt.s32.totalorder %s22, 1
      %s357 = scalar_select %p356, %s22, 1
      %s358 = smul.addr %s357, 4
      %s359 = scalar_lea.vmem %s1, %s358
      %p360 = scmp.lt.s32.totalorder %s22, 1
      %s361 = scalar_select %p360, %s22, 1
      %s362 = smul.addr %s361, 4
      %s363 = scalar_lea.vmem %s2, %s362
      %p364 = scmp.lt.s32.totalorder %s22, 1
      %s365 = scalar_select %p364, %s22, 1
      %s366 = scalar_lea.vmem %s3, %s365
      %p367 = scmp.lt.s32.totalorder %s22, 1
      %s368 = scalar_select %p367, %s22, 1
      %p369 = scmp.lt.s32.totalorder %s23, 0
      %s370 = scalar_select %p369, %s23, 0
      %s371 = sadd.s32 %s370, %s368
      %s372 = smul.addr %s371, 8
      %s373 = scalar_lea.vmem %s4, %s372
      %p374 = scmp.lt.s32.totalorder %s22, 1
      %s375 = scalar_select %p374, %s22, 1
      %p376 = scmp.lt.s32.totalorder %s23, 0
      %s377 = scalar_select %p376, %s23, 0
      %s378 = sadd.s32 %s377, %s375
      %s379 = smul.addr %s378, 8
      %s380 = scalar_lea.vmem %s7, %s379
      %v382 = vld [vmem:[%s355] sm:$0xf]
      %v383 = vunpack.c.l.bf16 %v382
      %v384 = vmul.f32 %v383, 0.35355338
      %v385 = vpack.c.bf16 %v384, %v384
      %v386 = vld [vmem:[%s359] sm:$0xf]
      %v387 = vld [vmem:[%s363] sm:$0xf]
      %v388 = vld [vmem:[%s5] sm:$0xf]
      %v389 = vld [vmem:[%s5 + $0x4] sm:$0xf]
      %v390 = vld [vmem:[%s5 + $0x8] sm:$0xf]
      %v391 = vld [vmem:[%s5 + $0xc] sm:$0xf]
      %v392 = vld [vmem:[%s366] sm:$0x1]
      %vm393 = vcmp.eq.s32.totalorder %v392, 0
      %v394 = vsel %vm393, -1e+09, 0.0
      %v396 = vlaneseq
      %v397 = vshrl.u32 %v396, 7
      %v398 = vsub.s32 0, %v397
      %v399 = vrot.slane %v394, %v398
      %vm401 = vcmask 64512
      %v403 = vsel %vm401, %v385, 0
      %v406 = vsel %vm401, %v386, 0
      %408 = vmatprep.subr.bf16.mxu0 0
      %409 = vmatpush1.bf16.xpose.msra.mxu0 %v406
      %410 = vmatprep.subr.bf16.mxu0 0
      %411 = vmatpush1.bf16.xpose.msra.mxu0 0
      %412 = vmatprep.subr.bf16.mxu0 0
      %413 = vmatpush1.bf16.xpose.msra.mxu0 0
      %414 = vmatprep.subr.bf16.mxu0 0
      %415 = vmatpush1.bf16.xpose.msra.mxu0 0
      %416 = vmatprep.subr.bf16.mxu0 0
      %417 = vmatpush1.bf16.xpose.msra.mxu0 0
      %418 = vmatprep.subr.bf16.mxu0 0
      %419 = vmatpush1.bf16.xpose.msra.mxu0 0
      %420 = vmatprep.subr.bf16.mxu0 0
      %421 = vmatpush1.bf16.xpose.msra.mxu0 0
      %422 = vmatprep.subr.bf16.mxu0 0
      %423 = vmatpush1.bf16.xpose.msra.mxu0 0
      %424 = vmatprep.subr.bf16.mxu0 0
      %425 = vmatpush1.bf16.xpose.msra.mxu0 0
      %426 = vmatprep.subr.bf16.mxu0 0
      %427 = vmatpush1.bf16.xpose.msra.mxu0 0
      %428 = vmatprep.subr.bf16.mxu0 0
      %429 = vmatpush1.bf16.xpose.msra.mxu0 0
      %430 = vmatprep.subr.bf16.mxu0 0
      %431 = vmatpush1.bf16.xpose.msra.mxu0 0
      %432 = vmatprep.subr.bf16.mxu0 0
      %433 = vmatpush1.bf16.xpose.msra.mxu0 0
      %434 = vmatprep.subr.bf16.mxu0 0
      %435 = vmatpush1.bf16.xpose.msra.mxu0 0
      %436 = vmatprep.subr.bf16.mxu0 0
      %437 = vmatpush1.bf16.xpose.msra.mxu0 0
      %438 = vmatprep.subr.bf16.mxu0 0
      %439 = vmatpush1.bf16.xpose.msra.mxu0 0
      %440 = vmatprep.mubr.bf16.mxu0 0
      %441 = vmatmul.mubr.bf16.gmra.mrb[0].mxu0 %v403
      %v442 = vpop.f32.mrb[0].mxu0
      %v443 = vadd.f32 %v399, %v442
      %v444 = vpop.f32.mrb[0].mxu0
      %v445 = vpop.f32.mrb[0].mxu0
      %v446 = vpop.f32.mrb[0].mxu0
      %447 = vdwg.mxu0
      %v448 = vsel %vm401, %v443, -inf
      %449 = vmax.xlane.f32.xlu0 %v448
      %v450 = vpop.xlane.xlu0 %449
      %v451 = vsub.f32 %v443, %v450
      %v452 = vmul.f32 %v451, 1.442695
      %v453 = vpow.pop %v452
      %v454 = vsel %vm401, %v453, 0.0
      %455 = vadd.xlane.f32.xlu0 %v454
      %v456 = vpop.xlane.xlu0 %455
      %v457 = vrcp.pop %v456
      %v458 = vmul.f32 %v453, %v457
      %v459 = vpack.c.bf16 %v458, %v458
      %v461 = vsel %vm401, %v459, 0
      %vm463 = vcmask 1043456
      %v465 = vsel %vm463, %v387, 0
      %467 = vmatprep.subr.bf16.mxu0 0
      %468 = vmatpush1.bf16.msra.mxu0 %v465
      %469 = vmatprep.subr.bf16.mxu0 0
      %470 = vmatpush1.bf16.msra.mxu0 0
      %471 = vmatprep.subr.bf16.mxu0 0
      %472 = vmatpush1.bf16.msra.mxu0 0
      %473 = vmatprep.subr.bf16.mxu0 0
      %474 = vmatpush1.bf16.msra.mxu0 0
      %475 = vmatprep.subr.bf16.mxu0 0
      %476 = vmatpush1.bf16.msra.mxu0 0
      %477 = vmatprep.subr.bf16.mxu0 0
      %478 = vmatpush1.bf16.msra.mxu0 0
      %479 = vmatprep.subr.bf16.mxu0 0
      %480 = vmatpush1.bf16.msra.mxu0 0
      %481 = vmatprep.subr.bf16.mxu0 0
      %482 = vmatpush1.bf16.msra.mxu0 0
      %483 = vmatprep.subr.bf16.mxu0 0
      %484 = vmatpush1.bf16.msra.mxu0 0
      %485 = vmatprep.subr.bf16.mxu0 0
      %486 = vmatpush1.bf16.msra.mxu0 0
      %487 = vmatprep.subr.bf16.mxu0 0
      %488 = vmatpush1.bf16.msra.mxu0 0
      %489 = vmatprep.subr.bf16.mxu0 0
      %490 = vmatpush1.bf16.msra.mxu0 0
      %491 = vmatprep.subr.bf16.mxu0 0
      %492 = vmatpush1.bf16.msra.mxu0 0
      %493 = vmatprep.subr.bf16.mxu0 0
      %494 = vmatpush1.bf16.msra.mxu0 0
      %495 = vmatprep.subr.bf16.mxu0 0
      %496 = vmatpush1.bf16.msra.mxu0 0
      %497 = vmatprep.subr.bf16.mxu0 0
      %498 = vmatpush1.bf16.msra.mxu0 0
      %499 = vmatprep.mubr.bf16.mxu0 0
      %500 = vmatmul.mubr.bf16.gmra.mrb[0].mxu0 %v461
      %v501 = vpop.f32.mrb[0].mxu0
      %v502 = vadd.f32 0.0, %v501
      %v503 = vpop.f32.mrb[0].mxu0
      %v504 = vpop.f32.mrb[0].mxu0
      %v505 = vpop.f32.mrb[0].mxu0
      %506 = vdwg.mxu0
      %v507 = vpack.c.bf16 %v502, %v502
      %509 = vrot.lane.b32.xlu0 %v385, 120
      %v510 = vpop.permute.xlu0 %509
      %v512 = vunpack.c.l.b16 %v386
      %v513 = vpack.c.b16 %v512, %v512
      %514 = vrot.lane.b32.xlu0 %v513, 120
      %v515 = vpop.permute.xlu0 %514
      %v517 = vsel %vm401, %v510, 0
      %v520 = vsel %vm401, %v515, 0
      %522 = vmatprep.subr.bf16.mxu0 0
      %523 = vmatpush1.bf16.xpose.msra.mxu0 %v520
      %524 = vmatprep.subr.bf16.mxu0 0
      %525 = vmatpush1.bf16.xpose.msra.mxu0 0
      %526 = vmatprep.subr.bf16.mxu0 0
      %527 = vmatpush1.bf16.xpose.msra.mxu0 0
      %528 = vmatprep.subr.bf16.mxu0 0
      %529 = vmatpush1.bf16.xpose.msra.mxu0 0
      %530 = vmatprep.subr.bf16.mxu0 0
      %531 = vmatpush1.bf16.xpose.msra.mxu0 0
      %532 = vmatprep.subr.bf16.mxu0 0
      %533 = vmatpush1.bf16.xpose.msra.mxu0 0
      %534 = vmatprep.subr.bf16.mxu0 0
      %535 = vmatpush1.bf16.xpose.msra.mxu0 0
      %536 = vmatprep.subr.bf16.mxu0 0
      %537 = vmatpush1.bf16.xpose.msra.mxu0 0
      %538 = vmatprep.subr.bf16.mxu0 0
      %539 = vmatpush1.bf16.xpose.msra.mxu0 0
      %540 = vmatprep.subr.bf16.mxu0 0
      %541 = vmatpush1.bf16.xpose.msra.mxu0 0
      %542 = vmatprep.subr.bf16.mxu0 0
      %543 = vmatpush1.bf16.xpose.msra.mxu0 0
      %544 = vmatprep.subr.bf16.mxu0 0
      %545 = vmatpush1.bf16.xpose.msra.mxu0 0
      %546 = vmatprep.subr.bf16.mxu0 0
      %547 = vmatpush1.bf16.xpose.msra.mxu0 0
      %548 = vmatprep.subr.bf16.mxu0 0
      %549 = vmatpush1.bf16.xpose.msra.mxu0 0
      %550 = vmatprep.subr.bf16.mxu0 0
      %551 = vmatpush1.bf16.xpose.msra.mxu0 0
      %552 = vmatprep.subr.bf16.mxu0 0
      %553 = vmatpush1.bf16.xpose.msra.mxu0 0
      %554 = vmatprep.mubr.bf16.mxu0 0
      %555 = vmatmul.mubr.bf16.gmra.mrb[0].mxu0 %v517
      %v556 = vpop.f32.mrb[0].mxu0
      %v557 = vadd.f32 %v399, %v556
      %v558 = vpop.f32.mrb[0].mxu0
      %v559 = vpop.f32.mrb[0].mxu0
      %v560 = vpop.f32.mrb[0].mxu0
      %561 = vdwg.mxu0
      %v562 = vsel %vm401, %v557, -inf
      %563 = vmax.xlane.f32.xlu0 %v562
      %v564 = vpop.xlane.xlu0 %563
      %v565 = vsub.f32 %v557, %v564
      %v566 = vmul.f32 %v565, 1.442695
      %v567 = vpow.pop %v566
      %v568 = vsel %vm401, %v567, 0.0
      %569 = vadd.xlane.f32.xlu0 %v568
      %v570 = vpop.xlane.xlu0 %569
      %v571 = vrcp.pop %v570
      %v572 = vmul.f32 %v567, %v571
      %v573 = vpack.c.bf16 %v572, %v572
      %v575 = vunpack.c.l.b16 %v387
      %v576 = vpack.c.b16 %v575, %v575
      %577 = vrot.lane.b32.xlu0 %v576, 120
      %v578 = vpop.permute.xlu0 %577
      %v580 = vsel %vm401, %v573, 0
      %v583 = vsel %vm463, %v578, 0
      %585 = vmatprep.subr.bf16.mxu0 0
      %586 = vmatpush1.bf16.msra.mxu0 %v583
      %587 = vmatprep.subr.bf16.mxu0 0
      %588 = vmatpush1.bf16.msra.mxu0 0
      %589 = vmatprep.subr.bf16.mxu0 0
      %590 = vmatpush1.bf16.msra.mxu0 0
      %591 = vmatprep.subr.bf16.mxu0 0
      %592 = vmatpush1.bf16.msra.mxu0 0
      %593 = vmatprep.subr.bf16.mxu0 0
      %594 = vmatpush1.bf16.msra.mxu0 0
      %595 = vmatprep.subr.bf16.mxu0 0
      %596 = vmatpush1.bf16.msra.mxu0 0
      %597 = vmatprep.subr.bf16.mxu0 0
      %598 = vmatpush1.bf16.msra.mxu0 0
      %599 = vmatprep.subr.bf16.mxu0 0
      %600 = vmatpush1.bf16.msra.mxu0 0
      %601 = vmatprep.subr.bf16.mxu0 0
      %602 = vmatpush1.bf16.msra.mxu0 0
      %603 = vmatprep.subr.bf16.mxu0 0
      %604 = vmatpush1.bf16.msra.mxu0 0
      %605 = vmatprep.subr.bf16.mxu0 0
      %606 = vmatpush1.bf16.msra.mxu0 0
      %607 = vmatprep.subr.bf16.mxu0 0
      %608 = vmatpush1.bf16.msra.mxu0 0
      %609 = vmatprep.subr.bf16.mxu0 0
      %610 = vmatpush1.bf16.msra.mxu0 0
      %611 = vmatprep.subr.bf16.mxu0 0
      %612 = vmatpush1.bf16.msra.mxu0 0
      %613 = vmatprep.subr.bf16.mxu0 0
      %614 = vmatpush1.bf16.msra.mxu0 0
      %615 = vmatprep.subr.bf16.mxu0 0
      %616 = vmatpush1.bf16.msra.mxu0 0
      %617 = vmatprep.mubr.bf16.mxu0 0
      %618 = vmatmul.mubr.bf16.gmra.mrb[0].mxu0 %v580
      %v619 = vpop.f32.mrb[0].mxu0
      %v620 = vadd.f32 0.0, %v619
      %v621 = vpop.f32.mrb[0].mxu0
      %v622 = vpop.f32.mrb[0].mxu0
      %v623 = vpop.f32.mrb[0].mxu0
      %624 = vdwg.mxu0
      %v625 = vpack.c.bf16 %v620, %v620
      %v627 = vsel %vm401, %v625, 0
      %v630 = vsel %vm463, %v389, 0
      %632 = vmatprep.subr.bf16.mxu0 0
      %633 = vmatpush1.bf16.msra.mxu0 %v630
      %634 = vmatprep.subr.bf16.mxu0 0
      %635 = vmatpush1.bf16.msra.mxu0 0
      %636 = vmatprep.subr.bf16.mxu0 0
      %637 = vmatpush1.bf16.msra.mxu0 0
      %638 = vmatprep.subr.bf16.mxu0 0
      %639 = vmatpush1.bf16.msra.mxu0 0
      %640 = vmatprep.subr.bf16.mxu0 0
      %641 = vmatpush1.bf16.msra.mxu0 0
      %642 = vmatprep.subr.bf16.mxu0 0
      %643 = vmatpush1.bf16.msra.mxu0 0
      %644 = vmatprep.subr.bf16.mxu0 0
      %645 = vmatpush1.bf16.msra.mxu0 0
      %646 = vmatprep.subr.bf16.mxu0 0
      %647 = vmatpush1.bf16.msra.mxu0 0
      %648 = vmatprep.subr.bf16.mxu0 0
      %649 = vmatpush1.bf16.msra.mxu0 0
      %650 = vmatprep.subr.bf16.mxu0 0
      %651 = vmatpush1.bf16.msra.mxu0 0
      %652 = vmatprep.subr.bf16.mxu0 0
      %653 = vmatpush1.bf16.msra.mxu0 0
      %654 = vmatprep.subr.bf16.mxu0 0
      %655 = vmatpush1.bf16.msra.mxu0 0
      %656 = vmatprep.subr.bf16.mxu0 0
      %657 = vmatpush1.bf16.msra.mxu0 0
      %658 = vmatprep.subr.bf16.mxu0 0
      %659 = vmatpush1.bf16.msra.mxu0 0
      %660 = vmatprep.subr.bf16.mxu0 0
      %661 = vmatpush1.bf16.msra.mxu0 0
      %662 = vmatprep.subr.bf16.mxu0 0
      %663 = vmatpush1.bf16.msra.mxu0 0
      %664 = vmatprep.mubr.bf16.mxu0 0
      %665 = vmatmul.mubr.bf16.gmra.mrb[0].mxu0 %v627
      %v666 = vpop.f32.mrb[0].mxu0
      %v667 = vadd.f32 0.0, %v666
      %v668 = vpop.f32.mrb[0].mxu0
      %v669 = vpop.f32.mrb[0].mxu0
      %v670 = vpop.f32.mrb[0].mxu0
      %671 = vdwg.mxu0
      %v673 = vsel %vm401, %v507, 0
      %v676 = vsel %vm463, %v388, 0
      %678 = vmatprep.subr.bf16.mxu0 0
      %679 = vmatpush1.bf16.msra.mxu0 %v676
      %680 = vmatprep.subr.bf16.mxu0 0
      %681 = vmatpush1.bf16.msra.mxu0 0
      %682 = vmatprep.subr.bf16.mxu0 0
      %683 = vmatpush1.bf16.msra.mxu0 0
      %684 = vmatprep.subr.bf16.mxu0 0
      %685 = vmatpush1.bf16.msra.mxu0 0
      %686 = vmatprep.subr.bf16.mxu0 0
      %687 = vmatpush1.bf16.msra.mxu0 0
      %688 = vmatprep.subr.bf16.mxu0 0
      %689 = vmatpush1.bf16.msra.mxu0 0
      %690 = vmatprep.subr.bf16.mxu0 0
      %691 = vmatpush1.bf16.msra.mxu0 0
      %692 = vmatprep.subr.bf16.mxu0 0
      %693 = vmatpush1.bf16.msra.mxu0 0
      %694 = vmatprep.subr.bf16.mxu0 0
      %695 = vmatpush1.bf16.msra.mxu0 0
      %696 = vmatprep.subr.bf16.mxu0 0
      %697 = vmatpush1.bf16.msra.mxu0 0
      %698 = vmatprep.subr.bf16.mxu0 0
      %699 = vmatpush1.bf16.msra.mxu0 0
      %700 = vmatprep.subr.bf16.mxu0 0
      %701 = vmatpush1.bf16.msra.mxu0 0
      %702 = vmatprep.subr.bf16.mxu0 0
      %703 = vmatpush1.bf16.msra.mxu0 0
      %704 = vmatprep.subr.bf16.mxu0 0
      %705 = vmatpush1.bf16.msra.mxu0 0
      %706 = vmatprep.subr.bf16.mxu0 0
      %707 = vmatpush1.bf16.msra.mxu0 0
      %708 = vmatprep.subr.bf16.mxu0 0
      %709 = vmatpush1.bf16.msra.mxu0 0
      %710 = vmatprep.mubr.bf16.mxu0 0
      %711 = vmatmul.mubr.bf16.gmra.mrb[0].mxu0 %v673
      %v712 = vpop.f32.mrb[0].mxu0
      %v713 = vadd.f32 %v667, %v712
      %v714 = vpop.f32.mrb[0].mxu0
      %v715 = vpop.f32.mrb[0].mxu0
      %v716 = vpop.f32.mrb[0].mxu0
      %717 = vdwg.mxu0
      %718 = vrot.lane.b32.xlu0 %v385, 112
      %v719 = vpop.permute.xlu0 %718
      %720 = vrot.lane.b32.xlu0 %v513, 112
      %v721 = vpop.permute.xlu0 %720
      %v723 = vsel %vm401, %v719, 0
      %v726 = vsel %vm401, %v721, 0
      %728 = vmatprep.subr.bf16.mxu0 0
      %729 = vmatpush1.bf16.xpose.msra.mxu0 %v726
      %730 = vmatprep.subr.bf16.mxu0 0
      %731 = vmatpush1.bf16.xpose.msra.mxu0 0
      %732 = vmatprep.subr.bf16.mxu0 0
      %733 = vmatpush1.bf16.xpose.msra.mxu0 0
      %734 = vmatprep.subr.bf16.mxu0 0
      %735 = vmatpush1.bf16.xpose.msra.mxu0 0
      %736 = vmatprep.subr.bf16.mxu0 0
      %737 = vmatpush1.bf16.xpose.msra.mxu0 0
      %738 = vmatprep.subr.bf16.mxu0 0
      %739 = vmatpush1.bf16.xpose.msra.mxu0 0
      %740 = vmatprep.subr.bf16.mxu0 0
      %741 = vmatpush1.bf16.xpose.msra.mxu0 0
      %742 = vmatprep.subr.bf16.mxu0 0
      %743 = vmatpush1.bf16.xpose.msra.mxu0 0
      %744 = vmatprep.subr.bf16.mxu0 0
      %745 = vmatpush1.bf16.xpose.msra.mxu0 0
      %746 = vmatprep.subr.bf16.mxu0 0
      %747 = vmatpush1.bf16.xpose.msra.mxu0 0
      %748 = vmatprep.subr.bf16.mxu0 0
      %749 = vmatpush1.bf16.xpose.msra.mxu0 0
      %750 = vmatprep.subr.bf16.mxu0 0
      %751 = vmatpush1.bf16.xpose.msra.mxu0 0
      %752 = vmatprep.subr.bf16.mxu0 0
      %753 = vmatpush1.bf16.xpose.msra.mxu0 0
      %754 = vmatprep.subr.bf16.mxu0 0
      %755 = vmatpush1.bf16.xpose.msra.mxu0 0
      %756 = vmatprep.subr.bf16.mxu0 0
      %757 = vmatpush1.bf16.xpose.msra.mxu0 0
      %758 = vmatprep.subr.bf16.mxu0 0
      %759 = vmatpush1.bf16.xpose.msra.mxu0 0
      %760 = vmatprep.mubr.bf16.mxu0 0
      %761 = vmatmul.mubr.bf16.gmra.mrb[0].mxu0 %v723
      %v762 = vpop.f32.mrb[0].mxu0
      %v763 = vadd.f32 %v399, %v762
      %v764 = vpop.f32.mrb[0].mxu0
      %v765 = vpop.f32.mrb[0].mxu0
      %v766 = vpop.f32.mrb[0].mxu0
      %767 = vdwg.mxu0
      %v768 = vsel %vm401, %v763, -inf
      %769 = vmax.xlane.f32.xlu0 %v768
      %v770 = vpop.xlane.xlu0 %769
      %v771 = vsub.f32 %v763, %v770
      %v772 = vmul.f32 %v771, 1.442695
      %v773 = vpow.pop %v772
      %v774 = vsel %vm401, %v773, 0.0
      %775 = vadd.xlane.f32.xlu0 %v774
      %v776 = vpop.xlane.xlu0 %775
      %v777 = vrcp.pop %v776
      %v778 = vmul.f32 %v773, %v777
      %v779 = vpack.c.bf16 %v778, %v778
      %780 = vrot.lane.b32.xlu0 %v576, 112
      %v781 = vpop.permute.xlu0 %780
      %v783 = vsel %vm401, %v779, 0
      %v786 = vsel %vm463, %v781, 0
      %788 = vmatprep.subr.bf16.mxu0 0
      %789 = vmatpush1.bf16.msra.mxu0 %v786
      %790 = vmatprep.subr.bf16.mxu0 0
      %791 = vmatpush1.bf16.msra.mxu0 0
      %792 = vmatprep.subr.bf16.mxu0 0
      %793 = vmatpush1.bf16.msra.mxu0 0
      %794 = vmatprep.subr.bf16.mxu0 0
      %795 = vmatpush1.bf16.msra.mxu0 0
      %796 = vmatprep.subr.bf16.mxu0 0
      %797 = vmatpush1.bf16.msra.mxu0 0
      %798 = vmatprep.subr.bf16.mxu0 0
      %799 = vmatpush1.bf16.msra.mxu0 0
      %800 = vmatprep.subr.bf16.mxu0 0
      %801 = vmatpush1.bf16.msra.mxu0 0
      %802 = vmatprep.subr.bf16.mxu0 0
      %803 = vmatpush1.bf16.msra.mxu0 0
      %804 = vmatprep.subr.bf16.mxu0 0
      %805 = vmatpush1.bf16.msra.mxu0 0
      %806 = vmatprep.subr.bf16.mxu0 0
      %807 = vmatpush1.bf16.msra.mxu0 0
      %808 = vmatprep.subr.bf16.mxu0 0
      %809 = vmatpush1.bf16.msra.mxu0 0
      %810 = vmatprep.subr.bf16.mxu0 0
      %811 = vmatpush1.bf16.msra.mxu0 0
      %812 = vmatprep.subr.bf16.mxu0 0
      %813 = vmatpush1.bf16.msra.mxu0 0
      %814 = vmatprep.subr.bf16.mxu0 0
      %815 = vmatpush1.bf16.msra.mxu0 0
      %816 = vmatprep.subr.bf16.mxu0 0
      %817 = vmatpush1.bf16.msra.mxu0 0
      %818 = vmatprep.subr.bf16.mxu0 0
      %819 = vmatpush1.bf16.msra.mxu0 0
      %820 = vmatprep.mubr.bf16.mxu0 0
      %821 = vmatmul.mubr.bf16.gmra.mrb[0].mxu0 %v783
      %v822 = vpop.f32.mrb[0].mxu0
      %v823 = vadd.f32 0.0, %v822
      %v824 = vpop.f32.mrb[0].mxu0
      %v825 = vpop.f32.mrb[0].mxu0
      %v826 = vpop.f32.mrb[0].mxu0
      %827 = vdwg.mxu0
      %v828 = vpack.c.bf16 %v823, %v823
      %v830 = vsel %vm401, %v828, 0
      %v833 = vsel %vm463, %v390, 0
      %835 = vmatprep.subr.bf16.mxu0 0
      %836 = vmatpush1.bf16.msra.mxu0 %v833
      %837 = vmatprep.subr.bf16.mxu0 0
      %838 = vmatpush1.bf16.msra.mxu0 0
      %839 = vmatprep.subr.bf16.mxu0 0
      %840 = vmatpush1.bf16.msra.mxu0 0
      %841 = vmatprep.subr.bf16.mxu0 0
      %842 = vmatpush1.bf16.msra.mxu0 0
      %843 = vmatprep.subr.bf16.mxu0 0
      %844 = vmatpush1.bf16.msra.mxu0 0
      %845 = vmatprep.subr.bf16.mxu0 0
      %846 = vmatpush1.bf16.msra.mxu0 0
      %847 = vmatprep.subr.bf16.mxu0 0
      %848 = vmatpush1.bf16.msra.mxu0 0
      %849 = vmatprep.subr.bf16.mxu0 0
      %850 = vmatpush1.bf16.msra.mxu0 0
      %851 = vmatprep.subr.bf16.mxu0 0
      %852 = vmatpush1.bf16.msra.mxu0 0
      %853 = vmatprep.subr.bf16.mxu0 0
      %854 = vmatpush1.bf16.msra.mxu0 0
      %855 = vmatprep.subr.bf16.mxu0 0
      %856 = vmatpush1.bf16.msra.mxu0 0
      %857 = vmatprep.subr.bf16.mxu0 0
      %858 = vmatpush1.bf16.msra.mxu0 0
      %859 = vmatprep.subr.bf16.mxu0 0
      %860 = vmatpush1.bf16.msra.mxu0 0
      %861 = vmatprep.subr.bf16.mxu0 0
      %862 = vmatpush1.bf16.msra.mxu0 0
      %863 = vmatprep.subr.bf16.mxu0 0
      %864 = vmatpush1.bf16.msra.mxu0 0
      %865 = vmatprep.subr.bf16.mxu0 0
      %866 = vmatpush1.bf16.msra.mxu0 0
      %867 = vmatprep.mubr.bf16.mxu0 0
      %868 = vmatmul.mubr.bf16.gmra.mrb[0].mxu0 %v830
      %v869 = vpop.f32.mrb[0].mxu0
      %v870 = vadd.f32 0.0, %v869
      %v871 = vpop.f32.mrb[0].mxu0
      %v872 = vpop.f32.mrb[0].mxu0
      %v873 = vpop.f32.mrb[0].mxu0
      %874 = vdwg.mxu0
      %v875 = vadd.f32 %v713, %v870
      %876 = vrot.lane.b32.xlu0 %v385, 104
      %v877 = vpop.permute.xlu0 %876
      %878 = vrot.lane.b32.xlu0 %v513, 104
      %v879 = vpop.permute.xlu0 %878
      %v881 = vsel %vm401, %v877, 0
      %v884 = vsel %vm401, %v879, 0
      %886 = vmatprep.subr.bf16.mxu0 0
      %887 = vmatpush1.bf16.xpose.msra.mxu0 %v884
      %888 = vmatprep.subr.bf16.mxu0 0
      %889 = vmatpush1.bf16.xpose.msra.mxu0 0
      %890 = vmatprep.subr.bf16.mxu0 0
      %891 = vmatpush1.bf16.xpose.msra.mxu0 0
      %892 = vmatprep.subr.bf16.mxu0 0
      %893 = vmatpush1.bf16.xpose.msra.mxu0 0
      %894 = vmatprep.subr.bf16.mxu0 0
      %895 = vmatpush1.bf16.xpose.msra.mxu0 0
      %896 = vmatprep.subr.bf16.mxu0 0
      %897 = vmatpush1.bf16.xpose.msra.mxu0 0
      %898 = vmatprep.subr.bf16.mxu0 0
      %899 = vmatpush1.bf16.xpose.msra.mxu0 0
      %900 = vmatprep.subr.bf16.mxu0 0
      %901 = vmatpush1.bf16.xpose.msra.mxu0 0
      %902 = vmatprep.subr.bf16.mxu0 0
      %903 = vmatpush1.bf16.xpose.msra.mxu0 0
      %904 = vmatprep.subr.bf16.mxu0 0
      %905 = vmatpush1.bf16.xpose.msra.mxu0 0
      %906 = vmatprep.subr.bf16.mxu0 0
      %907 = vmatpush1.bf16.xpose.msra.mxu0 0
      %908 = vmatprep.subr.bf16.mxu0 0
      %909 = vmatpush1.bf16.xpose.msra.mxu0 0
      %910 = vmatprep.subr.bf16.mxu0 0
      %911 = vmatpush1.bf16.xpose.msra.mxu0 0
      %912 = vmatprep.subr.bf16.mxu0 0
      %913 = vmatpush1.bf16.xpose.msra.mxu0 0
      %914 = vmatprep.subr.bf16.mxu0 0
      %915 = vmatpush1.bf16.xpose.msra.mxu0 0
      %916 = vmatprep.subr.bf16.mxu0 0
      %917 = vmatpush1.bf16.xpose.msra.mxu0 0
      %918 = vmatprep.mubr.bf16.mxu0 0
      %919 = vmatmul.mubr.bf16.gmra.mrb[0].mxu0 %v881
      %v920 = vpop.f32.mrb[0].mxu0
      %v921 = vadd.f32 %v399, %v920
      %v922 = vpop.f32.mrb[0].mxu0
      %v923 = vpop.f32.mrb[0].mxu0
      %v924 = vpop.f32.mrb[0].mxu0
      %925 = vdwg.mxu0
      %v926 = vsel %vm401, %v921, -inf
      %927 = vmax.xlane.f32.xlu0 %v926
      %v928 = vpop.xlane.xlu0 %927
      %v929 = vsub.f32 %v921, %v928
      %v930 = vmul.f32 %v929, 1.442695
      %v931 = vpow.pop %v930
      %v932 = vsel %vm401, %v931, 0.0
      %933 = vadd.xlane.f32.xlu0 %v932
      %v934 = vpop.xlane.xlu0 %933
      %v935 = vrcp.pop %v934
      %v936 = vmul.f32 %v931, %v935
      %v937 = vpack.c.bf16 %v936, %v936
      %938 = vrot.lane.b32.xlu0 %v576, 104
      %v939 = vpop.permute.xlu0 %938
      %v941 = vsel %vm401, %v937, 0
      %v944 = vsel %vm463, %v939, 0
      %946 = vmatprep.subr.bf16.mxu0 0
      %947 = vmatpush1.bf16.msra.mxu0 %v944
      %948 = vmatprep.subr.bf16.mxu0 0
      %949 = vmatpush1.bf16.msra.mxu0 0
      %950 = vmatprep.subr.bf16.mxu0 0
      %951 = vmatpush1.bf16.msra.mxu0 0
      %952 = vmatprep.subr.bf16.mxu0 0
      %953 = vmatpush1.bf16.msra.mxu0 0
      %954 = vmatprep.subr.bf16.mxu0 0
      %955 = vmatpush1.bf16.msra.mxu0 0
      %956 = vmatprep.subr.bf16.mxu0 0
      %957 = vmatpush1.bf16.msra.mxu0 0
      %958 = vmatprep.subr.bf16.mxu0 0
      %959 = vmatpush1.bf16.msra.mxu0 0
      %960 = vmatprep.subr.bf16.mxu0 0
      %961 = vmatpush1.bf16.msra.mxu0 0
      %962 = vmatprep.subr.bf16.mxu0 0
      %963 = vmatpush1.bf16.msra.mxu0 0
      %964 = vmatprep.subr.bf16.mxu0 0
      %965 = vmatpush1.bf16.msra.mxu0 0
      %966 = vmatprep.subr.bf16.mxu0 0
      %967 = vmatpush1.bf16.msra.mxu0 0
      %968 = vmatprep.subr.bf16.mxu0 0
      %969 = vmatpush1.bf16.msra.mxu0 0
      %970 = vmatprep.subr.bf16.mxu0 0
      %971 = vmatpush1.bf16.msra.mxu0 0
      %972 = vmatprep.subr.bf16.mxu0 0
      %973 = vmatpush1.bf16.msra.mxu0 0
      %974 = vmatprep.subr.bf16.mxu0 0
      %975 = vmatpush1.bf16.msra.mxu0 0
      %976 = vmatprep.subr.bf16.mxu0 0
      %977 = vmatpush1.bf16.msra.mxu0 0
      %978 = vmatprep.mubr.bf16.mxu0 0
      %979 = vmatmul.mubr.bf16.gmra.mrb[0].mxu0 %v941
      %v980 = vpop.f32.mrb[0].mxu0
      %v981 = vadd.f32 0.0, %v980
      %v982 = vpop.f32.mrb[0].mxu0
      %v983 = vpop.f32.mrb[0].mxu0
      %v984 = vpop.f32.mrb[0].mxu0
      %985 = vdwg.mxu0
      %v986 = vpack.c.bf16 %v981, %v981
      %v988 = vsel %vm401, %v986, 0
      %v991 = vsel %vm463, %v391, 0
      %993 = vmatprep.subr.bf16.mxu0 0
      %994 = vmatpush1.bf16.msra.mxu0 %v991
      %995 = vmatprep.subr.bf16.mxu0 0
      %996 = vmatpush1.bf16.msra.mxu0 0
      %997 = vmatprep.subr.bf16.mxu0 0
      %998 = vmatpush1.bf16.msra.mxu0 0
      %999 = vmatprep.subr.bf16.mxu0 0
      %1000 = vmatpush1.bf16.msra.mxu0 0
      %1001 = vmatprep.subr.bf16.mxu0 0
      %1002 = vmatpush1.bf16.msra.mxu0 0
      %1003 = vmatprep.subr.bf16.mxu0 0
      %1004 = vmatpush1.bf16.msra.mxu0 0
      %1005 = vmatprep.subr.bf16.mxu0 0
      %1006 = vmatpush1.bf16.msra.mxu0 0
      %1007 = vmatprep.subr.bf16.mxu0 0
      %1008 = vmatpush1.bf16.msra.mxu0 0
      %1009 = vmatprep.subr.bf16.mxu0 0
      %1010 = vmatpush1.bf16.msra.mxu0 0
      %1011 = vmatprep.subr.bf16.mxu0 0
      %1012 = vmatpush1.bf16.msra.mxu0 0
      %1013 = vmatprep.subr.bf16.mxu0 0
      %1014 = vmatpush1.bf16.msra.mxu0 0
      %1015 = vmatprep.subr.bf16.mxu0 0
      %1016 = vmatpush1.bf16.msra.mxu0 0
      %1017 = vmatprep.subr.bf16.mxu0 0
      %1018 = vmatpush1.bf16.msra.mxu0 0
      %1019 = vmatprep.subr.bf16.mxu0 0
      %1020 = vmatpush1.bf16.msra.mxu0 0
      %1021 = vmatprep.subr.bf16.mxu0 0
      %1022 = vmatpush1.bf16.msra.mxu0 0
      %1023 = vmatprep.subr.bf16.mxu0 0
      %1024 = vmatpush1.bf16.msra.mxu0 0
      %1025 = vmatprep.mubr.bf16.mxu0 0
      %1026 = vmatmul.mubr.bf16.gmra.mrb[0].mxu0 %v988
      %v1027 = vpop.f32.mrb[0].mxu0
      %v1028 = vadd.f32 0.0, %v1027
      %v1029 = vpop.f32.mrb[0].mxu0
      %v1030 = vpop.f32.mrb[0].mxu0
      %v1031 = vpop.f32.mrb[0].mxu0
      %1032 = vdwg.mxu0
      %v1033 = vadd.f32 %v875, %v1028
      %v1034 = vld [vmem:[%s373] sm:$0xff]
      %v1035 = vadd.f32 %v1034, %v1033
      %v1036 = vld [vmem:[%s6] sm:$0x1]
      %v1038 = vlaneseq
      %v1039 = vshrl.u32 %v1038, 7
      %v1040 = vsub.s32 0, %v1039
      %v1041 = vrot.slane %v1036, %v1040
      %v1043 = vadd.f32 %v1035, %v1041
      %vm1044 = vcmask 261120
      %1045 = vst.msk [vmem:[%s380] sm:$0xff] %vm1044, %v1043
      %p1046 = scmp.lt.s32.totalorder %s22, 1
      %s1047 = scalar_select %p1046, %s22, 1
      %p1048 = scmp.lt.s32.totalorder %s23, 0
      %s1049 = scalar_select %p1048, %s23, 0
      %s1050 = sadd.s32 %s1049, %s1047
      %s1051 = smul.addr %s1050, 8
      %s1052 = scalar_lea.vmem %s7, %s1051
      // Predicated region
      $region49: #{decoder_layer.10} parent=47 // pred_check
        %p1053 = pneg %p226
      $region50: #{decoder_layer.10} parent=47 // pred_check_branch
        %1055 = sbr.rel (%p1053) target = $region52
      $region51: #{decoder_layer.10} parent=47 // pred_region
        _
      $region52: #{decoder_layer.10} parent=47 // pred_fallthru
        _
    $region48: #{decoder_layer.10} parent=5 // pred_fallthru
      _
    %p1056 = scmp.le.s32.totalorder 2, %s13
    // Predicated region
    $region53: #{decoder_layer.10} parent=5 // pred_check
      %p1057 = pneg %p1056
    $region54: #{decoder_layer.10} parent=5 // pred_check_branch
      %1059 = sbr.rel (%p1057) target = $region56
    $region55: #{decoder_layer.10} parent=5 // pred_region
      %s1060 = ssub.s32 %s13, 2
      // Predicated region
      $region57: #{decoder_layer.10} parent=55 // pred_check
        %p1061 = pneg %p232
      $region58: #{decoder_layer.10} parent=55 // pred_check_branch
        %1063 = sbr.rel (%p1061) target = $region60
      $region59: #{decoder_layer.10} parent=55 // pred_region
        %p1064 = scmp.lt.s32.totalorder %s24, 1
        %s1065 = scalar_select %p1064, %s24, 1
        %p1066 = scmp.lt.s32.totalorder %s25, 0
        %s1067 = scalar_select %p1066, %s25, 0
        %s1068 = sadd.s32 %s1067, %s1065
        %s1069 = smul.addr %s1068, 8
        %s1070 = scalar_lea.vmem %s7, %s1069
      $region60: #{decoder_layer.10} parent=55 // pred_fallthru
        _
    $region56: #{decoder_layer.10} parent=5 // pred_fallthru
      _
  $region6: #{decoder_layer.10} parent=0 // loop_footer
    %s17 = sadd.s32 1, %s13
  $region7: #{decoder_layer.10} parent=0 // loop_footer_branch
    %12 = sbr.rel target = $region3
  $region8: #{decoder_layer.10} parent=0 // loop_exit
    _

</llo_original>
